<compile_context>
chip_gen: v6e
topology: v6e:2x2x1
jax: 0.10.0
libtpu: 0.0.40
codegen_flags: <defaults>
</compile_context>

<pallas_src>
import jax
import jax.numpy as jnp
from jax import lax
from jax.experimental import pallas as pl
from jax.experimental.pallas import tpu as pltpu


# ----------------------------- static shape plan ----------------------------

def _plan(H, W):
    """Static shape bookkeeping for input spatial size (H, W)."""
    assert H % 32 == 0 and W % 32 == 0, "spatial size must be a multiple of 32"
    p = {}
    p["C0"] = 16
    p["OH0"], p["OW0"] = H // 2, W // 2            # after conv0 (stride 2)
    p["H1"], p["W1"] = p["OH0"] // 2, p["OW0"] // 2  # after pool0
    p["C1"] = 32
    p["OH1"], p["OW1"] = p["H1"] // 2, p["W1"] // 2  # after conv1
    p["H2"], p["W2"] = p["OH1"] // 2, p["OW1"] // 2  # after pool1
    p["C2"] = 64
    p["OH2"], p["OW2"] = p["H2"] // 2, p["W2"] // 2  # after conv2
    return p


# --------------------------- weight preparation ------------------------------

def _row_select(OH, Hin, kh, pool, BT):
    """(BT*OH, BT*Hin) 0/1 matrix selecting UNPADDED input rows for tap kh.

    Input rows are the batch-stacked, unpadded activation rows (image-major).
    Output rows are ordered (h-parity, image, h//2) when pool (so the fused
    MaxPool's H direction is a max over the two contiguous row halves and the
    pooled result comes out image-major again), otherwise (image, oh).
    Rows whose selected input row falls in the zero padding are all-zero.
    """
    r = jnp.arange(BT * OH)
    if pool:
        half = OH // 2
        parity = r // (BT * half)
        rem = r % (BT * half)
        b = rem // half
        q = rem % half
        hin = 4 * q + 2 * parity + kh - 1
    else:
        b = r // OH
        oh = r % OH
        hin = 2 * oh + kh - 1
    col = b * Hin + hin
    valid = (hin >= 0) & (hin < Hin)
    cols = jnp.arange(BT * Hin)
    return ((col[:, None] == cols[None, :]) & valid[:, None]).astype(jnp.float32)


def _banded_weight(w_oihw, kh, Win, OW, pool):
    """(Win*Cin, OW*Cout) banded matrix for kernel-row tap kh (unpadded w).

    B[w*Cin+ci, col(ow,co)] = w[co, ci, kh, kw] with w = 2*ow + kw - 1
    (taps that fall in the zero padding simply contribute nothing).
    Columns are ordered (w-parity, ow//2, co) when pool (fused MaxPool W
    direction = max over the two contiguous lane halves), else (ow, co).
    """
    Cout, Cin, _, KW = w_oihw.shape
    wi = jnp.arange(Win)[:, None]
    ow = jnp.arange(OW)[None, :]
    B = jnp.zeros((Win, Cin, OW, Cout), jnp.float32)
    for kw in range(KW):
        mask = (wi == 2 * ow + kw - 1).astype(jnp.float32)        # (Win, OW)
        tap = jnp.transpose(w_oihw[:, :, kh, kw])                 # (Cin, Cout)
        B = B + mask[:, None, :, None] * tap[None, :, None, :]
    if pool:
        B = B.reshape(Win, Cin, OW // 2, 2, Cout).transpose(0, 1, 3, 2, 4)
    return B.reshape(Win * Cin, OW * Cout)


def prepare_params(params, H=64, W=64, BT=8):
    """One-time conversion of PyTorch-layout params into kernel operands.

    BT = number of images packed per grid step (sel matrices are block-diag
    over the batch tile, so their footprint grows with BT^2 — keep BT <= 8).
    """
    p = _plan(H, W)

    def conv_pack(w, b, Hin, Win, OH, OW, pool):
        Cout = w.shape[0]
        sel = jnp.stack([_row_select(OH, Hin, kh, pool, BT) for kh in range(3)])
        band = jnp.stack([_banded_weight(w, kh, Win, OW, pool) for kh in range(3)])
        bias = jnp.tile(b, OW).reshape(1, OW * Cout)
        return sel, band, bias

    sel0, B0, bias0 = conv_pack(params["w0"], params["b0"],
                                H, W, p["OH0"], p["OW0"], True)
    sel1, B1, bias1 = conv_pack(params["w1"], params["b1"],
                                p["H1"], p["W1"], p["OH1"], p["OW1"], True)
    sel2, B2, bias2 = conv_pack(params["w2"], params["b2"],
                                p["H2"], p["W2"], p["OH2"], p["OW2"], False)

    # Layer_3: per-image row-sum matrix + Linear weight tiled over ow blocks
    # with the 1/(OH2*OW2) average folded in.
    r = jnp.arange(BT)
    c = jnp.arange(BT * p["OH2"])
    avgP = (c[None, :] // p["OH2"] == r[:, None]).astype(jnp.float32)
    wfc_exp = jnp.tile(params["wfc"].T, (p["OW2"], 1)) * (1.0 / (p["OH2"] * p["OW2"]))

    return {
        "sel0": sel0, "B0": B0, "bias0": bias0,
        "sel1": sel1, "B1": B1, "bias1": bias1,
        "sel2": sel2, "B2": B2, "bias2": bias2,
        "avgP": avgP,                                   # (BT, BT*OH2)
        "wfc_exp": wfc_exp,                             # (OW2*C2, 10)
        "bfc": params["bfc"].reshape(1, -1),            # (1, 10)
    }


# ------------------------------ fused kernel ---------------------------------

def _make_kernel(p, BT):
    OH0, OW0, C0 = p["OH0"], p["OW0"], p["C0"]
    OH1, OW1, C1 = p["OH1"], p["OW1"], p["C1"]

    def conv(a, sel_ref, band_ref, bias_ref):
        """a: (BT*Hin, Win*Cin) stacked activation -> ReLU(conv) matmul result."""
        acc = bias_ref[...]
        for kh in range(3):
            rows = jnp.dot(sel_ref[kh], a, preferred_element_type=jnp.float32)
            acc = acc + jnp.dot(rows, band_ref[kh],
                                preferred_element_type=jnp.float32)
        return jnp.maximum(acc, 0.0)

    def pool2(o, half_rows, half_lanes):
        """Fused 2x2 MaxPool: rows (h-parity, image, h//2), lanes (w-parity, ...)."""
        o = jnp.maximum(o[:half_rows, :], o[half_rows:, :])
        return jnp.maximum(o[:, :half_lanes], o[:, half_lanes:])

    def kernel(x_ref, sel0_ref, b0_ref, bias0_ref,
               sel1_ref, b1_ref, bias1_ref,
               sel2_ref, b2_ref, bias2_ref,
               avg_ref, wfc_ref, bfc_ref, out_ref):
        # ---- Layer_0: Conv(1->16, s2, p1) + ReLU + MaxPool2 ----
        o0 = conv(x_ref[...], sel0_ref, b0_ref, bias0_ref)   # (BT*OH0, OW0*C0)
        a1 = pool2(o0, (BT * OH0) // 2, (OW0 // 2) * C0)     # (BT*H1, W1*C0)

        # ---- Layer_1: Conv(16->32, s2, p1) + ReLU + MaxPool2 ----
        o1 = conv(a1, sel1_ref, b1_ref, bias1_ref)           # (BT*OH1, OW1*C1)
        a2 = pool2(o1, (BT * OH1) // 2, (OW1 // 2) * C1)     # (BT*H2, W2*C1)

        # ---- Layer_2: Conv(32->64, s2, p1) + ReLU ----
        o2 = conv(a2, sel2_ref, b2_ref, bias2_ref)           # (BT*OH2, OW2*C2)

        # ---- Layer_3: AdaptiveAvgPool2d((1,1)) + Flatten + Linear(64,10) ----
        s = jnp.dot(avg_ref[...], o2,
                    preferred_element_type=jnp.float32)      # (BT, OW2*C2)
        out_ref[...] = jnp.dot(s, wfc_ref[...],
                               preferred_element_type=jnp.float32) + bfc_ref[...]

    return kernel


# -------------------------------- wrapper ------------------------------------

def split_model_forward(x_nchw, kparams):
    """Fused SplitModel forward.  x_nchw: (N, 1, H, W); kparams from prepare_params."""
    N, Cin, H, W = x_nchw.shape
    assert Cin == 1
    p = _plan(H, W)
    BT = kparams["sel0"].shape[1] // p["OH0"]        # batch tile baked into params
    assert N % BT == 0, "batch must be a multiple of the packed batch tile"
    kernel = _make_kernel(p, BT)

    # Cin == 1: NCHW -> image-stacked row slab (N*H rows, W lanes) is a reshape.
    x_flat = x_nchw.reshape(N * H, W)

    def _const_spec(arr):
        nd = arr.ndim
        return pl.BlockSpec(arr.shape, lambda n, _nd=nd: (0,) * _nd)

    weight_names = ["sel0", "B0", "bias0", "sel1", "B1", "bias1",
                    "sel2", "B2", "bias2", "avgP", "wfc_exp", "bfc"]
    weights = [kparams[k] for k in weight_names]

    out = pl.pallas_call(
        kernel,
        out_shape=jax.ShapeDtypeStruct((N, 10), jnp.float32),
        grid=(N // BT,),
        in_specs=[pl.BlockSpec((BT * H, W), lambda n: (n, 0))]
                 + [_const_spec(w) for w in weights],
        out_specs=pl.BlockSpec((BT, 10), lambda n: (n, 0)),
        compiler_params=pltpu.CompilerParams(
            dimension_semantics=("parallel",)),
    )(x_flat, *weights)
    return out


# --------------------------- params / reference ------------------------------

def init_params(key):
    ks = jax.random.split(key, 8)

    def u(k, shape, fan_in):
        bound = 1.0 / jnp.sqrt(jnp.float32(fan_in))
        return jax.random.uniform(k, shape, jnp.float32, -bound, bound)

    return {
        "w0": u(ks[0], (16, 1, 3, 3), 1 * 9),   "b0": u(ks[1], (16,), 1 * 9),
        "w1": u(ks[2], (32, 16, 3, 3), 16 * 9), "b1": u(ks[3], (32,), 16 * 9),
        "w2": u(ks[4], (64, 32, 3, 3), 32 * 9), "b2": u(ks[5], (64,), 32 * 9),
        "wfc": u(ks[6], (10, 64), 64),          "bfc": u(ks[7], (10,), 64),
    }


def reference_forward(x_nchw, params):
    def conv(x, w, b):
        y = lax.conv_general_dilated(
            x, w, window_strides=(2, 2), padding=((1, 1), (1, 1)),
            dimension_numbers=("NCHW", "OIHW", "NCHW"))
        return jax.nn.relu(y + b[None, :, None, None])

    def maxpool(x):
        return lax.reduce_window(x, -jnp.inf, lax.max,
                                 (1, 1, 2, 2), (1, 1, 2, 2), "VALID")

    x = maxpool(conv(x_nchw, params["w0"], params["b0"]))
    x = maxpool(conv(x, params["w1"], params["b1"]))
    x = conv(x, params["w2"], params["b2"])
    x = jnp.mean(x, axis=(2, 3))
    return x @ params["wfc"].T + params["bfc"]


if __name__ == "__main__":
    key = jax.random.PRNGKey(0)
    kx, kp = jax.random.split(key)
    params = init_params(kp)

    # Input: NCHW, batch=2, 1 channel, 64x64 spatial (Layer_2 output is 2x2 so
    # the adaptive average pool is non-trivial).
    N, H, W = 2, 64, 64
    x = jax.random.normal(kx, (N, 1, H, W), jnp.float32)

    BT = N if N < 8 else 8                          # images per grid step
    assert N % BT == 0
    kparams = prepare_params(params, H=H, W=W, BT=BT)   # one-time weight packing

    fwd = jax.jit(split_model_forward)
    out = jax.block_until_ready(fwd(x, kparams))

    ref = reference_forward(x, params)
    assert out.shape == (N, 10)
    err = float(jnp.max(jnp.abs(out - ref)))
    assert jnp.allclose(out, ref, rtol=2e-4, atol=2e-4), err
    print("KERNEL_OK")
</pallas_src>

<mosaic_0001>
module attributes {stable_mosaic.version = 11 : i64} {
  func.func @kernel(%arg0: i32, %arg1: memref<128x64xf32, #tpu.memory_space<vmem>>, %arg2: memref<3x64x128xf32, #tpu.memory_space<vmem>>, %arg3: memref<3x64x512xf32, #tpu.memory_space<vmem>>, %arg4: memref<1x512xf32, #tpu.memory_space<vmem>>, %arg5: memref<3x16x32xf32, #tpu.memory_space<vmem>>, %arg6: memref<3x256x256xf32, #tpu.memory_space<vmem>>, %arg7: memref<1x256xf32, #tpu.memory_space<vmem>>, %arg8: memref<3x4x8xf32, #tpu.memory_space<vmem>>, %arg9: memref<3x128x128xf32, #tpu.memory_space<vmem>>, %arg10: memref<1x128xf32, #tpu.memory_space<vmem>>, %arg11: memref<2x4xf32, #tpu.memory_space<vmem>>, %arg12: memref<128x10xf32, #tpu.memory_space<vmem>>, %arg13: memref<1x10xf32, #tpu.memory_space<vmem>>, %arg14: memref<2x10xf32, #tpu.memory_space<vmem>>) attributes {dimension_semantics = [#tpu.dimension_semantics<parallel>], iteration_bounds = array<i64: 1>, scalar_prefetch = 0 : i64, scratch_operands = 0 : i64, tpu.core_type = #tpu.core_type<tc>, window_params = [{transform_indices = @transform_0, window_bounds = array<i64: 128, 64>}, {pipeline_mode = #tpu.pipeline_mode<synchronous>, transform_indices = @transform_1, window_bounds = array<i64: 3, 64, 128>}, {pipeline_mode = #tpu.pipeline_mode<synchronous>, transform_indices = @transform_2, window_bounds = array<i64: 3, 64, 512>}, {pipeline_mode = #tpu.pipeline_mode<synchronous>, transform_indices = @transform_3, window_bounds = array<i64: 1, 512>}, {pipeline_mode = #tpu.pipeline_mode<synchronous>, transform_indices = @transform_4, window_bounds = array<i64: 3, 16, 32>}, {pipeline_mode = #tpu.pipeline_mode<synchronous>, transform_indices = @transform_5, window_bounds = array<i64: 3, 256, 256>}, {pipeline_mode = #tpu.pipeline_mode<synchronous>, transform_indices = @transform_6, window_bounds = array<i64: 1, 256>}, {pipeline_mode = #tpu.pipeline_mode<synchronous>, transform_indices = @transform_7, window_bounds = array<i64: 3, 4, 8>}, {pipeline_mode = #tpu.pipeline_mode<synchronous>, transform_indices = @transform_8, window_bounds = array<i64: 3, 128, 128>}, {pipeline_mode = #tpu.pipeline_mode<synchronous>, transform_indices = @transform_9, window_bounds = array<i64: 1, 128>}, {pipeline_mode = #tpu.pipeline_mode<synchronous>, transform_indices = @transform_10, window_bounds = array<i64: 2, 4>}, {pipeline_mode = #tpu.pipeline_mode<synchronous>, transform_indices = @transform_11, window_bounds = array<i64: 128, 10>}, {pipeline_mode = #tpu.pipeline_mode<synchronous>, transform_indices = @transform_12, window_bounds = array<i64: 1, 10>}, {transform_indices = @transform_13, window_bounds = array<i64: 2, 10>}]} {
    %c0 = arith.constant 0 : index
    %c0_0 = arith.constant 0 : index
    %0 = vector.load %arg1[%c0, %c0_0] : memref<128x64xf32, #tpu.memory_space<vmem>>, vector<128x64xf32>
    %c0_1 = arith.constant 0 : index
    %c0_2 = arith.constant 0 : index
    %1 = vector.load %arg4[%c0_1, %c0_2] : memref<1x512xf32, #tpu.memory_space<vmem>>, vector<1x512xf32>
    %c0_3 = arith.constant 0 : index
    %c0_4 = arith.constant 0 : index
    %c0_5 = arith.constant 0 : index
    %2 = vector.load %arg2[%c0_3, %c0_4, %c0_5] : memref<3x64x128xf32, #tpu.memory_space<vmem>>, vector<1x64x128xf32>
    %3 = vector.shape_cast %2 : vector<1x64x128xf32> to vector<64x128xf32>
    %cst = arith.constant dense<0.000000e+00> : vector<64x64xf32>
    %4 = tpu.matmul %3, %0, %cst {dimension_numbers = #tpu.dot_dimension_numbers<[1], [0], [0], [1], [0, 0, 1, 1], [], []>} : vector<64x128xf32>, vector<128x64xf32>, vector<64x64xf32> -> vector<64x64xf32>
    %c0_6 = arith.constant 0 : index
    %c0_7 = arith.constant 0 : index
    %c0_8 = arith.constant 0 : index
    %5 = vector.load %arg3[%c0_6, %c0_7, %c0_8] : memref<3x64x512xf32, #tpu.memory_space<vmem>>, vector<1x64x512xf32>
    %6 = vector.shape_cast %5 : vector<1x64x512xf32> to vector<64x512xf32>
    %cst_9 = arith.constant dense<0.000000e+00> : vector<64x512xf32>
    %7 = tpu.matmul %4, %6, %cst_9 {dimension_numbers = #tpu.dot_dimension_numbers<[1], [0], [0], [1], [0, 0, 1, 1], [], []>} : vector<64x64xf32>, vector<64x512xf32>, vector<64x512xf32> -> vector<64x512xf32>
    %8 = vector.broadcast %1 : vector<1x512xf32> to vector<64x512xf32>
    %9 = arith.addf %8, %7 : vector<64x512xf32>
    %c1 = arith.constant 1 : index
    %c0_10 = arith.constant 0 : index
    %c0_11 = arith.constant 0 : index
    %10 = vector.load %arg2[%c1, %c0_10, %c0_11] : memref<3x64x128xf32, #tpu.memory_space<vmem>>, vector<1x64x128xf32>
    %11 = vector.shape_cast %10 : vector<1x64x128xf32> to vector<64x128xf32>
    %cst_12 = arith.constant dense<0.000000e+00> : vector<64x64xf32>
    %12 = tpu.matmul %11, %0, %cst_12 {dimension_numbers = #tpu.dot_dimension_numbers<[1], [0], [0], [1], [0, 0, 1, 1], [], []>} : vector<64x128xf32>, vector<128x64xf32>, vector<64x64xf32> -> vector<64x64xf32>
    %c1_13 = arith.constant 1 : index
    %c0_14 = arith.constant 0 : index
    %c0_15 = arith.constant 0 : index
    %13 = vector.load %arg3[%c1_13, %c0_14, %c0_15] : memref<3x64x512xf32, #tpu.memory_space<vmem>>, vector<1x64x512xf32>
    %14 = vector.shape_cast %13 : vector<1x64x512xf32> to vector<64x512xf32>
    %cst_16 = arith.constant dense<0.000000e+00> : vector<64x512xf32>
    %15 = tpu.matmul %12, %14, %cst_16 {dimension_numbers = #tpu.dot_dimension_numbers<[1], [0], [0], [1], [0, 0, 1, 1], [], []>} : vector<64x64xf32>, vector<64x512xf32>, vector<64x512xf32> -> vector<64x512xf32>
    %16 = arith.addf %9, %15 : vector<64x512xf32>
    %c2 = arith.constant 2 : index
    %c0_17 = arith.constant 0 : index
    %c0_18 = arith.constant 0 : index
    %17 = vector.load %arg2[%c2, %c0_17, %c0_18] : memref<3x64x128xf32, #tpu.memory_space<vmem>>, vector<1x64x128xf32>
    %18 = vector.shape_cast %17 : vector<1x64x128xf32> to vector<64x128xf32>
    %cst_19 = arith.constant dense<0.000000e+00> : vector<64x64xf32>
    %19 = tpu.matmul %18, %0, %cst_19 {dimension_numbers = #tpu.dot_dimension_numbers<[1], [0], [0], [1], [0, 0, 1, 1], [], []>} : vector<64x128xf32>, vector<128x64xf32>, vector<64x64xf32> -> vector<64x64xf32>
    %c2_20 = arith.constant 2 : index
    %c0_21 = arith.constant 0 : index
    %c0_22 = arith.constant 0 : index
    %20 = vector.load %arg3[%c2_20, %c0_21, %c0_22] : memref<3x64x512xf32, #tpu.memory_space<vmem>>, vector<1x64x512xf32>
    %21 = vector.shape_cast %20 : vector<1x64x512xf32> to vector<64x512xf32>
    %cst_23 = arith.constant dense<0.000000e+00> : vector<64x512xf32>
    %22 = tpu.matmul %19, %21, %cst_23 {dimension_numbers = #tpu.dot_dimension_numbers<[1], [0], [0], [1], [0, 0, 1, 1], [], []>} : vector<64x64xf32>, vector<64x512xf32>, vector<64x512xf32> -> vector<64x512xf32>
    %23 = arith.addf %16, %22 : vector<64x512xf32>
    %cst_24 = arith.constant 0.000000e+00 : f32
    %24 = vector.broadcast %cst_24 : f32 to vector<64x512xf32>
    %25 = arith.maximumf %23, %24 : vector<64x512xf32>
    %26 = vector.extract_strided_slice %25 {offsets = [0, 0], sizes = [32, 512], strides = [1, 1]} : vector<64x512xf32> to vector<32x512xf32>
    %27 = vector.extract_strided_slice %25 {offsets = [32, 0], sizes = [32, 512], strides = [1, 1]} : vector<64x512xf32> to vector<32x512xf32>
    %28 = arith.maximumf %26, %27 : vector<32x512xf32>
    %29 = vector.extract_strided_slice %28 {offsets = [0, 0], sizes = [32, 256], strides = [1, 1]} : vector<32x512xf32> to vector<32x256xf32>
    %30 = vector.extract_strided_slice %28 {offsets = [0, 256], sizes = [32, 256], strides = [1, 1]} : vector<32x512xf32> to vector<32x256xf32>
    %31 = arith.maximumf %29, %30 : vector<32x256xf32>
    %c0_25 = arith.constant 0 : index
    %c0_26 = arith.constant 0 : index
    %32 = vector.load %arg7[%c0_25, %c0_26] : memref<1x256xf32, #tpu.memory_space<vmem>>, vector<1x256xf32>
    %c0_27 = arith.constant 0 : index
    %c0_28 = arith.constant 0 : index
    %c0_29 = arith.constant 0 : index
    %33 = vector.load %arg5[%c0_27, %c0_28, %c0_29] : memref<3x16x32xf32, #tpu.memory_space<vmem>>, vector<1x16x32xf32>
    %34 = vector.shape_cast %33 : vector<1x16x32xf32> to vector<16x32xf32>
    %cst_30 = arith.constant dense<0.000000e+00> : vector<16x256xf32>
    %35 = tpu.matmul %34, %31, %cst_30 {dimension_numbers = #tpu.dot_dimension_numbers<[1], [0], [0], [1], [0, 0, 1, 1], [], []>} : vector<16x32xf32>, vector<32x256xf32>, vector<16x256xf32> -> vector<16x256xf32>
    %c0_31 = arith.constant 0 : index
    %c0_32 = arith.constant 0 : index
    %c0_33 = arith.constant 0 : index
    %36 = vector.load %arg6[%c0_31, %c0_32, %c0_33] : memref<3x256x256xf32, #tpu.memory_space<vmem>>, vector<1x256x256xf32>
    %37 = vector.shape_cast %36 : vector<1x256x256xf32> to vector<256x256xf32>
    %cst_34 = arith.constant dense<0.000000e+00> : vector<16x256xf32>
    %38 = tpu.matmul %35, %37, %cst_34 {dimension_numbers = #tpu.dot_dimension_numbers<[1], [0], [0], [1], [0, 0, 1, 1], [], []>} : vector<16x256xf32>, vector<256x256xf32>, vector<16x256xf32> -> vector<16x256xf32>
    %39 = vector.broadcast %32 : vector<1x256xf32> to vector<16x256xf32>
    %40 = arith.addf %39, %38 : vector<16x256xf32>
    %c1_35 = arith.constant 1 : index
    %c0_36 = arith.constant 0 : index
    %c0_37 = arith.constant 0 : index
    %41 = vector.load %arg5[%c1_35, %c0_36, %c0_37] : memref<3x16x32xf32, #tpu.memory_space<vmem>>, vector<1x16x32xf32>
    %42 = vector.shape_cast %41 : vector<1x16x32xf32> to vector<16x32xf32>
    %cst_38 = arith.constant dense<0.000000e+00> : vector<16x256xf32>
    %43 = tpu.matmul %42, %31, %cst_38 {dimension_numbers = #tpu.dot_dimension_numbers<[1], [0], [0], [1], [0, 0, 1, 1], [], []>} : vector<16x32xf32>, vector<32x256xf32>, vector<16x256xf32> -> vector<16x256xf32>
    %c1_39 = arith.constant 1 : index
    %c0_40 = arith.constant 0 : index
    %c0_41 = arith.constant 0 : index
    %44 = vector.load %arg6[%c1_39, %c0_40, %c0_41] : memref<3x256x256xf32, #tpu.memory_space<vmem>>, vector<1x256x256xf32>
    %45 = vector.shape_cast %44 : vector<1x256x256xf32> to vector<256x256xf32>
    %cst_42 = arith.constant dense<0.000000e+00> : vector<16x256xf32>
    %46 = tpu.matmul %43, %45, %cst_42 {dimension_numbers = #tpu.dot_dimension_numbers<[1], [0], [0], [1], [0, 0, 1, 1], [], []>} : vector<16x256xf32>, vector<256x256xf32>, vector<16x256xf32> -> vector<16x256xf32>
    %47 = arith.addf %40, %46 : vector<16x256xf32>
    %c2_43 = arith.constant 2 : index
    %c0_44 = arith.constant 0 : index
    %c0_45 = arith.constant 0 : index
    %48 = vector.load %arg5[%c2_43, %c0_44, %c0_45] : memref<3x16x32xf32, #tpu.memory_space<vmem>>, vector<1x16x32xf32>
    %49 = vector.shape_cast %48 : vector<1x16x32xf32> to vector<16x32xf32>
    %cst_46 = arith.constant dense<0.000000e+00> : vector<16x256xf32>
    %50 = tpu.matmul %49, %31, %cst_46 {dimension_numbers = #tpu.dot_dimension_numbers<[1], [0], [0], [1], [0, 0, 1, 1], [], []>} : vector<16x32xf32>, vector<32x256xf32>, vector<16x256xf32> -> vector<16x256xf32>
    %c2_47 = arith.constant 2 : index
    %c0_48 = arith.constant 0 : index
    %c0_49 = arith.constant 0 : index
    %51 = vector.load %arg6[%c2_47, %c0_48, %c0_49] : memref<3x256x256xf32, #tpu.memory_space<vmem>>, vector<1x256x256xf32>
    %52 = vector.shape_cast %51 : vector<1x256x256xf32> to vector<256x256xf32>
    %cst_50 = arith.constant dense<0.000000e+00> : vector<16x256xf32>
    %53 = tpu.matmul %50, %52, %cst_50 {dimension_numbers = #tpu.dot_dimension_numbers<[1], [0], [0], [1], [0, 0, 1, 1], [], []>} : vector<16x256xf32>, vector<256x256xf32>, vector<16x256xf32> -> vector<16x256xf32>
    %54 = arith.addf %47, %53 : vector<16x256xf32>
    %cst_51 = arith.constant 0.000000e+00 : f32
    %55 = vector.broadcast %cst_51 : f32 to vector<16x256xf32>
    %56 = arith.maximumf %54, %55 : vector<16x256xf32>
    %57 = vector.extract_strided_slice %56 {offsets = [0, 0], sizes = [8, 256], strides = [1, 1]} : vector<16x256xf32> to vector<8x256xf32>
    %58 = vector.extract_strided_slice %56 {offsets = [8, 0], sizes = [8, 256], strides = [1, 1]} : vector<16x256xf32> to vector<8x256xf32>
    %59 = arith.maximumf %57, %58 : vector<8x256xf32>
    %60 = vector.extract_strided_slice %59 {offsets = [0, 0], sizes = [8, 128], strides = [1, 1]} : vector<8x256xf32> to vector<8x128xf32>
    %61 = vector.extract_strided_slice %59 {offsets = [0, 128], sizes = [8, 128], strides = [1, 1]} : vector<8x256xf32> to vector<8x128xf32>
    %62 = arith.maximumf %60, %61 : vector<8x128xf32>
    %c0_52 = arith.constant 0 : index
    %c0_53 = arith.constant 0 : index
    %63 = vector.load %arg10[%c0_52, %c0_53] : memref<1x128xf32, #tpu.memory_space<vmem>>, vector<1x128xf32>
    %c0_54 = arith.constant 0 : index
    %c0_55 = arith.constant 0 : index
    %c0_56 = arith.constant 0 : index
    %64 = vector.load %arg8[%c0_54, %c0_55, %c0_56] : memref<3x4x8xf32, #tpu.memory_space<vmem>>, vector<1x4x8xf32>
    %65 = vector.shape_cast %64 : vector<1x4x8xf32> to vector<4x8xf32>
    %cst_57 = arith.constant dense<0.000000e+00> : vector<4x128xf32>
    %66 = tpu.matmul %65, %62, %cst_57 {dimension_numbers = #tpu.dot_dimension_numbers<[1], [0], [0], [1], [0, 0, 1, 1], [], []>} : vector<4x8xf32>, vector<8x128xf32>, vector<4x128xf32> -> vector<4x128xf32>
    %c0_58 = arith.constant 0 : index
    %c0_59 = arith.constant 0 : index
    %c0_60 = arith.constant 0 : index
    %67 = vector.load %arg9[%c0_58, %c0_59, %c0_60] : memref<3x128x128xf32, #tpu.memory_space<vmem>>, vector<1x128x128xf32>
    %68 = vector.shape_cast %67 : vector<1x128x128xf32> to vector<128x128xf32>
    %cst_61 = arith.constant dense<0.000000e+00> : vector<4x128xf32>
    %69 = tpu.matmul %66, %68, %cst_61 {dimension_numbers = #tpu.dot_dimension_numbers<[1], [0], [0], [1], [0, 0, 1, 1], [], []>} : vector<4x128xf32>, vector<128x128xf32>, vector<4x128xf32> -> vector<4x128xf32>
    %70 = vector.broadcast %63 : vector<1x128xf32> to vector<4x128xf32>
    %71 = arith.addf %70, %69 : vector<4x128xf32>
    %c1_62 = arith.constant 1 : index
    %c0_63 = arith.constant 0 : index
    %c0_64 = arith.constant 0 : index
    %72 = vector.load %arg8[%c1_62, %c0_63, %c0_64] : memref<3x4x8xf32, #tpu.memory_space<vmem>>, vector<1x4x8xf32>
    %73 = vector.shape_cast %72 : vector<1x4x8xf32> to vector<4x8xf32>
    %cst_65 = arith.constant dense<0.000000e+00> : vector<4x128xf32>
    %74 = tpu.matmul %73, %62, %cst_65 {dimension_numbers = #tpu.dot_dimension_numbers<[1], [0], [0], [1], [0, 0, 1, 1], [], []>} : vector<4x8xf32>, vector<8x128xf32>, vector<4x128xf32> -> vector<4x128xf32>
    %c1_66 = arith.constant 1 : index
    %c0_67 = arith.constant 0 : index
    %c0_68 = arith.constant 0 : index
    %75 = vector.load %arg9[%c1_66, %c0_67, %c0_68] : memref<3x128x128xf32, #tpu.memory_space<vmem>>, vector<1x128x128xf32>
    %76 = vector.shape_cast %75 : vector<1x128x128xf32> to vector<128x128xf32>
    %cst_69 = arith.constant dense<0.000000e+00> : vector<4x128xf32>
    %77 = tpu.matmul %74, %76, %cst_69 {dimension_numbers = #tpu.dot_dimension_numbers<[1], [0], [0], [1], [0, 0, 1, 1], [], []>} : vector<4x128xf32>, vector<128x128xf32>, vector<4x128xf32> -> vector<4x128xf32>
    %78 = arith.addf %71, %77 : vector<4x128xf32>
    %c2_70 = arith.constant 2 : index
    %c0_71 = arith.constant 0 : index
    %c0_72 = arith.constant 0 : index
    %79 = vector.load %arg8[%c2_70, %c0_71, %c0_72] : memref<3x4x8xf32, #tpu.memory_space<vmem>>, vector<1x4x8xf32>
    %80 = vector.shape_cast %79 : vector<1x4x8xf32> to vector<4x8xf32>
    %cst_73 = arith.constant dense<0.000000e+00> : vector<4x128xf32>
    %81 = tpu.matmul %80, %62, %cst_73 {dimension_numbers = #tpu.dot_dimension_numbers<[1], [0], [0], [1], [0, 0, 1, 1], [], []>} : vector<4x8xf32>, vector<8x128xf32>, vector<4x128xf32> -> vector<4x128xf32>
    %c2_74 = arith.constant 2 : index
    %c0_75 = arith.constant 0 : index
    %c0_76 = arith.constant 0 : index
    %82 = vector.load %arg9[%c2_74, %c0_75, %c0_76] : memref<3x128x128xf32, #tpu.memory_space<vmem>>, vector<1x128x128xf32>
    %83 = vector.shape_cast %82 : vector<1x128x128xf32> to vector<128x128xf32>
    %cst_77 = arith.constant dense<0.000000e+00> : vector<4x128xf32>
    %84 = tpu.matmul %81, %83, %cst_77 {dimension_numbers = #tpu.dot_dimension_numbers<[1], [0], [0], [1], [0, 0, 1, 1], [], []>} : vector<4x128xf32>, vector<128x128xf32>, vector<4x128xf32> -> vector<4x128xf32>
    %85 = arith.addf %78, %84 : vector<4x128xf32>
    %cst_78 = arith.constant 0.000000e+00 : f32
    %86 = vector.broadcast %cst_78 : f32 to vector<4x128xf32>
    %87 = arith.maximumf %85, %86 : vector<4x128xf32>
    %c0_79 = arith.constant 0 : index
    %c0_80 = arith.constant 0 : index
    %88 = vector.load %arg11[%c0_79, %c0_80] : memref<2x4xf32, #tpu.memory_space<vmem>>, vector<2x4xf32>
    %cst_81 = arith.constant dense<0.000000e+00> : vector<2x128xf32>
    %89 = tpu.matmul %88, %87, %cst_81 {dimension_numbers = #tpu.dot_dimension_numbers<[1], [0], [0], [1], [0, 0, 1, 1], [], []>} : vector<2x4xf32>, vector<4x128xf32>, vector<2x128xf32> -> vector<2x128xf32>
    %c0_82 = arith.constant 0 : index
    %c0_83 = arith.constant 0 : index
    %90 = vector.load %arg12[%c0_82, %c0_83] : memref<128x10xf32, #tpu.memory_space<vmem>>, vector<128x10xf32>
    %cst_84 = arith.constant dense<0.000000e+00> : vector<2x10xf32>
    %91 = tpu.matmul %89, %90, %cst_84 {dimension_numbers = #tpu.dot_dimension_numbers<[1], [0], [0], [1], [0, 0, 1, 1], [], []>} : vector<2x128xf32>, vector<128x10xf32>, vector<2x10xf32> -> vector<2x10xf32>
    %c0_85 = arith.constant 0 : index
    %c0_86 = arith.constant 0 : index
    %92 = vector.load %arg13[%c0_85, %c0_86] : memref<1x10xf32, #tpu.memory_space<vmem>>, vector<1x10xf32>
    %93 = vector.broadcast %92 : vector<1x10xf32> to vector<2x10xf32>
    %94 = arith.addf %91, %93 : vector<2x10xf32>
    %c0_87 = arith.constant 0 : index
    %c0_88 = arith.constant 0 : index
    %95 = vector.load %arg14[%c0_87, %c0_88] : memref<2x10xf32, #tpu.memory_space<vmem>>, vector<2x10xf32>
    tpu.vector_store %arg14[%c0_87, %c0_88], %94 {strides = array<i32>} : memref<2x10xf32, #tpu.memory_space<vmem>>, vector<2x10xf32>,
    return
  }
  func.func @transform_0(%arg0: i32) -> (i32, i32) {
    %c0_i32 = arith.constant 0 : i32
    %c0_i32_0 = arith.constant 0 : i32
    return %arg0, %c0_i32 : i32, i32
  }
  func.func @transform_1(%arg0: i32) -> (i32, i32, i32) {
    %c0_i32 = arith.constant 0 : i32
    %c0_i32_0 = arith.constant 0 : i32
    %c0_i32_1 = arith.constant 0 : i32
    %c0_i32_2 = arith.constant 0 : i32
    return %c0_i32, %c0_i32_0, %c0_i32_1 : i32, i32, i32
  }
  func.func @transform_2(%arg0: i32) -> (i32, i32, i32) {
    %c0_i32 = arith.constant 0 : i32
    %c0_i32_0 = arith.constant 0 : i32
    %c0_i32_1 = arith.constant 0 : i32
    %c0_i32_2 = arith.constant 0 : i32
    return %c0_i32, %c0_i32_0, %c0_i32_1 : i32, i32, i32
  }
  func.func @transform_3(%arg0: i32) -> (i32, i32) {
    %c0_i32 = arith.constant 0 : i32
    %c0_i32_0 = arith.constant 0 : i32
    %c0_i32_1 = arith.constant 0 : i32
    return %c0_i32, %c0_i32_0 : i32, i32
  }
  func.func @transform_4(%arg0: i32) -> (i32, i32, i32) {
    %c0_i32 = arith.constant 0 : i32
    %c0_i32_0 = arith.constant 0 : i32
    %c0_i32_1 = arith.constant 0 : i32
    %c0_i32_2 = arith.constant 0 : i32
    return %c0_i32, %c0_i32_0, %c0_i32_1 : i32, i32, i32
  }
  func.func @transform_5(%arg0: i32) -> (i32, i32, i32) {
    %c0_i32 = arith.constant 0 : i32
    %c0_i32_0 = arith.constant 0 : i32
    %c0_i32_1 = arith.constant 0 : i32
    %c0_i32_2 = arith.constant 0 : i32
    return %c0_i32, %c0_i32_0, %c0_i32_1 : i32, i32, i32
  }
  func.func @transform_6(%arg0: i32) -> (i32, i32) {
    %c0_i32 = arith.constant 0 : i32
    %c0_i32_0 = arith.constant 0 : i32
    %c0_i32_1 = arith.constant 0 : i32
    return %c0_i32, %c0_i32_0 : i32, i32
  }
  func.func @transform_7(%arg0: i32) -> (i32, i32, i32) {
    %c0_i32 = arith.constant 0 : i32
    %c0_i32_0 = arith.constant 0 : i32
    %c0_i32_1 = arith.constant 0 : i32
    %c0_i32_2 = arith.constant 0 : i32
    return %c0_i32, %c0_i32_0, %c0_i32_1 : i32, i32, i32
  }
  func.func @transform_8(%arg0: i32) -> (i32, i32, i32) {
    %c0_i32 = arith.constant 0 : i32
    %c0_i32_0 = arith.constant 0 : i32
    %c0_i32_1 = arith.constant 0 : i32
    %c0_i32_2 = arith.constant 0 : i32
    return %c0_i32, %c0_i32_0, %c0_i32_1 : i32, i32, i32
  }
  func.func @transform_9(%arg0: i32) -> (i32, i32) {
    %c0_i32 = arith.constant 0 : i32
    %c0_i32_0 = arith.constant 0 : i32
    %c0_i32_1 = arith.constant 0 : i32
    return %c0_i32, %c0_i32_0 : i32, i32
  }
  func.func @transform_10(%arg0: i32) -> (i32, i32) {
    %c0_i32 = arith.constant 0 : i32
    %c0_i32_0 = arith.constant 0 : i32
    %c0_i32_1 = arith.constant 0 : i32
    return %c0_i32, %c0_i32_0 : i32, i32
  }
  func.func @transform_11(%arg0: i32) -> (i32, i32) {
    %c0_i32 = arith.constant 0 : i32
    %c0_i32_0 = arith.constant 0 : i32
    %c0_i32_1 = arith.constant 0 : i32
    return %c0_i32, %c0_i32_0 : i32, i32
  }
  func.func @transform_12(%arg0: i32) -> (i32, i32) {
    %c0_i32 = arith.constant 0 : i32
    %c0_i32_0 = arith.constant 0 : i32
    %c0_i32_1 = arith.constant 0 : i32
    return %c0_i32, %c0_i32_0 : i32, i32
  }
  func.func @transform_13(%arg0: i32) -> (i32, i32) {
    %c0_i32 = arith.constant 0 : i32
    %c0_i32_0 = arith.constant 0 : i32
    return %arg0, %c0_i32 : i32, i32
  }
}

</mosaic_0001>

<llo_original>
// kernel: split_model_forward.1
$region0: #{split_model_forward.1}
  #allocation0 [shape = 'u32[]', space=smem, size = 0x4, offset = 0x4, fixed_abs, tag = 'smem constant byte address 0x4 - core index']
  #allocation1 [shape = 'u32[144,128]{1,0:T(1,128)}', space=vmem, size = 0x12000, scoped, tag = 'internal scratch']
  %s0 = inlined_call_operand.vmem [shape: f32[128,64], index: 0, kind: input, shape index: {}]
  %s1 = inlined_call_operand.hbm [shape: f32[3,64,128], index: 1, kind: input, shape index: {}]
  %s2 = inlined_call_operand.hbm [shape: f32[3,64,512], index: 2, kind: input, shape index: {}]
  %s3 = inlined_call_operand.vmem [shape: f32[1,512], index: 3, kind: input, shape index: {}]
  %s4 = inlined_call_operand.hbm [shape: f32[3,16,32], index: 4, kind: input, shape index: {}]
  %s5 = inlined_call_operand.hbm [shape: f32[3,256,256], index: 5, kind: input, shape index: {}]
  %s6 = inlined_call_operand.vmem [shape: f32[1,256], index: 6, kind: input, shape index: {}]
  %s7 = inlined_call_operand.vmem [shape: f32[3,4,8], index: 7, kind: input, shape index: {}]
  %s8 = inlined_call_operand.hbm [shape: f32[3,128,128], index: 8, kind: input, shape index: {}]
  %s9 = inlined_call_operand.vmem [shape: f32[1,128], index: 9, kind: input, shape index: {}]
  %s10 = inlined_call_operand.vmem [shape: f32[2,4], index: 10, kind: input, shape index: {}]
  %s11 = inlined_call_operand.vmem [shape: f32[128,10], index: 11, kind: input, shape index: {}]
  %s12 = inlined_call_operand.vmem [shape: f32[1,10], index: 12, kind: input, shape index: {}]
  %s13 = inlined_call_operand.hbm [shape: f32[2,10], index: 13, kind: output, shape index: {}]
  %s14 = sld [smem:[#allocation0]]
  $region82: #{split_model_forward.1} parent=0
    _
  %s16 = ssub.s32 1, %s14
  %s17 = scalar_select 0, %s16, %s14
  $region1: #{split_model_forward.1} parent=0
    #allocation2 [shape = 'u8[98304]{0}', space=vmem, size = 0x18000, scoped, tag = 'input window, operand 1, single buffered']
    #allocation3 [shape = 's32[1]{0}', space=sflag, size = 0x4, scoped, tag = 'scoped memory for split_model_forward.1']
    #allocation4 [shape = 's32[1]{0}', space=sflag, size = 0x4, scoped, tag = 'scoped memory for split_model_forward.1']
    #allocation5 [shape = 'u8[393216]{0}', space=vmem, size = 0x60000, scoped, tag = 'input window, operand 2, single buffered']
    #allocation6 [shape = 's32[1]{0}', space=sflag, size = 0x4, scoped, tag = 'scoped memory for split_model_forward.1']
    #allocation7 [shape = 'u8[24576]{0}', space=vmem, size = 0x6000, scoped, tag = 'input window, operand 4, single buffered']
    #allocation8 [shape = 'u8[786432]{0}', space=vmem, size = 0xc0000, scoped, tag = 'input window, operand 5, single buffered']
    #allocation9 [shape = 's32[1]{0}', space=sflag, size = 0x4, scoped, tag = 'scoped memory for split_model_forward.1']
    #allocation10 [shape = 'u8[196608]{0}', space=vmem, size = 0x30000, scoped, tag = 'input window, operand 8, single buffered']
    #allocation11 [shape = 'u8[1024]{0}', space=vmem, size = 0x400, scoped, tag = 'output window, operand 0, single buffered']
    %18 = vsyncpa [#allocation3], 0
    %19 = vsyncpa [#allocation6], 0
    %20 = vsyncpa [#allocation9], 0
    %21 = vsyncpa [#allocation4], 0
    // Predicated region
    $region2: #{split_model_forward.1} parent=1 // pred_check
      _
    $region3: #{split_model_forward.1} parent=1 // pred_check_branch
      %23 = sbr.rel (0) target = $region5
    $region4: #{split_model_forward.1} parent=1 // pred_region
      _
    $region5: #{split_model_forward.1} parent=1 // pred_fallthru
      _
    // Predicated region
    $region6: #{split_model_forward.1} parent=1 // pred_check
      _
    $region7: #{split_model_forward.1} parent=1 // pred_check_branch
      %25 = sbr.rel (0) target = $region9
    $region8: #{split_model_forward.1} parent=1 // pred_region
      %s27 = ssub.s32 3072, 3072
      %28 = vsyncadd [#allocation3], %s27
      %s29 = sshll.u32 [#allocation2], 4
      %s30 = int_to_ptr.vmem [resolvable:$true] %s29
      %35 = dma.hbm_to_vmem [thread:$0]  %s1, 3072, %s30, [#allocation3], 128, 128, 8
    $region9: #{split_model_forward.1} parent=1 // pred_fallthru
      _
    // Predicated region
    $region10: #{split_model_forward.1} parent=1 // pred_check
      _
    $region11: #{split_model_forward.1} parent=1 // pred_check_branch
      %37 = sbr.rel (0) target = $region13
    $region12: #{split_model_forward.1} parent=1 // pred_region
      %s39 = ssub.s32 12288, 12288
      %40 = vsyncadd [#allocation6], %s39
      %s41 = sshll.u32 [#allocation5], 4
      %s42 = int_to_ptr.vmem [resolvable:$true] %s41
      %47 = dma.hbm_to_vmem [thread:$0]  %s2, 12288, %s42, [#allocation6], 512, 512, 32
    $region13: #{split_model_forward.1} parent=1 // pred_fallthru
      _
    // Predicated region
    $region14: #{split_model_forward.1} parent=1 // pred_check
      _
    $region15: #{split_model_forward.1} parent=1 // pred_check_branch
      %49 = sbr.rel (0) target = $region17
    $region16: #{split_model_forward.1} parent=1 // pred_region
      _
    $region17: #{split_model_forward.1} parent=1 // pred_fallthru
      _
    // Predicated region
    $region18: #{split_model_forward.1} parent=1 // pred_check
      _
    $region19: #{split_model_forward.1} parent=1 // pred_check_branch
      %51 = sbr.rel (0) target = $region21
    $region20: #{split_model_forward.1} parent=1 // pred_region
      %s53 = ssub.s32 768, 768
      %54 = vsyncadd [#allocation6], %s53
      %s55 = sshll.u32 [#allocation7], 4
      %s56 = int_to_ptr.vmem [resolvable:$true] %s55
      %61 = dma.hbm_to_vmem [thread:$0]  %s4, 768, %s56, [#allocation6], 128, 128, 8
    $region21: #{split_model_forward.1} parent=1 // pred_fallthru
      _
    // Predicated region
    $region22: #{split_model_forward.1} parent=1 // pred_check
      _
    $region23: #{split_model_forward.1} parent=1 // pred_check_branch
      %63 = sbr.rel (0) target = $region25
    $region24: #{split_model_forward.1} parent=1 // pred_region
      %s65 = ssub.s32 24576, 24576
      %66 = vsyncadd [#allocation9], %s65
      %s67 = sshll.u32 [#allocation8], 4
      %s68 = int_to_ptr.vmem [resolvable:$true] %s67
      %73 = dma.hbm_to_vmem [thread:$0]  %s5, 24576, %s68, [#allocation9], 256, 256, 16
    $region25: #{split_model_forward.1} parent=1 // pred_fallthru
      _
    // Predicated region
    $region26: #{split_model_forward.1} parent=1 // pred_check
      _
    $region27: #{split_model_forward.1} parent=1 // pred_check_branch
      %75 = sbr.rel (0) target = $region29
    $region28: #{split_model_forward.1} parent=1 // pred_region
      _
    $region29: #{split_model_forward.1} parent=1 // pred_fallthru
      _
    // Predicated region
    $region30: #{split_model_forward.1} parent=1 // pred_check
      _
    $region31: #{split_model_forward.1} parent=1 // pred_check_branch
      %77 = sbr.rel (0) target = $region33
    $region32: #{split_model_forward.1} parent=1 // pred_region
      _
    $region33: #{split_model_forward.1} parent=1 // pred_fallthru
      _
    // Predicated region
    $region34: #{split_model_forward.1} parent=1 // pred_check
      _
    $region35: #{split_model_forward.1} parent=1 // pred_check_branch
      %79 = sbr.rel (0) target = $region37
    $region36: #{split_model_forward.1} parent=1 // pred_region
      %s81 = ssub.s32 6144, 6144
      %82 = vsyncadd [#allocation9], %s81
      %s83 = sshll.u32 [#allocation10], 4
      %s84 = int_to_ptr.vmem [resolvable:$true] %s83
      %89 = dma.hbm_to_vmem [thread:$0]  %s8, 6144, %s84, [#allocation9], 128, 128, 8
    $region37: #{split_model_forward.1} parent=1 // pred_fallthru
      _
    // Predicated region
    $region38: #{split_model_forward.1} parent=1 // pred_check
      _
    $region39: #{split_model_forward.1} parent=1 // pred_check_branch
      %91 = sbr.rel (0) target = $region41
    $region40: #{split_model_forward.1} parent=1 // pred_region
      _
    $region41: #{split_model_forward.1} parent=1 // pred_fallthru
      _
    // Predicated region
    $region42: #{split_model_forward.1} parent=1 // pred_check
      _
    $region43: #{split_model_forward.1} parent=1 // pred_check_branch
      %93 = sbr.rel (0) target = $region45
    $region44: #{split_model_forward.1} parent=1 // pred_region
      _
    $region45: #{split_model_forward.1} parent=1 // pred_fallthru
      _
    // Predicated region
    $region46: #{split_model_forward.1} parent=1 // pred_check
      _
    $region47: #{split_model_forward.1} parent=1 // pred_check_branch
      %95 = sbr.rel (0) target = $region49
    $region48: #{split_model_forward.1} parent=1 // pred_region
      _
    $region49: #{split_model_forward.1} parent=1 // pred_fallthru
      _
    // Predicated region
    $region50: #{split_model_forward.1} parent=1 // pred_check
      _
    $region51: #{split_model_forward.1} parent=1 // pred_check_branch
      %97 = sbr.rel (0) target = $region53
    $region52: #{split_model_forward.1} parent=1 // pred_region
      _
    $region53: #{split_model_forward.1} parent=1 // pred_fallthru
      _
    // Predicated region
    $region54: #{split_model_forward.1} parent=1 // pred_check
      _
    $region55: #{split_model_forward.1} parent=1 // pred_check_branch
      %99 = sbr.rel (0) target = $region57
    $region56: #{split_model_forward.1} parent=1 // pred_region
      %100 = dma.done [#allocation3], 3072
    $region57: #{split_model_forward.1} parent=1 // pred_fallthru
      _
    // Predicated region
    $region58: #{split_model_forward.1} parent=1 // pred_check
      _
    $region59: #{split_model_forward.1} parent=1 // pred_check_branch
      %102 = sbr.rel (0) target = $region61
    $region60: #{split_model_forward.1} parent=1 // pred_region
      %103 = dma.done [#allocation6], 12288
    $region61: #{split_model_forward.1} parent=1 // pred_fallthru
      _
    // Predicated region
    $region62: #{split_model_forward.1} parent=1 // pred_check
      _
    $region63: #{split_model_forward.1} parent=1 // pred_check_branch
      %105 = sbr.rel (0) target = $region65
    $region64: #{split_model_forward.1} parent=1 // pred_region
      %106 = dma.done [#allocation6], 768
    $region65: #{split_model_forward.1} parent=1 // pred_fallthru
      _
    // Predicated region
    $region66: #{split_model_forward.1} parent=1 // pred_check
      _
    $region67: #{split_model_forward.1} parent=1 // pred_check_branch
      %108 = sbr.rel (0) target = $region69
    $region68: #{split_model_forward.1} parent=1 // pred_region
      %109 = dma.done [#allocation9], 24576
    $region69: #{split_model_forward.1} parent=1 // pred_fallthru
      _
    // Predicated region
    $region70: #{split_model_forward.1} parent=1 // pred_check
      _
    $region71: #{split_model_forward.1} parent=1 // pred_check_branch
      %111 = sbr.rel (0) target = $region73
    $region72: #{split_model_forward.1} parent=1 // pred_region
      %112 = dma.done [#allocation9], 6144
    $region73: #{split_model_forward.1} parent=1 // pred_fallthru
      _
    %v113 = vld [vmem:[%s0] sm:$0xff]
    %v114 = vld [vmem:[%s0 + $0x8] sm:$0xff]
    %v115 = vld [vmem:[%s0 + $0x10] sm:$0xff]
    %v116 = vld [vmem:[%s0 + $0x18] sm:$0xff]
    %v117 = vld [vmem:[%s0 + $0x20] sm:$0xff]
    %v118 = vld [vmem:[%s0 + $0x28] sm:$0xff]
    %v119 = vld [vmem:[%s0 + $0x30] sm:$0xff]
    %v120 = vld [vmem:[%s0 + $0x38] sm:$0xff]
    %v121 = vld [vmem:[%s0 + $0x40] sm:$0xff]
    %v122 = vld [vmem:[%s0 + $0x48] sm:$0xff]
    %v123 = vld [vmem:[%s0 + $0x50] sm:$0xff]
    %v124 = vld [vmem:[%s0 + $0x58] sm:$0xff]
    %v125 = vld [vmem:[%s0 + $0x60] sm:$0xff]
    %v126 = vld [vmem:[%s0 + $0x68] sm:$0xff]
    %v127 = vld [vmem:[%s0 + $0x70] sm:$0xff]
    %v128 = vld [vmem:[%s0 + $0x78] sm:$0xff]
    %v129 = vld [vmem:[%s3] sm:$0xf]
    %v130 = vld [vmem:[#allocation2] sm:$0xff]
    %v131 = vld [vmem:[#allocation2 + $0x8] sm:$0xff]
    %v132 = vld [vmem:[#allocation2 + $0x10] sm:$0xff]
    %v133 = vld [vmem:[#allocation2 + $0x18] sm:$0xff]
    %v134 = vld [vmem:[#allocation2 + $0x20] sm:$0xff]
    %v135 = vld [vmem:[#allocation2 + $0x28] sm:$0xff]
    %v136 = vld [vmem:[#allocation2 + $0x30] sm:$0xff]
    %v137 = vld [vmem:[#allocation2 + $0x38] sm:$0xff]
    %138 = vmatprep.subr.mxu0 0.0
    %139 = vmatpush1.msra.mxu0 %v128
    %140 = vmatprep.subr.mxu0 0.0
    %141 = vmatpush1.msra.mxu0 %v127
    %142 = vmatprep.subr.mxu0 0.0
    %143 = vmatpush1.msra.mxu0 %v126
    %144 = vmatprep.subr.mxu0 0.0
    %145 = vmatpush1.msra.mxu0 %v125
    %146 = vmatprep.subr.mxu0 0.0
    %147 = vmatpush1.msra.mxu0 %v124
    %148 = vmatprep.subr.mxu0 0.0
    %149 = vmatpush1.msra.mxu0 %v123
    %150 = vmatprep.subr.mxu0 0.0
    %151 = vmatpush1.msra.mxu0 %v122
    %152 = vmatprep.subr.mxu0 0.0
    %153 = vmatpush1.msra.mxu0 %v121
    %154 = vmatprep.subr.mxu0 0.0
    %155 = vmatpush1.msra.mxu0 %v120
    %156 = vmatprep.subr.mxu0 0.0
    %157 = vmatpush1.msra.mxu0 %v119
    %158 = vmatprep.subr.mxu0 0.0
    %159 = vmatpush1.msra.mxu0 %v118
    %160 = vmatprep.subr.mxu0 0.0
    %161 = vmatpush1.msra.mxu0 %v117
    %162 = vmatprep.subr.mxu0 0.0
    %163 = vmatpush1.msra.mxu0 %v116
    %164 = vmatprep.subr.mxu0 0.0
    %165 = vmatpush1.msra.mxu0 %v115
    %166 = vmatprep.subr.mxu0 0.0
    %167 = vmatpush1.msra.mxu0 %v114
    %168 = vmatprep.subr.mxu0 0.0
    %169 = vmatpush1.msra.mxu0 %v113
    %170 = vmatprep.subr.mxu0 0.0
    %171 = vmatpush2.msra.mxu0 0.0
    %172 = vmatprep.subr.mxu0 0.0
    %173 = vmatpush2.msra.mxu0 0.0
    %174 = vmatprep.subr.mxu0 0.0
    %175 = vmatpush2.msra.mxu0 0.0
    %176 = vmatprep.subr.mxu0 0.0
    %177 = vmatpush2.msra.mxu0 0.0
    %178 = vmatprep.subr.mxu0 0.0
    %179 = vmatpush2.msra.mxu0 0.0
    %180 = vmatprep.subr.mxu0 0.0
    %181 = vmatpush2.msra.mxu0 0.0
    %182 = vmatprep.subr.mxu0 0.0
    %183 = vmatpush2.msra.mxu0 0.0
    %184 = vmatprep.subr.mxu0 0.0
    %185 = vmatpush2.msra.mxu0 0.0
    %186 = vmatprep.subr.mxu0 0.0
    %187 = vmatpush2.msra.mxu0 0.0
    %188 = vmatprep.subr.mxu0 0.0
    %189 = vmatpush2.msra.mxu0 0.0
    %190 = vmatprep.subr.mxu0 0.0
    %191 = vmatpush2.msra.mxu0 0.0
    %192 = vmatprep.subr.mxu0 0.0
    %193 = vmatpush2.msra.mxu0 0.0
    %194 = vmatprep.subr.mxu0 0.0
    %195 = vmatpush2.msra.mxu0 0.0
    %196 = vmatprep.subr.mxu0 0.0
    %197 = vmatpush2.msra.mxu0 0.0
    %198 = vmatprep.subr.mxu0 0.0
    %199 = vmatpush2.msra.mxu0 0.0
    %200 = vmatprep.subr.mxu0 0.0
    %201 = vmatpush2.msra.mxu0 0.0
    %202 = vmatprep.mubr.f32.mxu0 0.0
    %203 = vmatmul.mubr.f32.gmra.mxu0 %v130
    %v204 = vpop.f32.mrf.mxu0
    %v205 = vadd.f32 0.0, %v204
    %v206 = vpop.f32.mrf.mxu0
    %207 = vmatprep.mubr.f32.mxu0 0.0
    %208 = vmatmul.mubr.f32.gmra.mxu0 %v131
    %v209 = vpop.f32.mrf.mxu0
    %v210 = vadd.f32 0.0, %v209
    %v211 = vpop.f32.mrf.mxu0
    %212 = vmatprep.mubr.f32.mxu0 0.0
    %213 = vmatmul.mubr.f32.gmra.mxu0 %v132
    %v214 = vpop.f32.mrf.mxu0
    %v215 = vadd.f32 0.0, %v214
    %v216 = vpop.f32.mrf.mxu0
    %217 = vmatprep.mubr.f32.mxu0 0.0
    %218 = vmatmul.mubr.f32.gmra.mxu0 %v133
    %v219 = vpop.f32.mrf.mxu0
    %v220 = vadd.f32 0.0, %v219
    %v221 = vpop.f32.mrf.mxu0
    %222 = vmatprep.mubr.f32.mxu0 0.0
    %223 = vmatmul.mubr.f32.gmra.mxu0 %v134
    %v224 = vpop.f32.mrf.mxu0
    %v225 = vadd.f32 0.0, %v224
    %v226 = vpop.f32.mrf.mxu0
    %227 = vmatprep.mubr.f32.mxu0 0.0
    %228 = vmatmul.mubr.f32.gmra.mxu0 %v135
    %v229 = vpop.f32.mrf.mxu0
    %v230 = vadd.f32 0.0, %v229
    %v231 = vpop.f32.mrf.mxu0
    %232 = vmatprep.mubr.f32.mxu0 0.0
    %233 = vmatmul.mubr.f32.gmra.mxu0 %v136
    %v234 = vpop.f32.mrf.mxu0
    %v235 = vadd.f32 0.0, %v234
    %v236 = vpop.f32.mrf.mxu0
    %237 = vmatprep.mubr.f32.mxu0 0.0
    %238 = vmatmul.mubr.f32.gmra.mxu0 %v137
    %v239 = vpop.f32.mrf.mxu0
    %v240 = vadd.f32 0.0, %v239
    %v241 = vpop.f32.mrf.mxu0
    %242 = vdwg.mxu0
    %v243 = vld [vmem:[#allocation5] sm:$0xff]
    %v244 = vld [vmem:[#allocation5 + $0x8] sm:$0xff]
    %v245 = vld [vmem:[#allocation5 + $0x10] sm:$0xff]
    %v246 = vld [vmem:[#allocation5 + $0x18] sm:$0xff]
    %v247 = vld [vmem:[#allocation5 + $0x20] sm:$0xff]
    %v248 = vld [vmem:[#allocation5 + $0x28] sm:$0xff]
    %v249 = vld [vmem:[#allocation5 + $0x30] sm:$0xff]
    %v250 = vld [vmem:[#allocation5 + $0x38] sm:$0xff]
    %v251 = vld [vmem:[#allocation5 + $0x40] sm:$0xff]
    %v252 = vld [vmem:[#allocation5 + $0x48] sm:$0xff]
    %v253 = vld [vmem:[#allocation5 + $0x50] sm:$0xff]
    %v254 = vld [vmem:[#allocation5 + $0x58] sm:$0xff]
    %v255 = vld [vmem:[#allocation5 + $0x60] sm:$0xff]
    %v256 = vld [vmem:[#allocation5 + $0x68] sm:$0xff]
    %v257 = vld [vmem:[#allocation5 + $0x70] sm:$0xff]
    %v258 = vld [vmem:[#allocation5 + $0x78] sm:$0xff]
    %v259 = vld [vmem:[#allocation5 + $0x80] sm:$0xff]
    %v260 = vld [vmem:[#allocation5 + $0x88] sm:$0xff]
    %v261 = vld [vmem:[#allocation5 + $0x90] sm:$0xff]
    %v262 = vld [vmem:[#allocation5 + $0x98] sm:$0xff]
    %v263 = vld [vmem:[#allocation5 + $0xa0] sm:$0xff]
    %v264 = vld [vmem:[#allocation5 + $0xa8] sm:$0xff]
    %v265 = vld [vmem:[#allocation5 + $0xb0] sm:$0xff]
    %v266 = vld [vmem:[#allocation5 + $0xb8] sm:$0xff]
    %v267 = vld [vmem:[#allocation5 + $0xc0] sm:$0xff]
    %v268 = vld [vmem:[#allocation5 + $0xc8] sm:$0xff]
    %v269 = vld [vmem:[#allocation5 + $0xd0] sm:$0xff]
    %v270 = vld [vmem:[#allocation5 + $0xd8] sm:$0xff]
    %v271 = vld [vmem:[#allocation5 + $0xe0] sm:$0xff]
    %v272 = vld [vmem:[#allocation5 + $0xe8] sm:$0xff]
    %v273 = vld [vmem:[#allocation5 + $0xf0] sm:$0xff]
    %v274 = vld [vmem:[#allocation5 + $0xf8] sm:$0xff]
    %vm275 = vcmask 523264
    %v277 = vsel %vm275, %v205, 0
    %v280 = vsel %vm275, %v210, 0
    %v283 = vsel %vm275, %v215, 0
    %v286 = vsel %vm275, %v220, 0
    %v289 = vsel %vm275, %v225, 0
    %v292 = vsel %vm275, %v230, 0
    %v295 = vsel %vm275, %v235, 0
    %v298 = vsel %vm275, %v240, 0
    %300 = vmatprep.subr.mxu0 0.0
    %301 = vmatpush1.msra.mxu0 0.0
    %302 = vmatprep.subr.mxu0 0.0
    %303 = vmatpush1.msra.mxu0 0.0
    %304 = vmatprep.subr.mxu0 0.0
    %305 = vmatpush1.msra.mxu0 0.0
    %306 = vmatprep.subr.mxu0 0.0
    %307 = vmatpush1.msra.mxu0 0.0
    %308 = vmatprep.subr.mxu0 0.0
    %309 = vmatpush1.msra.mxu0 0.0
    %310 = vmatprep.subr.mxu0 0.0
    %311 = vmatpush1.msra.mxu0 0.0
    %312 = vmatprep.subr.mxu0 0.0
    %313 = vmatpush1.msra.mxu0 0.0
    %314 = vmatprep.subr.mxu0 0.0
    %315 = vmatpush1.msra.mxu0 0.0
    %316 = vmatprep.subr.mxu0 %v272
    %317 = vmatpush1.msra.mxu0 %v271
    %318 = vmatprep.subr.mxu0 %v268
    %319 = vmatpush1.msra.mxu0 %v267
    %320 = vmatprep.subr.mxu0 %v264
    %321 = vmatpush1.msra.mxu0 %v263
    %322 = vmatprep.subr.mxu0 %v260
    %323 = vmatpush1.msra.mxu0 %v259
    %324 = vmatprep.subr.mxu0 %v256
    %325 = vmatpush1.msra.mxu0 %v255
    %326 = vmatprep.subr.mxu0 %v252
    %327 = vmatpush1.msra.mxu0 %v251
    %328 = vmatprep.subr.mxu0 %v248
    %329 = vmatpush1.msra.mxu0 %v247
    %330 = vmatprep.subr.mxu0 %v244
    %331 = vmatpush1.msra.mxu0 %v243
    %332 = vmatprep.subr.mxu0 0.0
    %333 = vmatpush2.msra.mxu0 0.0
    %334 = vmatprep.subr.mxu0 0.0
    %335 = vmatpush2.msra.mxu0 0.0
    %336 = vmatprep.subr.mxu0 0.0
    %337 = vmatpush2.msra.mxu0 0.0
    %338 = vmatprep.subr.mxu0 0.0
    %339 = vmatpush2.msra.mxu0 0.0
    %340 = vmatprep.subr.mxu0 0.0
    %341 = vmatpush2.msra.mxu0 0.0
    %342 = vmatprep.subr.mxu0 0.0
    %343 = vmatpush2.msra.mxu0 0.0
    %344 = vmatprep.subr.mxu0 0.0
    %345 = vmatpush2.msra.mxu0 0.0
    %346 = vmatprep.subr.mxu0 0.0
    %347 = vmatpush2.msra.mxu0 0.0
    %348 = vmatprep.subr.mxu0 0.0
    %349 = vmatpush2.msra.mxu0 0.0
    %350 = vmatprep.subr.mxu0 0.0
    %351 = vmatpush2.msra.mxu0 0.0
    %352 = vmatprep.subr.mxu0 0.0
    %353 = vmatpush2.msra.mxu0 0.0
    %354 = vmatprep.subr.mxu0 0.0
    %355 = vmatpush2.msra.mxu0 0.0
    %356 = vmatprep.subr.mxu0 0.0
    %357 = vmatpush2.msra.mxu0 0.0
    %358 = vmatprep.subr.mxu0 0.0
    %359 = vmatpush2.msra.mxu0 0.0
    %360 = vmatprep.subr.mxu0 0.0
    %361 = vmatpush2.msra.mxu0 0.0
    %362 = vmatprep.subr.mxu0 0.0
    %363 = vmatpush2.msra.mxu0 0.0
    %364 = vmatprep.mubr.f32.mxu0 0.0
    %365 = vmatmul.mubr.f32.gmra.mxu0 %v277
    %v366 = vpop.f32.mrf.mxu0
    %v367 = vadd.f32 0.0, %v366
    %v368 = vpop.f32.mrf.mxu0
    %v369 = vadd.f32 0.0, %v368
    %370 = vmatprep.mubr.f32.mxu0 0.0
    %371 = vmatmul.mubr.f32.gmra.mxu0 %v280
    %v372 = vpop.f32.mrf.mxu0
    %v373 = vadd.f32 0.0, %v372
    %v374 = vpop.f32.mrf.mxu0
    %v375 = vadd.f32 0.0, %v374
    %376 = vmatprep.mubr.f32.mxu0 0.0
    %377 = vmatmul.mubr.f32.gmra.mxu0 %v283
    %v378 = vpop.f32.mrf.mxu0
    %v379 = vadd.f32 0.0, %v378
    %v380 = vpop.f32.mrf.mxu0
    %v381 = vadd.f32 0.0, %v380
    %382 = vmatprep.mubr.f32.mxu0 0.0
    %383 = vmatmul.mubr.f32.gmra.mxu0 %v286
    %v384 = vpop.f32.mrf.mxu0
    %v385 = vadd.f32 0.0, %v384
    %v386 = vpop.f32.mrf.mxu0
    %v387 = vadd.f32 0.0, %v386
    %388 = vmatprep.mubr.f32.mxu0 0.0
    %389 = vmatmul.mubr.f32.gmra.mxu0 %v289
    %v390 = vpop.f32.mrf.mxu0
    %v391 = vadd.f32 0.0, %v390
    %v392 = vpop.f32.mrf.mxu0
    %v393 = vadd.f32 0.0, %v392
    %394 = vmatprep.mubr.f32.mxu0 0.0
    %395 = vmatmul.mubr.f32.gmra.mxu0 %v292
    %v396 = vpop.f32.mrf.mxu0
    %v397 = vadd.f32 0.0, %v396
    %v398 = vpop.f32.mrf.mxu0
    %v399 = vadd.f32 0.0, %v398
    %400 = vmatprep.mubr.f32.mxu0 0.0
    %401 = vmatmul.mubr.f32.gmra.mxu0 %v295
    %v402 = vpop.f32.mrf.mxu0
    %v403 = vadd.f32 0.0, %v402
    %v404 = vpop.f32.mrf.mxu0
    %v405 = vadd.f32 0.0, %v404
    %406 = vmatprep.mubr.f32.mxu0 0.0
    %407 = vmatmul.mubr.f32.gmra.mxu0 %v298
    %v408 = vpop.f32.mrf.mxu0
    %v409 = vadd.f32 0.0, %v408
    %v410 = vpop.f32.mrf.mxu0
    %v411 = vadd.f32 0.0, %v410
    %412 = vdwg.mxu0
    %413 = vmatprep.subr.mxu0 0.0
    %414 = vmatpush1.msra.mxu0 0.0
    %415 = vmatprep.subr.mxu0 0.0
    %416 = vmatpush1.msra.mxu0 0.0
    %417 = vmatprep.subr.mxu0 0.0
    %418 = vmatpush1.msra.mxu0 0.0
    %419 = vmatprep.subr.mxu0 0.0
    %420 = vmatpush1.msra.mxu0 0.0
    %421 = vmatprep.subr.mxu0 0.0
    %422 = vmatpush1.msra.mxu0 0.0
    %423 = vmatprep.subr.mxu0 0.0
    %424 = vmatpush1.msra.mxu0 0.0
    %425 = vmatprep.subr.mxu0 0.0
    %426 = vmatpush1.msra.mxu0 0.0
    %427 = vmatprep.subr.mxu0 0.0
    %428 = vmatpush1.msra.mxu0 0.0
    %429 = vmatprep.subr.mxu0 %v274
    %430 = vmatpush1.msra.mxu0 %v273
    %431 = vmatprep.subr.mxu0 %v270
    %432 = vmatpush1.msra.mxu0 %v269
    %433 = vmatprep.subr.mxu0 %v266
    %434 = vmatpush1.msra.mxu0 %v265
    %435 = vmatprep.subr.mxu0 %v262
    %436 = vmatpush1.msra.mxu0 %v261
    %437 = vmatprep.subr.mxu0 %v258
    %438 = vmatpush1.msra.mxu0 %v257
    %439 = vmatprep.subr.mxu0 %v254
    %440 = vmatpush1.msra.mxu0 %v253
    %441 = vmatprep.subr.mxu0 %v250
    %442 = vmatpush1.msra.mxu0 %v249
    %443 = vmatprep.subr.mxu0 %v246
    %444 = vmatpush1.msra.mxu0 %v245
    %445 = vmatprep.subr.mxu0 0.0
    %446 = vmatpush2.msra.mxu0 0.0
    %447 = vmatprep.subr.mxu0 0.0
    %448 = vmatpush2.msra.mxu0 0.0
    %449 = vmatprep.subr.mxu0 0.0
    %450 = vmatpush2.msra.mxu0 0.0
    %451 = vmatprep.subr.mxu0 0.0
    %452 = vmatpush2.msra.mxu0 0.0
    %453 = vmatprep.subr.mxu0 0.0
    %454 = vmatpush2.msra.mxu0 0.0
    %455 = vmatprep.subr.mxu0 0.0
    %456 = vmatpush2.msra.mxu0 0.0
    %457 = vmatprep.subr.mxu0 0.0
    %458 = vmatpush2.msra.mxu0 0.0
    %459 = vmatprep.subr.mxu0 0.0
    %460 = vmatpush2.msra.mxu0 0.0
    %461 = vmatprep.subr.mxu0 0.0
    %462 = vmatpush2.msra.mxu0 0.0
    %463 = vmatprep.subr.mxu0 0.0
    %464 = vmatpush2.msra.mxu0 0.0
    %465 = vmatprep.subr.mxu0 0.0
    %466 = vmatpush2.msra.mxu0 0.0
    %467 = vmatprep.subr.mxu0 0.0
    %468 = vmatpush2.msra.mxu0 0.0
    %469 = vmatprep.subr.mxu0 0.0
    %470 = vmatpush2.msra.mxu0 0.0
    %471 = vmatprep.subr.mxu0 0.0
    %472 = vmatpush2.msra.mxu0 0.0
    %473 = vmatprep.subr.mxu0 0.0
    %474 = vmatpush2.msra.mxu0 0.0
    %475 = vmatprep.subr.mxu0 0.0
    %476 = vmatpush2.msra.mxu0 0.0
    %477 = vmatprep.mubr.f32.mxu0 0.0
    %478 = vmatmul.mubr.f32.gmra.mxu0 %v277
    %v479 = vpop.f32.mrf.mxu0
    %v480 = vadd.f32 0.0, %v479
    %v481 = vpop.f32.mrf.mxu0
    %v482 = vadd.f32 0.0, %v481
    %483 = vmatprep.mubr.f32.mxu0 0.0
    %484 = vmatmul.mubr.f32.gmra.mxu0 %v280
    %v485 = vpop.f32.mrf.mxu0
    %v486 = vadd.f32 0.0, %v485
    %v487 = vpop.f32.mrf.mxu0
    %v488 = vadd.f32 0.0, %v487
    %489 = vmatprep.mubr.f32.mxu0 0.0
    %490 = vmatmul.mubr.f32.gmra.mxu0 %v283
    %v491 = vpop.f32.mrf.mxu0
    %v492 = vadd.f32 0.0, %v491
    %v493 = vpop.f32.mrf.mxu0
    %v494 = vadd.f32 0.0, %v493
    %495 = vmatprep.mubr.f32.mxu0 0.0
    %496 = vmatmul.mubr.f32.gmra.mxu0 %v286
    %v497 = vpop.f32.mrf.mxu0
    %v498 = vadd.f32 0.0, %v497
    %v499 = vpop.f32.mrf.mxu0
    %v500 = vadd.f32 0.0, %v499
    %501 = vmatprep.mubr.f32.mxu0 0.0
    %502 = vmatmul.mubr.f32.gmra.mxu0 %v289
    %v503 = vpop.f32.mrf.mxu0
    %v504 = vadd.f32 0.0, %v503
    %v505 = vpop.f32.mrf.mxu0
    %v506 = vadd.f32 0.0, %v505
    %507 = vmatprep.mubr.f32.mxu0 0.0
    %508 = vmatmul.mubr.f32.gmra.mxu0 %v292
    %v509 = vpop.f32.mrf.mxu0
    %v510 = vadd.f32 0.0, %v509
    %v511 = vpop.f32.mrf.mxu0
    %v512 = vadd.f32 0.0, %v511
    %513 = vmatprep.mubr.f32.mxu0 0.0
    %514 = vmatmul.mubr.f32.gmra.mxu0 %v295
    %v515 = vpop.f32.mrf.mxu0
    %v516 = vadd.f32 0.0, %v515
    %v517 = vpop.f32.mrf.mxu0
    %v518 = vadd.f32 0.0, %v517
    %519 = vmatprep.mubr.f32.mxu0 0.0
    %520 = vmatmul.mubr.f32.gmra.mxu0 %v298
    %v521 = vpop.f32.mrf.mxu0
    %v522 = vadd.f32 0.0, %v521
    %v523 = vpop.f32.mrf.mxu0
    %v524 = vadd.f32 0.0, %v523
    %525 = vdwg.mxu0
    %v527 = vlaneseq
    %v528 = vshrl.u32 %v527, 7
    %v529 = vsub.s32 0, %v528
    %v530 = vrot.slane %v129, %v529
    %v531 = vlaneseq
    %v532 = vshrl.u32 %v531, 7
    %v533 = vsub.s32 1, %v532
    %v534 = vrot.slane %v129, %v533
    %v535 = vlaneseq
    %v536 = vshrl.u32 %v535, 7
    %v537 = vsub.s32 2, %v536
    %v538 = vrot.slane %v129, %v537
    %v539 = vlaneseq
    %v540 = vshrl.u32 %v539, 7
    %v541 = vsub.s32 3, %v540
    %v542 = vrot.slane %v129, %v541
    %v547 = vadd.f32 %v530, %v367
    %v548 = vadd.f32 %v534, %v369
    %v549 = vadd.f32 %v538, %v480
    %v550 = vadd.f32 %v542, %v482
    %v551 = vadd.f32 %v530, %v373
    %v552 = vadd.f32 %v534, %v375
    %v553 = vadd.f32 %v538, %v486
    %v554 = vadd.f32 %v542, %v488
    %v555 = vadd.f32 %v530, %v379
    %v556 = vadd.f32 %v534, %v381
    %v557 = vadd.f32 %v538, %v492
    %v558 = vadd.f32 %v542, %v494
    %v559 = vadd.f32 %v530, %v385
    %v560 = vadd.f32 %v534, %v387
    %v561 = vadd.f32 %v538, %v498
    %v562 = vadd.f32 %v542, %v500
    %v563 = vadd.f32 %v530, %v391
    %v564 = vadd.f32 %v534, %v393
    %v565 = vadd.f32 %v538, %v504
    %v566 = vadd.f32 %v542, %v506
    %v567 = vadd.f32 %v530, %v397
    %v568 = vadd.f32 %v534, %v399
    %v569 = vadd.f32 %v538, %v510
    %v570 = vadd.f32 %v542, %v512
    %v571 = vadd.f32 %v530, %v403
    %v572 = vadd.f32 %v534, %v405
    %v573 = vadd.f32 %v538, %v516
    %v574 = vadd.f32 %v542, %v518
    %v575 = vadd.f32 %v530, %v409
    %v576 = vadd.f32 %v534, %v411
    %v577 = vadd.f32 %v538, %v522
    %v578 = vadd.f32 %v542, %v524
    %s579 = scalar_lea.vmem [#allocation2], 64
    %v580 = vld [vmem:[%s579] sm:$0xff]
    %v581 = vld [vmem:[%s579 + $0x8] sm:$0xff]
    %v582 = vld [vmem:[%s579 + $0x10] sm:$0xff]
    %v583 = vld [vmem:[%s579 + $0x18] sm:$0xff]
    %v584 = vld [vmem:[%s579 + $0x20] sm:$0xff]
    %v585 = vld [vmem:[%s579 + $0x28] sm:$0xff]
    %v586 = vld [vmem:[%s579 + $0x30] sm:$0xff]
    %v587 = vld [vmem:[%s579 + $0x38] sm:$0xff]
    %588 = vmatprep.subr.mxu0 0.0
    %589 = vmatpush1.msra.mxu0 %v128
    %590 = vmatprep.subr.mxu0 0.0
    %591 = vmatpush1.msra.mxu0 %v127
    %592 = vmatprep.subr.mxu0 0.0
    %593 = vmatpush1.msra.mxu0 %v126
    %594 = vmatprep.subr.mxu0 0.0
    %595 = vmatpush1.msra.mxu0 %v125
    %596 = vmatprep.subr.mxu0 0.0
    %597 = vmatpush1.msra.mxu0 %v124
    %598 = vmatprep.subr.mxu0 0.0
    %599 = vmatpush1.msra.mxu0 %v123
    %600 = vmatprep.subr.mxu0 0.0
    %601 = vmatpush1.msra.mxu0 %v122
    %602 = vmatprep.subr.mxu0 0.0
    %603 = vmatpush1.msra.mxu0 %v121
    %604 = vmatprep.subr.mxu0 0.0
    %605 = vmatpush1.msra.mxu0 %v120
    %606 = vmatprep.subr.mxu0 0.0
    %607 = vmatpush1.msra.mxu0 %v119
    %608 = vmatprep.subr.mxu0 0.0
    %609 = vmatpush1.msra.mxu0 %v118
    %610 = vmatprep.subr.mxu0 0.0
    %611 = vmatpush1.msra.mxu0 %v117
    %612 = vmatprep.subr.mxu0 0.0
    %613 = vmatpush1.msra.mxu0 %v116
    %614 = vmatprep.subr.mxu0 0.0
    %615 = vmatpush1.msra.mxu0 %v115
    %616 = vmatprep.subr.mxu0 0.0
    %617 = vmatpush1.msra.mxu0 %v114
    %618 = vmatprep.subr.mxu0 0.0
    %619 = vmatpush1.msra.mxu0 %v113
    %620 = vmatprep.subr.mxu0 0.0
    %621 = vmatpush2.msra.mxu0 0.0
    %622 = vmatprep.subr.mxu0 0.0
    %623 = vmatpush2.msra.mxu0 0.0
    %624 = vmatprep.subr.mxu0 0.0
    %625 = vmatpush2.msra.mxu0 0.0
    %626 = vmatprep.subr.mxu0 0.0
    %627 = vmatpush2.msra.mxu0 0.0
    %628 = vmatprep.subr.mxu0 0.0
    %629 = vmatpush2.msra.mxu0 0.0
    %630 = vmatprep.subr.mxu0 0.0
    %631 = vmatpush2.msra.mxu0 0.0
    %632 = vmatprep.subr.mxu0 0.0
    %633 = vmatpush2.msra.mxu0 0.0
    %634 = vmatprep.subr.mxu0 0.0
    %635 = vmatpush2.msra.mxu0 0.0
    %636 = vmatprep.subr.mxu0 0.0
    %637 = vmatpush2.msra.mxu0 0.0
    %638 = vmatprep.subr.mxu0 0.0
    %639 = vmatpush2.msra.mxu0 0.0
    %640 = vmatprep.subr.mxu0 0.0
    %641 = vmatpush2.msra.mxu0 0.0
    %642 = vmatprep.subr.mxu0 0.0
    %643 = vmatpush2.msra.mxu0 0.0
    %644 = vmatprep.subr.mxu0 0.0
    %645 = vmatpush2.msra.mxu0 0.0
    %646 = vmatprep.subr.mxu0 0.0
    %647 = vmatpush2.msra.mxu0 0.0
    %648 = vmatprep.subr.mxu0 0.0
    %649 = vmatpush2.msra.mxu0 0.0
    %650 = vmatprep.subr.mxu0 0.0
    %651 = vmatpush2.msra.mxu0 0.0
    %652 = vmatprep.mubr.f32.mxu0 0.0
    %653 = vmatmul.mubr.f32.gmra.mxu0 %v580
    %v654 = vpop.f32.mrf.mxu0
    %v655 = vadd.f32 0.0, %v654
    %v656 = vpop.f32.mrf.mxu0
    %657 = vmatprep.mubr.f32.mxu0 0.0
    %658 = vmatmul.mubr.f32.gmra.mxu0 %v581
    %v659 = vpop.f32.mrf.mxu0
    %v660 = vadd.f32 0.0, %v659
    %v661 = vpop.f32.mrf.mxu0
    %662 = vmatprep.mubr.f32.mxu0 0.0
    %663 = vmatmul.mubr.f32.gmra.mxu0 %v582
    %v664 = vpop.f32.mrf.mxu0
    %v665 = vadd.f32 0.0, %v664
    %v666 = vpop.f32.mrf.mxu0
    %667 = vmatprep.mubr.f32.mxu0 0.0
    %668 = vmatmul.mubr.f32.gmra.mxu0 %v583
    %v669 = vpop.f32.mrf.mxu0
    %v670 = vadd.f32 0.0, %v669
    %v671 = vpop.f32.mrf.mxu0
    %672 = vmatprep.mubr.f32.mxu0 0.0
    %673 = vmatmul.mubr.f32.gmra.mxu0 %v584
    %v674 = vpop.f32.mrf.mxu0
    %v675 = vadd.f32 0.0, %v674
    %v676 = vpop.f32.mrf.mxu0
    %677 = vmatprep.mubr.f32.mxu0 0.0
    %678 = vmatmul.mubr.f32.gmra.mxu0 %v585
    %v679 = vpop.f32.mrf.mxu0
    %v680 = vadd.f32 0.0, %v679
    %v681 = vpop.f32.mrf.mxu0
    %682 = vmatprep.mubr.f32.mxu0 0.0
    %683 = vmatmul.mubr.f32.gmra.mxu0 %v586
    %v684 = vpop.f32.mrf.mxu0
    %v685 = vadd.f32 0.0, %v684
    %v686 = vpop.f32.mrf.mxu0
    %687 = vmatprep.mubr.f32.mxu0 0.0
    %688 = vmatmul.mubr.f32.gmra.mxu0 %v587
    %v689 = vpop.f32.mrf.mxu0
    %v690 = vadd.f32 0.0, %v689
    %v691 = vpop.f32.mrf.mxu0
    %692 = vdwg.mxu0
    %s693 = scalar_lea.vmem [#allocation5], 256
    %v694 = vld [vmem:[%s693] sm:$0xff]
    %v695 = vld [vmem:[%s693 + $0x8] sm:$0xff]
    %v696 = vld [vmem:[%s693 + $0x10] sm:$0xff]
    %v697 = vld [vmem:[%s693 + $0x18] sm:$0xff]
    %v698 = vld [vmem:[%s693 + $0x20] sm:$0xff]
    %v699 = vld [vmem:[%s693 + $0x28] sm:$0xff]
    %v700 = vld [vmem:[%s693 + $0x30] sm:$0xff]
    %v701 = vld [vmem:[%s693 + $0x38] sm:$0xff]
    %v702 = vld [vmem:[%s693 + $0x40] sm:$0xff]
    %v703 = vld [vmem:[%s693 + $0x48] sm:$0xff]
    %v704 = vld [vmem:[%s693 + $0x50] sm:$0xff]
    %v705 = vld [vmem:[%s693 + $0x58] sm:$0xff]
    %v706 = vld [vmem:[%s693 + $0x60] sm:$0xff]
    %v707 = vld [vmem:[%s693 + $0x68] sm:$0xff]
    %v708 = vld [vmem:[%s693 + $0x70] sm:$0xff]
    %v709 = vld [vmem:[%s693 + $0x78] sm:$0xff]
    %v710 = vld [vmem:[%s693 + $0x80] sm:$0xff]
    %v711 = vld [vmem:[%s693 + $0x88] sm:$0xff]
    %v712 = vld [vmem:[%s693 + $0x90] sm:$0xff]
    %v713 = vld [vmem:[%s693 + $0x98] sm:$0xff]
    %v714 = vld [vmem:[%s693 + $0xa0] sm:$0xff]
    %v715 = vld [vmem:[%s693 + $0xa8] sm:$0xff]
    %v716 = vld [vmem:[%s693 + $0xb0] sm:$0xff]
    %v717 = vld [vmem:[%s693 + $0xb8] sm:$0xff]
    %v718 = vld [vmem:[%s693 + $0xc0] sm:$0xff]
    %v719 = vld [vmem:[%s693 + $0xc8] sm:$0xff]
    %v720 = vld [vmem:[%s693 + $0xd0] sm:$0xff]
    %v721 = vld [vmem:[%s693 + $0xd8] sm:$0xff]
    %v722 = vld [vmem:[%s693 + $0xe0] sm:$0xff]
    %v723 = vld [vmem:[%s693 + $0xe8] sm:$0xff]
    %v724 = vld [vmem:[%s693 + $0xf0] sm:$0xff]
    %v725 = vld [vmem:[%s693 + $0xf8] sm:$0xff]
    %v727 = vsel %vm275, %v655, 0
    %v730 = vsel %vm275, %v660, 0
    %v733 = vsel %vm275, %v665, 0
    %v736 = vsel %vm275, %v670, 0
    %v739 = vsel %vm275, %v675, 0
    %v742 = vsel %vm275, %v680, 0
    %v745 = vsel %vm275, %v685, 0
    %v748 = vsel %vm275, %v690, 0
    %750 = vmatprep.subr.mxu0 0.0
    %751 = vmatpush1.msra.mxu0 0.0
    %752 = vmatprep.subr.mxu0 0.0
    %753 = vmatpush1.msra.mxu0 0.0
    %754 = vmatprep.subr.mxu0 0.0
    %755 = vmatpush1.msra.mxu0 0.0
    %756 = vmatprep.subr.mxu0 0.0
    %757 = vmatpush1.msra.mxu0 0.0
    %758 = vmatprep.subr.mxu0 0.0
    %759 = vmatpush1.msra.mxu0 0.0
    %760 = vmatprep.subr.mxu0 0.0
    %761 = vmatpush1.msra.mxu0 0.0
    %762 = vmatprep.subr.mxu0 0.0
    %763 = vmatpush1.msra.mxu0 0.0
    %764 = vmatprep.subr.mxu0 0.0
    %765 = vmatpush1.msra.mxu0 0.0
    %766 = vmatprep.subr.mxu0 %v723
    %767 = vmatpush1.msra.mxu0 %v722
    %768 = vmatprep.subr.mxu0 %v719
    %769 = vmatpush1.msra.mxu0 %v718
    %770 = vmatprep.subr.mxu0 %v715
    %771 = vmatpush1.msra.mxu0 %v714
    %772 = vmatprep.subr.mxu0 %v711
    %773 = vmatpush1.msra.mxu0 %v710
    %774 = vmatprep.subr.mxu0 %v707
    %775 = vmatpush1.msra.mxu0 %v706
    %776 = vmatprep.subr.mxu0 %v703
    %777 = vmatpush1.msra.mxu0 %v702
    %778 = vmatprep.subr.mxu0 %v699
    %779 = vmatpush1.msra.mxu0 %v698
    %780 = vmatprep.subr.mxu0 %v695
    %781 = vmatpush1.msra.mxu0 %v694
    %782 = vmatprep.subr.mxu0 0.0
    %783 = vmatpush2.msra.mxu0 0.0
    %784 = vmatprep.subr.mxu0 0.0
    %785 = vmatpush2.msra.mxu0 0.0
    %786 = vmatprep.subr.mxu0 0.0
    %787 = vmatpush2.msra.mxu0 0.0
    %788 = vmatprep.subr.mxu0 0.0
    %789 = vmatpush2.msra.mxu0 0.0
    %790 = vmatprep.subr.mxu0 0.0
    %791 = vmatpush2.msra.mxu0 0.0
    %792 = vmatprep.subr.mxu0 0.0
    %793 = vmatpush2.msra.mxu0 0.0
    %794 = vmatprep.subr.mxu0 0.0
    %795 = vmatpush2.msra.mxu0 0.0
    %796 = vmatprep.subr.mxu0 0.0
    %797 = vmatpush2.msra.mxu0 0.0
    %798 = vmatprep.subr.mxu0 0.0
    %799 = vmatpush2.msra.mxu0 0.0
    %800 = vmatprep.subr.mxu0 0.0
    %801 = vmatpush2.msra.mxu0 0.0
    %802 = vmatprep.subr.mxu0 0.0
    %803 = vmatpush2.msra.mxu0 0.0
    %804 = vmatprep.subr.mxu0 0.0
    %805 = vmatpush2.msra.mxu0 0.0
    %806 = vmatprep.subr.mxu0 0.0
    %807 = vmatpush2.msra.mxu0 0.0
    %808 = vmatprep.subr.mxu0 0.0
    %809 = vmatpush2.msra.mxu0 0.0
    %810 = vmatprep.subr.mxu0 0.0
    %811 = vmatpush2.msra.mxu0 0.0
    %812 = vmatprep.subr.mxu0 0.0
    %813 = vmatpush2.msra.mxu0 0.0
    %814 = vmatprep.mubr.f32.mxu0 0.0
    %815 = vmatmul.mubr.f32.gmra.mxu0 %v727
    %v816 = vpop.f32.mrf.mxu0
    %v817 = vadd.f32 0.0, %v816
    %v818 = vpop.f32.mrf.mxu0
    %v819 = vadd.f32 0.0, %v818
    %820 = vmatprep.mubr.f32.mxu0 0.0
    %821 = vmatmul.mubr.f32.gmra.mxu0 %v730
    %v822 = vpop.f32.mrf.mxu0
    %v823 = vadd.f32 0.0, %v822
    %v824 = vpop.f32.mrf.mxu0
    %v825 = vadd.f32 0.0, %v824
    %826 = vmatprep.mubr.f32.mxu0 0.0
    %827 = vmatmul.mubr.f32.gmra.mxu0 %v733
    %v828 = vpop.f32.mrf.mxu0
    %v829 = vadd.f32 0.0, %v828
    %v830 = vpop.f32.mrf.mxu0
    %v831 = vadd.f32 0.0, %v830
    %832 = vmatprep.mubr.f32.mxu0 0.0
    %833 = vmatmul.mubr.f32.gmra.mxu0 %v736
    %v834 = vpop.f32.mrf.mxu0
    %v835 = vadd.f32 0.0, %v834
    %v836 = vpop.f32.mrf.mxu0
    %v837 = vadd.f32 0.0, %v836
    %838 = vmatprep.mubr.f32.mxu0 0.0
    %839 = vmatmul.mubr.f32.gmra.mxu0 %v739
    %v840 = vpop.f32.mrf.mxu0
    %v841 = vadd.f32 0.0, %v840
    %v842 = vpop.f32.mrf.mxu0
    %v843 = vadd.f32 0.0, %v842
    %844 = vmatprep.mubr.f32.mxu0 0.0
    %845 = vmatmul.mubr.f32.gmra.mxu0 %v742
    %v846 = vpop.f32.mrf.mxu0
    %v847 = vadd.f32 0.0, %v846
    %v848 = vpop.f32.mrf.mxu0
    %v849 = vadd.f32 0.0, %v848
    %850 = vmatprep.mubr.f32.mxu0 0.0
    %851 = vmatmul.mubr.f32.gmra.mxu0 %v745
    %v852 = vpop.f32.mrf.mxu0
    %v853 = vadd.f32 0.0, %v852
    %v854 = vpop.f32.mrf.mxu0
    %v855 = vadd.f32 0.0, %v854
    %856 = vmatprep.mubr.f32.mxu0 0.0
    %857 = vmatmul.mubr.f32.gmra.mxu0 %v748
    %v858 = vpop.f32.mrf.mxu0
    %v859 = vadd.f32 0.0, %v858
    %v860 = vpop.f32.mrf.mxu0
    %v861 = vadd.f32 0.0, %v860
    %862 = vdwg.mxu0
    %863 = vmatprep.subr.mxu0 0.0
    %864 = vmatpush1.msra.mxu0 0.0
    %865 = vmatprep.subr.mxu0 0.0
    %866 = vmatpush1.msra.mxu0 0.0
    %867 = vmatprep.subr.mxu0 0.0
    %868 = vmatpush1.msra.mxu0 0.0
    %869 = vmatprep.subr.mxu0 0.0
    %870 = vmatpush1.msra.mxu0 0.0
    %871 = vmatprep.subr.mxu0 0.0
    %872 = vmatpush1.msra.mxu0 0.0
    %873 = vmatprep.subr.mxu0 0.0
    %874 = vmatpush1.msra.mxu0 0.0
    %875 = vmatprep.subr.mxu0 0.0
    %876 = vmatpush1.msra.mxu0 0.0
    %877 = vmatprep.subr.mxu0 0.0
    %878 = vmatpush1.msra.mxu0 0.0
    %879 = vmatprep.subr.mxu0 %v725
    %880 = vmatpush1.msra.mxu0 %v724
    %881 = vmatprep.subr.mxu0 %v721
    %882 = vmatpush1.msra.mxu0 %v720
    %883 = vmatprep.subr.mxu0 %v717
    %884 = vmatpush1.msra.mxu0 %v716
    %885 = vmatprep.subr.mxu0 %v713
    %886 = vmatpush1.msra.mxu0 %v712
    %887 = vmatprep.subr.mxu0 %v709
    %888 = vmatpush1.msra.mxu0 %v708
    %889 = vmatprep.subr.mxu0 %v705
    %890 = vmatpush1.msra.mxu0 %v704
    %891 = vmatprep.subr.mxu0 %v701
    %892 = vmatpush1.msra.mxu0 %v700
    %893 = vmatprep.subr.mxu0 %v697
    %894 = vmatpush1.msra.mxu0 %v696
    %895 = vmatprep.subr.mxu0 0.0
    %896 = vmatpush2.msra.mxu0 0.0
    %897 = vmatprep.subr.mxu0 0.0
    %898 = vmatpush2.msra.mxu0 0.0
    %899 = vmatprep.subr.mxu0 0.0
    %900 = vmatpush2.msra.mxu0 0.0
    %901 = vmatprep.subr.mxu0 0.0
    %902 = vmatpush2.msra.mxu0 0.0
    %903 = vmatprep.subr.mxu0 0.0
    %904 = vmatpush2.msra.mxu0 0.0
    %905 = vmatprep.subr.mxu0 0.0
    %906 = vmatpush2.msra.mxu0 0.0
    %907 = vmatprep.subr.mxu0 0.0
    %908 = vmatpush2.msra.mxu0 0.0
    %909 = vmatprep.subr.mxu0 0.0
    %910 = vmatpush2.msra.mxu0 0.0
    %911 = vmatprep.subr.mxu0 0.0
    %912 = vmatpush2.msra.mxu0 0.0
    %913 = vmatprep.subr.mxu0 0.0
    %914 = vmatpush2.msra.mxu0 0.0
    %915 = vmatprep.subr.mxu0 0.0
    %916 = vmatpush2.msra.mxu0 0.0
    %917 = vmatprep.subr.mxu0 0.0
    %918 = vmatpush2.msra.mxu0 0.0
    %919 = vmatprep.subr.mxu0 0.0
    %920 = vmatpush2.msra.mxu0 0.0
    %921 = vmatprep.subr.mxu0 0.0
    %922 = vmatpush2.msra.mxu0 0.0
    %923 = vmatprep.subr.mxu0 0.0
    %924 = vmatpush2.msra.mxu0 0.0
    %925 = vmatprep.subr.mxu0 0.0
    %926 = vmatpush2.msra.mxu0 0.0
    %927 = vmatprep.mubr.f32.mxu0 0.0
    %928 = vmatmul.mubr.f32.gmra.mxu0 %v727
    %v929 = vpop.f32.mrf.mxu0
    %v930 = vadd.f32 0.0, %v929
    %v931 = vpop.f32.mrf.mxu0
    %v932 = vadd.f32 0.0, %v931
    %933 = vmatprep.mubr.f32.mxu0 0.0
    %934 = vmatmul.mubr.f32.gmra.mxu0 %v730
    %v935 = vpop.f32.mrf.mxu0
    %v936 = vadd.f32 0.0, %v935
    %v937 = vpop.f32.mrf.mxu0
    %v938 = vadd.f32 0.0, %v937
    %939 = vmatprep.mubr.f32.mxu0 0.0
    %940 = vmatmul.mubr.f32.gmra.mxu0 %v733
    %v941 = vpop.f32.mrf.mxu0
    %v942 = vadd.f32 0.0, %v941
    %v943 = vpop.f32.mrf.mxu0
    %v944 = vadd.f32 0.0, %v943
    %945 = vmatprep.mubr.f32.mxu0 0.0
    %946 = vmatmul.mubr.f32.gmra.mxu0 %v736
    %v947 = vpop.f32.mrf.mxu0
    %v948 = vadd.f32 0.0, %v947
    %v949 = vpop.f32.mrf.mxu0
    %v950 = vadd.f32 0.0, %v949
    %951 = vmatprep.mubr.f32.mxu0 0.0
    %952 = vmatmul.mubr.f32.gmra.mxu0 %v739
    %v953 = vpop.f32.mrf.mxu0
    %v954 = vadd.f32 0.0, %v953
    %v955 = vpop.f32.mrf.mxu0
    %v956 = vadd.f32 0.0, %v955
    %957 = vmatprep.mubr.f32.mxu0 0.0
    %958 = vmatmul.mubr.f32.gmra.mxu0 %v742
    %v959 = vpop.f32.mrf.mxu0
    %v960 = vadd.f32 0.0, %v959
    %v961 = vpop.f32.mrf.mxu0
    %v962 = vadd.f32 0.0, %v961
    %963 = vmatprep.mubr.f32.mxu0 0.0
    %964 = vmatmul.mubr.f32.gmra.mxu0 %v745
    %v965 = vpop.f32.mrf.mxu0
    %v966 = vadd.f32 0.0, %v965
    %v967 = vpop.f32.mrf.mxu0
    %v968 = vadd.f32 0.0, %v967
    %969 = vmatprep.mubr.f32.mxu0 0.0
    %970 = vmatmul.mubr.f32.gmra.mxu0 %v748
    %v971 = vpop.f32.mrf.mxu0
    %v972 = vadd.f32 0.0, %v971
    %v973 = vpop.f32.mrf.mxu0
    %v974 = vadd.f32 0.0, %v973
    %975 = vdwg.mxu0
    %v976 = vadd.f32 %v547, %v817
    %v977 = vadd.f32 %v548, %v819
    %v978 = vadd.f32 %v549, %v930
    %v979 = vadd.f32 %v550, %v932
    %v980 = vadd.f32 %v551, %v823
    %v981 = vadd.f32 %v552, %v825
    %v982 = vadd.f32 %v553, %v936
    %v983 = vadd.f32 %v554, %v938
    %v984 = vadd.f32 %v555, %v829
    %v985 = vadd.f32 %v556, %v831
    %v986 = vadd.f32 %v557, %v942
    %v987 = vadd.f32 %v558, %v944
    %v988 = vadd.f32 %v559, %v835
    %v989 = vadd.f32 %v560, %v837
    %v990 = vadd.f32 %v561, %v948
    %v991 = vadd.f32 %v562, %v950
    %v992 = vadd.f32 %v563, %v841
    %v993 = vadd.f32 %v564, %v843
    %v994 = vadd.f32 %v565, %v954
    %v995 = vadd.f32 %v566, %v956
    %v996 = vadd.f32 %v567, %v847
    %v997 = vadd.f32 %v568, %v849
    %v998 = vadd.f32 %v569, %v960
    %v999 = vadd.f32 %v570, %v962
    %v1000 = vadd.f32 %v571, %v853
    %v1001 = vadd.f32 %v572, %v855
    %v1002 = vadd.f32 %v573, %v966
    %v1003 = vadd.f32 %v574, %v968
    %v1004 = vadd.f32 %v575, %v859
    %v1005 = vadd.f32 %v576, %v861
    %v1006 = vadd.f32 %v577, %v972
    %v1007 = vadd.f32 %v578, %v974
    %s1008 = scalar_lea.vmem [#allocation2], 128
    %v1009 = vld [vmem:[%s1008] sm:$0xff]
    %v1010 = vld [vmem:[%s1008 + $0x8] sm:$0xff]
    %v1011 = vld [vmem:[%s1008 + $0x10] sm:$0xff]
    %v1012 = vld [vmem:[%s1008 + $0x18] sm:$0xff]
    %v1013 = vld [vmem:[%s1008 + $0x20] sm:$0xff]
    %v1014 = vld [vmem:[%s1008 + $0x28] sm:$0xff]
    %v1015 = vld [vmem:[%s1008 + $0x30] sm:$0xff]
    %v1016 = vld [vmem:[%s1008 + $0x38] sm:$0xff]
    %1017 = vmatprep.subr.mxu0 0.0
    %1018 = vmatpush1.msra.mxu0 %v128
    %1019 = vmatprep.subr.mxu0 0.0
    %1020 = vmatpush1.msra.mxu0 %v127
    %1021 = vmatprep.subr.mxu0 0.0
    %1022 = vmatpush1.msra.mxu0 %v126
    %1023 = vmatprep.subr.mxu0 0.0
    %1024 = vmatpush1.msra.mxu0 %v125
    %1025 = vmatprep.subr.mxu0 0.0
    %1026 = vmatpush1.msra.mxu0 %v124
    %1027 = vmatprep.subr.mxu0 0.0
    %1028 = vmatpush1.msra.mxu0 %v123
    %1029 = vmatprep.subr.mxu0 0.0
    %1030 = vmatpush1.msra.mxu0 %v122
    %1031 = vmatprep.subr.mxu0 0.0
    %1032 = vmatpush1.msra.mxu0 %v121
    %1033 = vmatprep.subr.mxu0 0.0
    %1034 = vmatpush1.msra.mxu0 %v120
    %1035 = vmatprep.subr.mxu0 0.0
    %1036 = vmatpush1.msra.mxu0 %v119
    %1037 = vmatprep.subr.mxu0 0.0
    %1038 = vmatpush1.msra.mxu0 %v118
    %1039 = vmatprep.subr.mxu0 0.0
    %1040 = vmatpush1.msra.mxu0 %v117
    %1041 = vmatprep.subr.mxu0 0.0
    %1042 = vmatpush1.msra.mxu0 %v116
    %1043 = vmatprep.subr.mxu0 0.0
    %1044 = vmatpush1.msra.mxu0 %v115
    %1045 = vmatprep.subr.mxu0 0.0
    %1046 = vmatpush1.msra.mxu0 %v114
    %1047 = vmatprep.subr.mxu0 0.0
    %1048 = vmatpush1.msra.mxu0 %v113
    %1049 = vmatprep.subr.mxu0 0.0
    %1050 = vmatpush2.msra.mxu0 0.0
    %1051 = vmatprep.subr.mxu0 0.0
    %1052 = vmatpush2.msra.mxu0 0.0
    %1053 = vmatprep.subr.mxu0 0.0
    %1054 = vmatpush2.msra.mxu0 0.0
    %1055 = vmatprep.subr.mxu0 0.0
    %1056 = vmatpush2.msra.mxu0 0.0
    %1057 = vmatprep.subr.mxu0 0.0
    %1058 = vmatpush2.msra.mxu0 0.0
    %1059 = vmatprep.subr.mxu0 0.0
    %1060 = vmatpush2.msra.mxu0 0.0
    %1061 = vmatprep.subr.mxu0 0.0
    %1062 = vmatpush2.msra.mxu0 0.0
    %1063 = vmatprep.subr.mxu0 0.0
    %1064 = vmatpush2.msra.mxu0 0.0
    %1065 = vmatprep.subr.mxu0 0.0
    %1066 = vmatpush2.msra.mxu0 0.0
    %1067 = vmatprep.subr.mxu0 0.0
    %1068 = vmatpush2.msra.mxu0 0.0
    %1069 = vmatprep.subr.mxu0 0.0
    %1070 = vmatpush2.msra.mxu0 0.0
    %1071 = vmatprep.subr.mxu0 0.0
    %1072 = vmatpush2.msra.mxu0 0.0
    %1073 = vmatprep.subr.mxu0 0.0
    %1074 = vmatpush2.msra.mxu0 0.0
    %1075 = vmatprep.subr.mxu0 0.0
    %1076 = vmatpush2.msra.mxu0 0.0
    %1077 = vmatprep.subr.mxu0 0.0
    %1078 = vmatpush2.msra.mxu0 0.0
    %1079 = vmatprep.subr.mxu0 0.0
    %1080 = vmatpush2.msra.mxu0 0.0
    %1081 = vmatprep.mubr.f32.mxu0 0.0
    %1082 = vmatmul.mubr.f32.gmra.mxu0 %v1009
    %v1083 = vpop.f32.mrf.mxu0
    %v1084 = vadd.f32 0.0, %v1083
    %v1085 = vpop.f32.mrf.mxu0
    %1086 = vmatprep.mubr.f32.mxu0 0.0
    %1087 = vmatmul.mubr.f32.gmra.mxu0 %v1010
    %v1088 = vpop.f32.mrf.mxu0
    %v1089 = vadd.f32 0.0, %v1088
    %v1090 = vpop.f32.mrf.mxu0
    %1091 = vmatprep.mubr.f32.mxu0 0.0
    %1092 = vmatmul.mubr.f32.gmra.mxu0 %v1011
    %v1093 = vpop.f32.mrf.mxu0
    %v1094 = vadd.f32 0.0, %v1093
    %v1095 = vpop.f32.mrf.mxu0
    %1096 = vmatprep.mubr.f32.mxu0 0.0
    %1097 = vmatmul.mubr.f32.gmra.mxu0 %v1012
    %v1098 = vpop.f32.mrf.mxu0
    %v1099 = vadd.f32 0.0, %v1098
    %v1100 = vpop.f32.mrf.mxu0
    %1101 = vmatprep.mubr.f32.mxu0 0.0
    %1102 = vmatmul.mubr.f32.gmra.mxu0 %v1013
    %v1103 = vpop.f32.mrf.mxu0
    %v1104 = vadd.f32 0.0, %v1103
    %v1105 = vpop.f32.mrf.mxu0
    %1106 = vmatprep.mubr.f32.mxu0 0.0
    %1107 = vmatmul.mubr.f32.gmra.mxu0 %v1014
    %v1108 = vpop.f32.mrf.mxu0
    %v1109 = vadd.f32 0.0, %v1108
    %v1110 = vpop.f32.mrf.mxu0
    %1111 = vmatprep.mubr.f32.mxu0 0.0
    %1112 = vmatmul.mubr.f32.gmra.mxu0 %v1015
    %v1113 = vpop.f32.mrf.mxu0
    %v1114 = vadd.f32 0.0, %v1113
    %v1115 = vpop.f32.mrf.mxu0
    %1116 = vmatprep.mubr.f32.mxu0 0.0
    %1117 = vmatmul.mubr.f32.gmra.mxu0 %v1016
    %v1118 = vpop.f32.mrf.mxu0
    %v1119 = vadd.f32 0.0, %v1118
    %v1120 = vpop.f32.mrf.mxu0
    %1121 = vdwg.mxu0
    %s1122 = scalar_lea.vmem [#allocation5], 512
    %v1123 = vld [vmem:[%s1122] sm:$0xff]
    %v1124 = vld [vmem:[%s1122 + $0x8] sm:$0xff]
    %v1125 = vld [vmem:[%s1122 + $0x10] sm:$0xff]
    %v1126 = vld [vmem:[%s1122 + $0x18] sm:$0xff]
    %v1127 = vld [vmem:[%s1122 + $0x20] sm:$0xff]
    %v1128 = vld [vmem:[%s1122 + $0x28] sm:$0xff]
    %v1129 = vld [vmem:[%s1122 + $0x30] sm:$0xff]
    %v1130 = vld [vmem:[%s1122 + $0x38] sm:$0xff]
    %v1131 = vld [vmem:[%s1122 + $0x40] sm:$0xff]
    %v1132 = vld [vmem:[%s1122 + $0x48] sm:$0xff]
    %v1133 = vld [vmem:[%s1122 + $0x50] sm:$0xff]
    %v1134 = vld [vmem:[%s1122 + $0x58] sm:$0xff]
    %v1135 = vld [vmem:[%s1122 + $0x60] sm:$0xff]
    %v1136 = vld [vmem:[%s1122 + $0x68] sm:$0xff]
    %v1137 = vld [vmem:[%s1122 + $0x70] sm:$0xff]
    %v1138 = vld [vmem:[%s1122 + $0x78] sm:$0xff]
    %v1139 = vld [vmem:[%s1122 + $0x80] sm:$0xff]
    %v1140 = vld [vmem:[%s1122 + $0x88] sm:$0xff]
    %v1141 = vld [vmem:[%s1122 + $0x90] sm:$0xff]
    %v1142 = vld [vmem:[%s1122 + $0x98] sm:$0xff]
    %v1143 = vld [vmem:[%s1122 + $0xa0] sm:$0xff]
    %v1144 = vld [vmem:[%s1122 + $0xa8] sm:$0xff]
    %v1145 = vld [vmem:[%s1122 + $0xb0] sm:$0xff]
    %v1146 = vld [vmem:[%s1122 + $0xb8] sm:$0xff]
    %v1147 = vld [vmem:[%s1122 + $0xc0] sm:$0xff]
    %v1148 = vld [vmem:[%s1122 + $0xc8] sm:$0xff]
    %v1149 = vld [vmem:[%s1122 + $0xd0] sm:$0xff]
    %v1150 = vld [vmem:[%s1122 + $0xd8] sm:$0xff]
    %v1151 = vld [vmem:[%s1122 + $0xe0] sm:$0xff]
    %v1152 = vld [vmem:[%s1122 + $0xe8] sm:$0xff]
    %v1153 = vld [vmem:[%s1122 + $0xf0] sm:$0xff]
    %v1154 = vld [vmem:[%s1122 + $0xf8] sm:$0xff]
    %v1156 = vsel %vm275, %v1084, 0
    %v1159 = vsel %vm275, %v1089, 0
    %v1162 = vsel %vm275, %v1094, 0
    %v1165 = vsel %vm275, %v1099, 0
    %v1168 = vsel %vm275, %v1104, 0
    %v1171 = vsel %vm275, %v1109, 0
    %v1174 = vsel %vm275, %v1114, 0
    %v1177 = vsel %vm275, %v1119, 0
    %1179 = vmatprep.subr.mxu0 0.0
    %1180 = vmatpush1.msra.mxu0 0.0
    %1181 = vmatprep.subr.mxu0 0.0
    %1182 = vmatpush1.msra.mxu0 0.0
    %1183 = vmatprep.subr.mxu0 0.0
    %1184 = vmatpush1.msra.mxu0 0.0
    %1185 = vmatprep.subr.mxu0 0.0
    %1186 = vmatpush1.msra.mxu0 0.0
    %1187 = vmatprep.subr.mxu0 0.0
    %1188 = vmatpush1.msra.mxu0 0.0
    %1189 = vmatprep.subr.mxu0 0.0
    %1190 = vmatpush1.msra.mxu0 0.0
    %1191 = vmatprep.subr.mxu0 0.0
    %1192 = vmatpush1.msra.mxu0 0.0
    %1193 = vmatprep.subr.mxu0 0.0
    %1194 = vmatpush1.msra.mxu0 0.0
    %1195 = vmatprep.subr.mxu0 %v1152
    %1196 = vmatpush1.msra.mxu0 %v1151
    %1197 = vmatprep.subr.mxu0 %v1148
    %1198 = vmatpush1.msra.mxu0 %v1147
    %1199 = vmatprep.subr.mxu0 %v1144
    %1200 = vmatpush1.msra.mxu0 %v1143
    %1201 = vmatprep.subr.mxu0 %v1140
    %1202 = vmatpush1.msra.mxu0 %v1139
    %1203 = vmatprep.subr.mxu0 %v1136
    %1204 = vmatpush1.msra.mxu0 %v1135
    %1205 = vmatprep.subr.mxu0 %v1132
    %1206 = vmatpush1.msra.mxu0 %v1131
    %1207 = vmatprep.subr.mxu0 %v1128
    %1208 = vmatpush1.msra.mxu0 %v1127
    %1209 = vmatprep.subr.mxu0 %v1124
    %1210 = vmatpush1.msra.mxu0 %v1123
    %1211 = vmatprep.subr.mxu0 0.0
    %1212 = vmatpush2.msra.mxu0 0.0
    %1213 = vmatprep.subr.mxu0 0.0
    %1214 = vmatpush2.msra.mxu0 0.0
    %1215 = vmatprep.subr.mxu0 0.0
    %1216 = vmatpush2.msra.mxu0 0.0
    %1217 = vmatprep.subr.mxu0 0.0
    %1218 = vmatpush2.msra.mxu0 0.0
    %1219 = vmatprep.subr.mxu0 0.0
    %1220 = vmatpush2.msra.mxu0 0.0
    %1221 = vmatprep.subr.mxu0 0.0
    %1222 = vmatpush2.msra.mxu0 0.0
    %1223 = vmatprep.subr.mxu0 0.0
    %1224 = vmatpush2.msra.mxu0 0.0
    %1225 = vmatprep.subr.mxu0 0.0
    %1226 = vmatpush2.msra.mxu0 0.0
    %1227 = vmatprep.subr.mxu0 0.0
    %1228 = vmatpush2.msra.mxu0 0.0
    %1229 = vmatprep.subr.mxu0 0.0
    %1230 = vmatpush2.msra.mxu0 0.0
    %1231 = vmatprep.subr.mxu0 0.0
    %1232 = vmatpush2.msra.mxu0 0.0
    %1233 = vmatprep.subr.mxu0 0.0
    %1234 = vmatpush2.msra.mxu0 0.0
    %1235 = vmatprep.subr.mxu0 0.0
    %1236 = vmatpush2.msra.mxu0 0.0
    %1237 = vmatprep.subr.mxu0 0.0
    %1238 = vmatpush2.msra.mxu0 0.0
    %1239 = vmatprep.subr.mxu0 0.0
    %1240 = vmatpush2.msra.mxu0 0.0
    %1241 = vmatprep.subr.mxu0 0.0
    %1242 = vmatpush2.msra.mxu0 0.0
    %1243 = vmatprep.mubr.f32.mxu0 0.0
    %1244 = vmatmul.mubr.f32.gmra.mxu0 %v1156
    %v1245 = vpop.f32.mrf.mxu0
    %v1246 = vadd.f32 0.0, %v1245
    %v1247 = vpop.f32.mrf.mxu0
    %v1248 = vadd.f32 0.0, %v1247
    %1249 = vmatprep.mubr.f32.mxu0 0.0
    %1250 = vmatmul.mubr.f32.gmra.mxu0 %v1159
    %v1251 = vpop.f32.mrf.mxu0
    %v1252 = vadd.f32 0.0, %v1251
    %v1253 = vpop.f32.mrf.mxu0
    %v1254 = vadd.f32 0.0, %v1253
    %1255 = vmatprep.mubr.f32.mxu0 0.0
    %1256 = vmatmul.mubr.f32.gmra.mxu0 %v1162
    %v1257 = vpop.f32.mrf.mxu0
    %v1258 = vadd.f32 0.0, %v1257
    %v1259 = vpop.f32.mrf.mxu0
    %v1260 = vadd.f32 0.0, %v1259
    %1261 = vmatprep.mubr.f32.mxu0 0.0
    %1262 = vmatmul.mubr.f32.gmra.mxu0 %v1165
    %v1263 = vpop.f32.mrf.mxu0
    %v1264 = vadd.f32 0.0, %v1263
    %v1265 = vpop.f32.mrf.mxu0
    %v1266 = vadd.f32 0.0, %v1265
    %1267 = vmatprep.mubr.f32.mxu0 0.0
    %1268 = vmatmul.mubr.f32.gmra.mxu0 %v1168
    %v1269 = vpop.f32.mrf.mxu0
    %v1270 = vadd.f32 0.0, %v1269
    %v1271 = vpop.f32.mrf.mxu0
    %v1272 = vadd.f32 0.0, %v1271
    %1273 = vmatprep.mubr.f32.mxu0 0.0
    %1274 = vmatmul.mubr.f32.gmra.mxu0 %v1171
    %v1275 = vpop.f32.mrf.mxu0
    %v1276 = vadd.f32 0.0, %v1275
    %v1277 = vpop.f32.mrf.mxu0
    %v1278 = vadd.f32 0.0, %v1277
    %1279 = vmatprep.mubr.f32.mxu0 0.0
    %1280 = vmatmul.mubr.f32.gmra.mxu0 %v1174
    %v1281 = vpop.f32.mrf.mxu0
    %v1282 = vadd.f32 0.0, %v1281
    %v1283 = vpop.f32.mrf.mxu0
    %v1284 = vadd.f32 0.0, %v1283
    %1285 = vmatprep.mubr.f32.mxu0 0.0
    %1286 = vmatmul.mubr.f32.gmra.mxu0 %v1177
    %v1287 = vpop.f32.mrf.mxu0
    %v1288 = vadd.f32 0.0, %v1287
    %v1289 = vpop.f32.mrf.mxu0
    %v1290 = vadd.f32 0.0, %v1289
    %1291 = vdwg.mxu0
    %1292 = vmatprep.subr.mxu0 0.0
    %1293 = vmatpush1.msra.mxu0 0.0
    %1294 = vmatprep.subr.mxu0 0.0
    %1295 = vmatpush1.msra.mxu0 0.0
    %1296 = vmatprep.subr.mxu0 0.0
    %1297 = vmatpush1.msra.mxu0 0.0
    %1298 = vmatprep.subr.mxu0 0.0
    %1299 = vmatpush1.msra.mxu0 0.0
    %1300 = vmatprep.subr.mxu0 0.0
    %1301 = vmatpush1.msra.mxu0 0.0
    %1302 = vmatprep.subr.mxu0 0.0
    %1303 = vmatpush1.msra.mxu0 0.0
    %1304 = vmatprep.subr.mxu0 0.0
    %1305 = vmatpush1.msra.mxu0 0.0
    %1306 = vmatprep.subr.mxu0 0.0
    %1307 = vmatpush1.msra.mxu0 0.0
    %1308 = vmatprep.subr.mxu0 %v1154
    %1309 = vmatpush1.msra.mxu0 %v1153
    %1310 = vmatprep.subr.mxu0 %v1150
    %1311 = vmatpush1.msra.mxu0 %v1149
    %1312 = vmatprep.subr.mxu0 %v1146
    %1313 = vmatpush1.msra.mxu0 %v1145
    %1314 = vmatprep.subr.mxu0 %v1142
    %1315 = vmatpush1.msra.mxu0 %v1141
    %1316 = vmatprep.subr.mxu0 %v1138
    %1317 = vmatpush1.msra.mxu0 %v1137
    %1318 = vmatprep.subr.mxu0 %v1134
    %1319 = vmatpush1.msra.mxu0 %v1133
    %1320 = vmatprep.subr.mxu0 %v1130
    %1321 = vmatpush1.msra.mxu0 %v1129
    %1322 = vmatprep.subr.mxu0 %v1126
    %1323 = vmatpush1.msra.mxu0 %v1125
    %1324 = vmatprep.subr.mxu0 0.0
    %1325 = vmatpush2.msra.mxu0 0.0
    %1326 = vmatprep.subr.mxu0 0.0
    %1327 = vmatpush2.msra.mxu0 0.0
    %1328 = vmatprep.subr.mxu0 0.0
    %1329 = vmatpush2.msra.mxu0 0.0
    %1330 = vmatprep.subr.mxu0 0.0
    %1331 = vmatpush2.msra.mxu0 0.0
    %1332 = vmatprep.subr.mxu0 0.0
    %1333 = vmatpush2.msra.mxu0 0.0
    %1334 = vmatprep.subr.mxu0 0.0
    %1335 = vmatpush2.msra.mxu0 0.0
    %1336 = vmatprep.subr.mxu0 0.0
    %1337 = vmatpush2.msra.mxu0 0.0
    %1338 = vmatprep.subr.mxu0 0.0
    %1339 = vmatpush2.msra.mxu0 0.0
    %1340 = vmatprep.subr.mxu0 0.0
    %1341 = vmatpush2.msra.mxu0 0.0
    %1342 = vmatprep.subr.mxu0 0.0
    %1343 = vmatpush2.msra.mxu0 0.0
    %1344 = vmatprep.subr.mxu0 0.0
    %1345 = vmatpush2.msra.mxu0 0.0
    %1346 = vmatprep.subr.mxu0 0.0
    %1347 = vmatpush2.msra.mxu0 0.0
    %1348 = vmatprep.subr.mxu0 0.0
    %1349 = vmatpush2.msra.mxu0 0.0
    %1350 = vmatprep.subr.mxu0 0.0
    %1351 = vmatpush2.msra.mxu0 0.0
    %1352 = vmatprep.subr.mxu0 0.0
    %1353 = vmatpush2.msra.mxu0 0.0
    %1354 = vmatprep.subr.mxu0 0.0
    %1355 = vmatpush2.msra.mxu0 0.0
    %1356 = vmatprep.mubr.f32.mxu0 0.0
    %1357 = vmatmul.mubr.f32.gmra.mxu0 %v1156
    %v1358 = vpop.f32.mrf.mxu0
    %v1359 = vadd.f32 0.0, %v1358
    %v1360 = vpop.f32.mrf.mxu0
    %v1361 = vadd.f32 0.0, %v1360
    %1362 = vmatprep.mubr.f32.mxu0 0.0
    %1363 = vmatmul.mubr.f32.gmra.mxu0 %v1159
    %v1364 = vpop.f32.mrf.mxu0
    %v1365 = vadd.f32 0.0, %v1364
    %v1366 = vpop.f32.mrf.mxu0
    %v1367 = vadd.f32 0.0, %v1366
    %1368 = vmatprep.mubr.f32.mxu0 0.0
    %1369 = vmatmul.mubr.f32.gmra.mxu0 %v1162
    %v1370 = vpop.f32.mrf.mxu0
    %v1371 = vadd.f32 0.0, %v1370
    %v1372 = vpop.f32.mrf.mxu0
    %v1373 = vadd.f32 0.0, %v1372
    %1374 = vmatprep.mubr.f32.mxu0 0.0
    %1375 = vmatmul.mubr.f32.gmra.mxu0 %v1165
    %v1376 = vpop.f32.mrf.mxu0
    %v1377 = vadd.f32 0.0, %v1376
    %v1378 = vpop.f32.mrf.mxu0
    %v1379 = vadd.f32 0.0, %v1378
    %1380 = vmatprep.mubr.f32.mxu0 0.0
    %1381 = vmatmul.mubr.f32.gmra.mxu0 %v1168
    %v1382 = vpop.f32.mrf.mxu0
    %v1383 = vadd.f32 0.0, %v1382
    %v1384 = vpop.f32.mrf.mxu0
    %v1385 = vadd.f32 0.0, %v1384
    %1386 = vmatprep.mubr.f32.mxu0 0.0
    %1387 = vmatmul.mubr.f32.gmra.mxu0 %v1171
    %v1388 = vpop.f32.mrf.mxu0
    %v1389 = vadd.f32 0.0, %v1388
    %v1390 = vpop.f32.mrf.mxu0
    %v1391 = vadd.f32 0.0, %v1390
    %1392 = vmatprep.mubr.f32.mxu0 0.0
    %1393 = vmatmul.mubr.f32.gmra.mxu0 %v1174
    %v1394 = vpop.f32.mrf.mxu0
    %v1395 = vadd.f32 0.0, %v1394
    %v1396 = vpop.f32.mrf.mxu0
    %v1397 = vadd.f32 0.0, %v1396
    %1398 = vmatprep.mubr.f32.mxu0 0.0
    %1399 = vmatmul.mubr.f32.gmra.mxu0 %v1177
    %v1400 = vpop.f32.mrf.mxu0
    %v1401 = vadd.f32 0.0, %v1400
    %v1402 = vpop.f32.mrf.mxu0
    %v1403 = vadd.f32 0.0, %v1402
    %1404 = vdwg.mxu0
    %v1405 = vadd.f32 %v976, %v1246
    %v1406 = vadd.f32 %v977, %v1248
    %v1407 = vadd.f32 %v978, %v1359
    %v1408 = vadd.f32 %v979, %v1361
    %v1409 = vadd.f32 %v980, %v1252
    %v1410 = vadd.f32 %v981, %v1254
    %v1411 = vadd.f32 %v982, %v1365
    %v1412 = vadd.f32 %v983, %v1367
    %v1413 = vadd.f32 %v984, %v1258
    %v1414 = vadd.f32 %v985, %v1260
    %v1415 = vadd.f32 %v986, %v1371
    %v1416 = vadd.f32 %v987, %v1373
    %v1417 = vadd.f32 %v988, %v1264
    %v1418 = vadd.f32 %v989, %v1266
    %v1419 = vadd.f32 %v990, %v1377
    %v1420 = vadd.f32 %v991, %v1379
    %v1421 = vadd.f32 %v992, %v1270
    %v1422 = vadd.f32 %v993, %v1272
    %v1423 = vadd.f32 %v994, %v1383
    %v1424 = vadd.f32 %v995, %v1385
    %v1425 = vadd.f32 %v996, %v1276
    %v1426 = vadd.f32 %v997, %v1278
    %v1427 = vadd.f32 %v998, %v1389
    %v1428 = vadd.f32 %v999, %v1391
    %v1429 = vadd.f32 %v1000, %v1282
    %v1430 = vadd.f32 %v1001, %v1284
    %v1431 = vadd.f32 %v1002, %v1395
    %v1432 = vadd.f32 %v1003, %v1397
    %v1433 = vadd.f32 %v1004, %v1288
    %v1434 = vadd.f32 %v1005, %v1290
    %v1435 = vadd.f32 %v1006, %v1401
    %v1436 = vadd.f32 %v1007, %v1403
    %v1437 = vmax.f32 %v1405, 0.0
    %v1438 = vmax.f32 %v1406, 0.0
    %v1439 = vmax.f32 %v1407, 0.0
    %v1440 = vmax.f32 %v1408, 0.0
    %v1441 = vmax.f32 %v1409, 0.0
    %v1442 = vmax.f32 %v1410, 0.0
    %v1443 = vmax.f32 %v1411, 0.0
    %v1444 = vmax.f32 %v1412, 0.0
    %v1445 = vmax.f32 %v1413, 0.0
    %v1446 = vmax.f32 %v1414, 0.0
    %v1447 = vmax.f32 %v1415, 0.0
    %v1448 = vmax.f32 %v1416, 0.0
    %v1449 = vmax.f32 %v1417, 0.0
    %v1450 = vmax.f32 %v1418, 0.0
    %v1451 = vmax.f32 %v1419, 0.0
    %v1452 = vmax.f32 %v1420, 0.0
    %v1453 = vmax.f32 %v1421, 0.0
    %v1454 = vmax.f32 %v1422, 0.0
    %v1455 = vmax.f32 %v1423, 0.0
    %v1456 = vmax.f32 %v1424, 0.0
    %v1457 = vmax.f32 %v1425, 0.0
    %v1458 = vmax.f32 %v1426, 0.0
    %v1459 = vmax.f32 %v1427, 0.0
    %v1460 = vmax.f32 %v1428, 0.0
    %v1461 = vmax.f32 %v1429, 0.0
    %v1462 = vmax.f32 %v1430, 0.0
    %v1463 = vmax.f32 %v1431, 0.0
    %v1464 = vmax.f32 %v1432, 0.0
    %v1465 = vmax.f32 %v1433, 0.0
    %v1466 = vmax.f32 %v1434, 0.0
    %v1467 = vmax.f32 %v1435, 0.0
    %v1468 = vmax.f32 %v1436, 0.0
    %v1469 = vmax.f32 %v1437, %v1453
    %v1470 = vmax.f32 %v1438, %v1454
    %v1471 = vmax.f32 %v1439, %v1455
    %v1472 = vmax.f32 %v1440, %v1456
    %v1473 = vmax.f32 %v1441, %v1457
    %v1474 = vmax.f32 %v1442, %v1458
    %v1475 = vmax.f32 %v1443, %v1459
    %v1476 = vmax.f32 %v1444, %v1460
    %v1477 = vmax.f32 %v1445, %v1461
    %v1478 = vmax.f32 %v1446, %v1462
    %v1479 = vmax.f32 %v1447, %v1463
    %v1480 = vmax.f32 %v1448, %v1464
    %v1481 = vmax.f32 %v1449, %v1465
    %v1482 = vmax.f32 %v1450, %v1466
    %v1483 = vmax.f32 %v1451, %v1467
    %v1484 = vmax.f32 %v1452, %v1468
    %v1485 = vmax.f32 %v1469, %v1471
    %v1486 = vmax.f32 %v1470, %v1472
    %v1487 = vmax.f32 %v1473, %v1475
    %v1488 = vmax.f32 %v1474, %v1476
    %v1489 = vmax.f32 %v1477, %v1479
    %v1490 = vmax.f32 %v1478, %v1480
    %v1491 = vmax.f32 %v1481, %v1483
    %v1492 = vmax.f32 %v1482, %v1484
    %v1493 = vld [vmem:[%s6] sm:$0x3]
    %v1494 = vld [vmem:[#allocation7] sm:$0xff]
    %v1495 = vld [vmem:[#allocation7 + $0x8] sm:$0xff]
    %vm1496 = vcmask 261120
    %v1498 = vsel %vm1496, %v1494, 0
    %v1501 = vsel %vm1496, %v1495, 0
    %1503 = vmatprep.subr.mxu0 0.0
    %1504 = vmatpush1.msra.mxu0 0.0
    %1505 = vmatprep.subr.mxu0 0.0
    %1506 = vmatpush1.msra.mxu0 0.0
    %1507 = vmatprep.subr.mxu0 0.0
    %1508 = vmatpush1.msra.mxu0 0.0
    %1509 = vmatprep.subr.mxu0 0.0
    %1510 = vmatpush1.msra.mxu0 0.0
    %1511 = vmatprep.subr.mxu0 0.0
    %1512 = vmatpush1.msra.mxu0 0.0
    %1513 = vmatprep.subr.mxu0 0.0
    %1514 = vmatpush1.msra.mxu0 0.0
    %1515 = vmatprep.subr.mxu0 0.0
    %1516 = vmatpush1.msra.mxu0 0.0
    %1517 = vmatprep.subr.mxu0 0.0
    %1518 = vmatpush1.msra.mxu0 0.0
    %1519 = vmatprep.subr.mxu0 0.0
    %1520 = vmatpush1.msra.mxu0 0.0
    %1521 = vmatprep.subr.mxu0 0.0
    %1522 = vmatpush1.msra.mxu0 0.0
    %1523 = vmatprep.subr.mxu0 0.0
    %1524 = vmatpush1.msra.mxu0 0.0
    %1525 = vmatprep.subr.mxu0 0.0
    %1526 = vmatpush1.msra.mxu0 0.0
    %1527 = vmatprep.subr.mxu0 %v1492
    %1528 = vmatpush1.msra.mxu0 %v1491
    %1529 = vmatprep.subr.mxu0 %v1490
    %1530 = vmatpush1.msra.mxu0 %v1489
    %1531 = vmatprep.subr.mxu0 %v1488
    %1532 = vmatpush1.msra.mxu0 %v1487
    %1533 = vmatprep.subr.mxu0 %v1486
    %1534 = vmatpush1.msra.mxu0 %v1485
    %1535 = vmatprep.subr.mxu0 0.0
    %1536 = vmatpush2.msra.mxu0 0.0
    %1537 = vmatprep.subr.mxu0 0.0
    %1538 = vmatpush2.msra.mxu0 0.0
    %1539 = vmatprep.subr.mxu0 0.0
    %1540 = vmatpush2.msra.mxu0 0.0
    %1541 = vmatprep.subr.mxu0 0.0
    %1542 = vmatpush2.msra.mxu0 0.0
    %1543 = vmatprep.subr.mxu0 0.0
    %1544 = vmatpush2.msra.mxu0 0.0
    %1545 = vmatprep.subr.mxu0 0.0
    %1546 = vmatpush2.msra.mxu0 0.0
    %1547 = vmatprep.subr.mxu0 0.0
    %1548 = vmatpush2.msra.mxu0 0.0
    %1549 = vmatprep.subr.mxu0 0.0
    %1550 = vmatpush2.msra.mxu0 0.0
    %1551 = vmatprep.subr.mxu0 0.0
    %1552 = vmatpush2.msra.mxu0 0.0
    %1553 = vmatprep.subr.mxu0 0.0
    %1554 = vmatpush2.msra.mxu0 0.0
    %1555 = vmatprep.subr.mxu0 0.0
    %1556 = vmatpush2.msra.mxu0 0.0
    %1557 = vmatprep.subr.mxu0 0.0
    %1558 = vmatpush2.msra.mxu0 0.0
    %1559 = vmatprep.subr.mxu0 0.0
    %1560 = vmatpush2.msra.mxu0 0.0
    %1561 = vmatprep.subr.mxu0 0.0
    %1562 = vmatpush2.msra.mxu0 0.0
    %1563 = vmatprep.subr.mxu0 0.0
    %1564 = vmatpush2.msra.mxu0 0.0
    %1565 = vmatprep.subr.mxu0 0.0
    %1566 = vmatpush2.msra.mxu0 0.0
    %1567 = vmatprep.mubr.f32.mxu0 0.0
    %1568 = vmatmul.mubr.f32.gmra.mxu0 %v1498
    %v1569 = vpop.f32.mrf.mxu0
    %v1570 = vadd.f32 0.0, %v1569
    %v1571 = vpop.f32.mrf.mxu0
    %v1572 = vadd.f32 0.0, %v1571
    %1573 = vmatprep.mubr.f32.mxu0 0.0
    %1574 = vmatmul.mubr.f32.gmra.mxu0 %v1501
    %v1575 = vpop.f32.mrf.mxu0
    %v1576 = vadd.f32 0.0, %v1575
    %v1577 = vpop.f32.mrf.mxu0
    %v1578 = vadd.f32 0.0, %v1577
    %1579 = vdwg.mxu0
    %v1580 = vld [vmem:[#allocation8] sm:$0xff]
    %v1581 = vld [vmem:[#allocation8 + $0x8] sm:$0xff]
    %v1582 = vld [vmem:[#allocation8 + $0x10] sm:$0xff]
    %v1583 = vld [vmem:[#allocation8 + $0x18] sm:$0xff]
    %v1584 = vld [vmem:[#allocation8 + $0x20] sm:$0xff]
    %v1585 = vld [vmem:[#allocation8 + $0x28] sm:$0xff]
    %v1586 = vld [vmem:[#allocation8 + $0x30] sm:$0xff]
    %v1587 = vld [vmem:[#allocation8 + $0x38] sm:$0xff]
    %v1588 = vld [vmem:[#allocation8 + $0x40] sm:$0xff]
    %v1589 = vld [vmem:[#allocation8 + $0x48] sm:$0xff]
    %v1590 = vld [vmem:[#allocation8 + $0x50] sm:$0xff]
    %v1591 = vld [vmem:[#allocation8 + $0x58] sm:$0xff]
    %v1592 = vld [vmem:[#allocation8 + $0x60] sm:$0xff]
    %v1593 = vld [vmem:[#allocation8 + $0x68] sm:$0xff]
    %v1594 = vld [vmem:[#allocation8 + $0x70] sm:$0xff]
    %v1595 = vld [vmem:[#allocation8 + $0x78] sm:$0xff]
    %v1596 = vld [vmem:[#allocation8 + $0x80] sm:$0xff]
    %v1597 = vld [vmem:[#allocation8 + $0x88] sm:$0xff]
    %v1598 = vld [vmem:[#allocation8 + $0x90] sm:$0xff]
    %v1599 = vld [vmem:[#allocation8 + $0x98] sm:$0xff]
    %v1600 = vld [vmem:[#allocation8 + $0xa0] sm:$0xff]
    %v1601 = vld [vmem:[#allocation8 + $0xa8] sm:$0xff]
    %v1602 = vld [vmem:[#allocation8 + $0xb0] sm:$0xff]
    %v1603 = vld [vmem:[#allocation8 + $0xb8] sm:$0xff]
    %v1604 = vld [vmem:[#allocation8 + $0xc0] sm:$0xff]
    %v1605 = vld [vmem:[#allocation8 + $0xc8] sm:$0xff]
    %v1606 = vld [vmem:[#allocation8 + $0xd0] sm:$0xff]
    %v1607 = vld [vmem:[#allocation8 + $0xd8] sm:$0xff]
    %v1608 = vld [vmem:[#allocation8 + $0xe0] sm:$0xff]
    %v1609 = vld [vmem:[#allocation8 + $0xe8] sm:$0xff]
    %v1610 = vld [vmem:[#allocation8 + $0xf0] sm:$0xff]
    %v1611 = vld [vmem:[#allocation8 + $0xf8] sm:$0xff]
    %v1612 = vld [vmem:[#allocation8 + $0x100] sm:$0xff]
    %v1613 = vld [vmem:[#allocation8 + $0x108] sm:$0xff]
    %v1614 = vld [vmem:[#allocation8 + $0x110] sm:$0xff]
    %v1615 = vld [vmem:[#allocation8 + $0x118] sm:$0xff]
    %v1616 = vld [vmem:[#allocation8 + $0x120] sm:$0xff]
    %v1617 = vld [vmem:[#allocation8 + $0x128] sm:$0xff]
    %v1618 = vld [vmem:[#allocation8 + $0x130] sm:$0xff]
    %v1619 = vld [vmem:[#allocation8 + $0x138] sm:$0xff]
    %v1620 = vld [vmem:[#allocation8 + $0x140] sm:$0xff]
    %v1621 = vld [vmem:[#allocation8 + $0x148] sm:$0xff]
    %v1622 = vld [vmem:[#allocation8 + $0x150] sm:$0xff]
    %v1623 = vld [vmem:[#allocation8 + $0x158] sm:$0xff]
    %v1624 = vld [vmem:[#allocation8 + $0x160] sm:$0xff]
    %v1625 = vld [vmem:[#allocation8 + $0x168] sm:$0xff]
    %v1626 = vld [vmem:[#allocation8 + $0x170] sm:$0xff]
    %v1627 = vld [vmem:[#allocation8 + $0x178] sm:$0xff]
    %v1628 = vld [vmem:[#allocation8 + $0x180] sm:$0xff]
    %v1629 = vld [vmem:[#allocation8 + $0x188] sm:$0xff]
    %v1630 = vld [vmem:[#allocation8 + $0x190] sm:$0xff]
    %v1631 = vld [vmem:[#allocation8 + $0x198] sm:$0xff]
    %v1632 = vld [vmem:[#allocation8 + $0x1a0] sm:$0xff]
    %v1633 = vld [vmem:[#allocation8 + $0x1a8] sm:$0xff]
    %v1634 = vld [vmem:[#allocation8 + $0x1b0] sm:$0xff]
    %v1635 = vld [vmem:[#allocation8 + $0x1b8] sm:$0xff]
    %v1636 = vld [vmem:[#allocation8 + $0x1c0] sm:$0xff]
    %v1637 = vld [vmem:[#allocation8 + $0x1c8] sm:$0xff]
    %v1638 = vld [vmem:[#allocation8 + $0x1d0] sm:$0xff]
    %v1639 = vld [vmem:[#allocation8 + $0x1d8] sm:$0xff]
    %v1640 = vld [vmem:[#allocation8 + $0x1e0] sm:$0xff]
    %v1641 = vld [vmem:[#allocation8 + $0x1e8] sm:$0xff]
    %v1642 = vld [vmem:[#allocation8 + $0x1f0] sm:$0xff]
    %v1643 = vld [vmem:[#allocation8 + $0x1f8] sm:$0xff]
    %1644 = vmatprep.subr.mxu0 %v1611
    %1645 = vmatpush1.msra.mxu0 %v1610
    %1646 = vmatprep.subr.mxu0 %v1609
    %1647 = vmatpush1.msra.mxu0 %v1608
    %1648 = vmatprep.subr.mxu0 %v1607
    %1649 = vmatpush1.msra.mxu0 %v1606
    %1650 = vmatprep.subr.mxu0 %v1605
    %1651 = vmatpush1.msra.mxu0 %v1604
    %1652 = vmatprep.subr.mxu0 %v1603
    %1653 = vmatpush1.msra.mxu0 %v1602
    %1654 = vmatprep.subr.mxu0 %v1601
    %1655 = vmatpush1.msra.mxu0 %v1600
    %1656 = vmatprep.subr.mxu0 %v1599
    %1657 = vmatpush1.msra.mxu0 %v1598
    %1658 = vmatprep.subr.mxu0 %v1597
    %1659 = vmatpush1.msra.mxu0 %v1596
    %1660 = vmatprep.subr.mxu0 %v1595
    %1661 = vmatpush1.msra.mxu0 %v1594
    %1662 = vmatprep.subr.mxu0 %v1593
    %1663 = vmatpush1.msra.mxu0 %v1592
    %1664 = vmatprep.subr.mxu0 %v1591
    %1665 = vmatpush1.msra.mxu0 %v1590
    %1666 = vmatprep.subr.mxu0 %v1589
    %1667 = vmatpush1.msra.mxu0 %v1588
    %1668 = vmatprep.subr.mxu0 %v1587
    %1669 = vmatpush1.msra.mxu0 %v1586
    %1670 = vmatprep.subr.mxu0 %v1585
    %1671 = vmatpush1.msra.mxu0 %v1584
    %1672 = vmatprep.subr.mxu0 %v1583
    %1673 = vmatpush1.msra.mxu0 %v1582
    %1674 = vmatprep.subr.mxu0 %v1581
    %1675 = vmatpush1.msra.mxu0 %v1580
    %1676 = vmatprep.subr.mxu0 %v1643
    %1677 = vmatpush2.msra.mxu0 %v1642
    %1678 = vmatprep.subr.mxu0 %v1641
    %1679 = vmatpush2.msra.mxu0 %v1640
    %1680 = vmatprep.subr.mxu0 %v1639
    %1681 = vmatpush2.msra.mxu0 %v1638
    %1682 = vmatprep.subr.mxu0 %v1637
    %1683 = vmatpush2.msra.mxu0 %v1636
    %1684 = vmatprep.subr.mxu0 %v1635
    %1685 = vmatpush2.msra.mxu0 %v1634
    %1686 = vmatprep.subr.mxu0 %v1633
    %1687 = vmatpush2.msra.mxu0 %v1632
    %1688 = vmatprep.subr.mxu0 %v1631
    %1689 = vmatpush2.msra.mxu0 %v1630
    %1690 = vmatprep.subr.mxu0 %v1629
    %1691 = vmatpush2.msra.mxu0 %v1628
    %1692 = vmatprep.subr.mxu0 %v1627
    %1693 = vmatpush2.msra.mxu0 %v1626
    %1694 = vmatprep.subr.mxu0 %v1625
    %1695 = vmatpush2.msra.mxu0 %v1624
    %1696 = vmatprep.subr.mxu0 %v1623
    %1697 = vmatpush2.msra.mxu0 %v1622
    %1698 = vmatprep.subr.mxu0 %v1621
    %1699 = vmatpush2.msra.mxu0 %v1620
    %1700 = vmatprep.subr.mxu0 %v1619
    %1701 = vmatpush2.msra.mxu0 %v1618
    %1702 = vmatprep.subr.mxu0 %v1617
    %1703 = vmatpush2.msra.mxu0 %v1616
    %1704 = vmatprep.subr.mxu0 %v1615
    %1705 = vmatpush2.msra.mxu0 %v1614
    %1706 = vmatprep.subr.mxu0 %v1613
    %1707 = vmatpush2.msra.mxu0 %v1612
    %1708 = vmatprep.mubr.f32.mxu0 %v1572
    %1709 = vmatmul.mubr.f32.gmra.mxu0 %v1570
    %v1710 = vpop.f32.mrf.mxu0
    %v1711 = vadd.f32 0.0, %v1710
    %v1712 = vpop.f32.mrf.mxu0
    %v1713 = vadd.f32 0.0, %v1712
    %1714 = vmatprep.mubr.f32.mxu0 %v1578
    %1715 = vmatmul.mubr.f32.gmra.mxu0 %v1576
    %v1716 = vpop.f32.mrf.mxu0
    %v1717 = vadd.f32 0.0, %v1716
    %v1718 = vpop.f32.mrf.mxu0
    %v1719 = vadd.f32 0.0, %v1718
    %1720 = vdwg.mxu0
    %v1722 = vlaneseq
    %v1723 = vshrl.u32 %v1722, 7
    %v1724 = vsub.s32 0, %v1723
    %v1725 = vrot.slane %v1493, %v1724
    %v1726 = vlaneseq
    %v1727 = vshrl.u32 %v1726, 7
    %v1728 = vsub.s32 1, %v1727
    %v1729 = vrot.slane %v1493, %v1728
    %v1732 = vadd.f32 %v1725, %v1711
    %v1733 = vadd.f32 %v1729, %v1713
    %v1734 = vadd.f32 %v1725, %v1717
    %v1735 = vadd.f32 %v1729, %v1719
    %s1736 = scalar_lea.vmem [#allocation7], 16
    %v1737 = vld [vmem:[%s1736] sm:$0xff]
    %v1738 = vld [vmem:[%s1736 + $0x8] sm:$0xff]
    %v1740 = vsel %vm1496, %v1737, 0
    %v1743 = vsel %vm1496, %v1738, 0
    %1745 = vmatprep.subr.mxu0 0.0
    %1746 = vmatpush1.msra.mxu0 0.0
    %1747 = vmatprep.subr.mxu0 0.0
    %1748 = vmatpush1.msra.mxu0 0.0
    %1749 = vmatprep.subr.mxu0 0.0
    %1750 = vmatpush1.msra.mxu0 0.0
    %1751 = vmatprep.subr.mxu0 0.0
    %1752 = vmatpush1.msra.mxu0 0.0
    %1753 = vmatprep.subr.mxu0 0.0
    %1754 = vmatpush1.msra.mxu0 0.0
    %1755 = vmatprep.subr.mxu0 0.0
    %1756 = vmatpush1.msra.mxu0 0.0
    %1757 = vmatprep.subr.mxu0 0.0
    %1758 = vmatpush1.msra.mxu0 0.0
    %1759 = vmatprep.subr.mxu0 0.0
    %1760 = vmatpush1.msra.mxu0 0.0
    %1761 = vmatprep.subr.mxu0 0.0
    %1762 = vmatpush1.msra.mxu0 0.0
    %1763 = vmatprep.subr.mxu0 0.0
    %1764 = vmatpush1.msra.mxu0 0.0
    %1765 = vmatprep.subr.mxu0 0.0
    %1766 = vmatpush1.msra.mxu0 0.0
    %1767 = vmatprep.subr.mxu0 0.0
    %1768 = vmatpush1.msra.mxu0 0.0
    %1769 = vmatprep.subr.mxu0 %v1492
    %1770 = vmatpush1.msra.mxu0 %v1491
    %1771 = vmatprep.subr.mxu0 %v1490
    %1772 = vmatpush1.msra.mxu0 %v1489
    %1773 = vmatprep.subr.mxu0 %v1488
    %1774 = vmatpush1.msra.mxu0 %v1487
    %1775 = vmatprep.subr.mxu0 %v1486
    %1776 = vmatpush1.msra.mxu0 %v1485
    %1777 = vmatprep.subr.mxu0 0.0
    %1778 = vmatpush2.msra.mxu0 0.0
    %1779 = vmatprep.subr.mxu0 0.0
    %1780 = vmatpush2.msra.mxu0 0.0
    %1781 = vmatprep.subr.mxu0 0.0
    %1782 = vmatpush2.msra.mxu0 0.0
    %1783 = vmatprep.subr.mxu0 0.0
    %1784 = vmatpush2.msra.mxu0 0.0
    %1785 = vmatprep.subr.mxu0 0.0
    %1786 = vmatpush2.msra.mxu0 0.0
    %1787 = vmatprep.subr.mxu0 0.0
    %1788 = vmatpush2.msra.mxu0 0.0
    %1789 = vmatprep.subr.mxu0 0.0
    %1790 = vmatpush2.msra.mxu0 0.0
    %1791 = vmatprep.subr.mxu0 0.0
    %1792 = vmatpush2.msra.mxu0 0.0
    %1793 = vmatprep.subr.mxu0 0.0
    %1794 = vmatpush2.msra.mxu0 0.0
    %1795 = vmatprep.subr.mxu0 0.0
    %1796 = vmatpush2.msra.mxu0 0.0
    %1797 = vmatprep.subr.mxu0 0.0
    %1798 = vmatpush2.msra.mxu0 0.0
    %1799 = vmatprep.subr.mxu0 0.0
    %1800 = vmatpush2.msra.mxu0 0.0
    %1801 = vmatprep.subr.mxu0 0.0
    %1802 = vmatpush2.msra.mxu0 0.0
    %1803 = vmatprep.subr.mxu0 0.0
    %1804 = vmatpush2.msra.mxu0 0.0
    %1805 = vmatprep.subr.mxu0 0.0
    %1806 = vmatpush2.msra.mxu0 0.0
    %1807 = vmatprep.subr.mxu0 0.0
    %1808 = vmatpush2.msra.mxu0 0.0
    %1809 = vmatprep.mubr.f32.mxu0 0.0
    %1810 = vmatmul.mubr.f32.gmra.mxu0 %v1740
    %v1811 = vpop.f32.mrf.mxu0
    %v1812 = vadd.f32 0.0, %v1811
    %v1813 = vpop.f32.mrf.mxu0
    %v1814 = vadd.f32 0.0, %v1813
    %1815 = vmatprep.mubr.f32.mxu0 0.0
    %1816 = vmatmul.mubr.f32.gmra.mxu0 %v1743
    %v1817 = vpop.f32.mrf.mxu0
    %v1818 = vadd.f32 0.0, %v1817
    %v1819 = vpop.f32.mrf.mxu0
    %v1820 = vadd.f32 0.0, %v1819
    %1821 = vdwg.mxu0
    %s1822 = scalar_lea.vmem [#allocation8], 512
    %v1823 = vld [vmem:[%s1822] sm:$0xff]
    %v1824 = vld [vmem:[%s1822 + $0x8] sm:$0xff]
    %v1825 = vld [vmem:[%s1822 + $0x10] sm:$0xff]
    %v1826 = vld [vmem:[%s1822 + $0x18] sm:$0xff]
    %v1827 = vld [vmem:[%s1822 + $0x20] sm:$0xff]
    %v1828 = vld [vmem:[%s1822 + $0x28] sm:$0xff]
    %v1829 = vld [vmem:[%s1822 + $0x30] sm:$0xff]
    %v1830 = vld [vmem:[%s1822 + $0x38] sm:$0xff]
    %v1831 = vld [vmem:[%s1822 + $0x40] sm:$0xff]
    %v1832 = vld [vmem:[%s1822 + $0x48] sm:$0xff]
    %v1833 = vld [vmem:[%s1822 + $0x50] sm:$0xff]
    %v1834 = vld [vmem:[%s1822 + $0x58] sm:$0xff]
    %v1835 = vld [vmem:[%s1822 + $0x60] sm:$0xff]
    %v1836 = vld [vmem:[%s1822 + $0x68] sm:$0xff]
    %v1837 = vld [vmem:[%s1822 + $0x70] sm:$0xff]
    %v1838 = vld [vmem:[%s1822 + $0x78] sm:$0xff]
    %v1839 = vld [vmem:[%s1822 + $0x80] sm:$0xff]
    %v1840 = vld [vmem:[%s1822 + $0x88] sm:$0xff]
    %v1841 = vld [vmem:[%s1822 + $0x90] sm:$0xff]
    %v1842 = vld [vmem:[%s1822 + $0x98] sm:$0xff]
    %v1843 = vld [vmem:[%s1822 + $0xa0] sm:$0xff]
    %v1844 = vld [vmem:[%s1822 + $0xa8] sm:$0xff]
    %v1845 = vld [vmem:[%s1822 + $0xb0] sm:$0xff]
    %v1846 = vld [vmem:[%s1822 + $0xb8] sm:$0xff]
    %v1847 = vld [vmem:[%s1822 + $0xc0] sm:$0xff]
    %v1848 = vld [vmem:[%s1822 + $0xc8] sm:$0xff]
    %v1849 = vld [vmem:[%s1822 + $0xd0] sm:$0xff]
    %v1850 = vld [vmem:[%s1822 + $0xd8] sm:$0xff]
    %v1851 = vld [vmem:[%s1822 + $0xe0] sm:$0xff]
    %v1852 = vld [vmem:[%s1822 + $0xe8] sm:$0xff]
    %v1853 = vld [vmem:[%s1822 + $0xf0] sm:$0xff]
    %v1854 = vld [vmem:[%s1822 + $0xf8] sm:$0xff]
    %v1855 = vld [vmem:[%s1822 + $0x100] sm:$0xff]
    %v1856 = vld [vmem:[%s1822 + $0x108] sm:$0xff]
    %v1857 = vld [vmem:[%s1822 + $0x110] sm:$0xff]
    %v1858 = vld [vmem:[%s1822 + $0x118] sm:$0xff]
    %v1859 = vld [vmem:[%s1822 + $0x120] sm:$0xff]
    %v1860 = vld [vmem:[%s1822 + $0x128] sm:$0xff]
    %v1861 = vld [vmem:[%s1822 + $0x130] sm:$0xff]
    %v1862 = vld [vmem:[%s1822 + $0x138] sm:$0xff]
    %v1863 = vld [vmem:[%s1822 + $0x140] sm:$0xff]
    %v1864 = vld [vmem:[%s1822 + $0x148] sm:$0xff]
    %v1865 = vld [vmem:[%s1822 + $0x150] sm:$0xff]
    %v1866 = vld [vmem:[%s1822 + $0x158] sm:$0xff]
    %v1867 = vld [vmem:[%s1822 + $0x160] sm:$0xff]
    %v1868 = vld [vmem:[%s1822 + $0x168] sm:$0xff]
    %v1869 = vld [vmem:[%s1822 + $0x170] sm:$0xff]
    %v1870 = vld [vmem:[%s1822 + $0x178] sm:$0xff]
    %v1871 = vld [vmem:[%s1822 + $0x180] sm:$0xff]
    %v1872 = vld [vmem:[%s1822 + $0x188] sm:$0xff]
    %v1873 = vld [vmem:[%s1822 + $0x190] sm:$0xff]
    %v1874 = vld [vmem:[%s1822 + $0x198] sm:$0xff]
    %v1875 = vld [vmem:[%s1822 + $0x1a0] sm:$0xff]
    %v1876 = vld [vmem:[%s1822 + $0x1a8] sm:$0xff]
    %v1877 = vld [vmem:[%s1822 + $0x1b0] sm:$0xff]
    %v1878 = vld [vmem:[%s1822 + $0x1b8] sm:$0xff]
    %v1879 = vld [vmem:[%s1822 + $0x1c0] sm:$0xff]
    %v1880 = vld [vmem:[%s1822 + $0x1c8] sm:$0xff]
    %v1881 = vld [vmem:[%s1822 + $0x1d0] sm:$0xff]
    %v1882 = vld [vmem:[%s1822 + $0x1d8] sm:$0xff]
    %v1883 = vld [vmem:[%s1822 + $0x1e0] sm:$0xff]
    %v1884 = vld [vmem:[%s1822 + $0x1e8] sm:$0xff]
    %v1885 = vld [vmem:[%s1822 + $0x1f0] sm:$0xff]
    %v1886 = vld [vmem:[%s1822 + $0x1f8] sm:$0xff]
    %1887 = vmatprep.subr.mxu0 %v1854
    %1888 = vmatpush1.msra.mxu0 %v1853
    %1889 = vmatprep.subr.mxu0 %v1852
    %1890 = vmatpush1.msra.mxu0 %v1851
    %1891 = vmatprep.subr.mxu0 %v1850
    %1892 = vmatpush1.msra.mxu0 %v1849
    %1893 = vmatprep.subr.mxu0 %v1848
    %1894 = vmatpush1.msra.mxu0 %v1847
    %1895 = vmatprep.subr.mxu0 %v1846
    %1896 = vmatpush1.msra.mxu0 %v1845
    %1897 = vmatprep.subr.mxu0 %v1844
    %1898 = vmatpush1.msra.mxu0 %v1843
    %1899 = vmatprep.subr.mxu0 %v1842
    %1900 = vmatpush1.msra.mxu0 %v1841
    %1901 = vmatprep.subr.mxu0 %v1840
    %1902 = vmatpush1.msra.mxu0 %v1839
    %1903 = vmatprep.subr.mxu0 %v1838
    %1904 = vmatpush1.msra.mxu0 %v1837
    %1905 = vmatprep.subr.mxu0 %v1836
    %1906 = vmatpush1.msra.mxu0 %v1835
    %1907 = vmatprep.subr.mxu0 %v1834
    %1908 = vmatpush1.msra.mxu0 %v1833
    %1909 = vmatprep.subr.mxu0 %v1832
    %1910 = vmatpush1.msra.mxu0 %v1831
    %1911 = vmatprep.subr.mxu0 %v1830
    %1912 = vmatpush1.msra.mxu0 %v1829
    %1913 = vmatprep.subr.mxu0 %v1828
    %1914 = vmatpush1.msra.mxu0 %v1827
    %1915 = vmatprep.subr.mxu0 %v1826
    %1916 = vmatpush1.msra.mxu0 %v1825
    %1917 = vmatprep.subr.mxu0 %v1824
    %1918 = vmatpush1.msra.mxu0 %v1823
    %1919 = vmatprep.subr.mxu0 %v1886
    %1920 = vmatpush2.msra.mxu0 %v1885
    %1921 = vmatprep.subr.mxu0 %v1884
    %1922 = vmatpush2.msra.mxu0 %v1883
    %1923 = vmatprep.subr.mxu0 %v1882
    %1924 = vmatpush2.msra.mxu0 %v1881
    %1925 = vmatprep.subr.mxu0 %v1880
    %1926 = vmatpush2.msra.mxu0 %v1879
    %1927 = vmatprep.subr.mxu0 %v1878
    %1928 = vmatpush2.msra.mxu0 %v1877
    %1929 = vmatprep.subr.mxu0 %v1876
    %1930 = vmatpush2.msra.mxu0 %v1875
    %1931 = vmatprep.subr.mxu0 %v1874
    %1932 = vmatpush2.msra.mxu0 %v1873
    %1933 = vmatprep.subr.mxu0 %v1872
    %1934 = vmatpush2.msra.mxu0 %v1871
    %1935 = vmatprep.subr.mxu0 %v1870
    %1936 = vmatpush2.msra.mxu0 %v1869
    %1937 = vmatprep.subr.mxu0 %v1868
    %1938 = vmatpush2.msra.mxu0 %v1867
    %1939 = vmatprep.subr.mxu0 %v1866
    %1940 = vmatpush2.msra.mxu0 %v1865
    %1941 = vmatprep.subr.mxu0 %v1864
    %1942 = vmatpush2.msra.mxu0 %v1863
    %1943 = vmatprep.subr.mxu0 %v1862
    %1944 = vmatpush2.msra.mxu0 %v1861
    %1945 = vmatprep.subr.mxu0 %v1860
    %1946 = vmatpush2.msra.mxu0 %v1859
    %1947 = vmatprep.subr.mxu0 %v1858
    %1948 = vmatpush2.msra.mxu0 %v1857
    %1949 = vmatprep.subr.mxu0 %v1856
    %1950 = vmatpush2.msra.mxu0 %v1855
    %1951 = vmatprep.mubr.f32.mxu0 %v1814
    %1952 = vmatmul.mubr.f32.gmra.mxu0 %v1812
    %v1953 = vpop.f32.mrf.mxu0
    %v1954 = vadd.f32 0.0, %v1953
    %v1955 = vpop.f32.mrf.mxu0
    %v1956 = vadd.f32 0.0, %v1955
    %1957 = vmatprep.mubr.f32.mxu0 %v1820
    %1958 = vmatmul.mubr.f32.gmra.mxu0 %v1818
    %v1959 = vpop.f32.mrf.mxu0
    %v1960 = vadd.f32 0.0, %v1959
    %v1961 = vpop.f32.mrf.mxu0
    %v1962 = vadd.f32 0.0, %v1961
    %1963 = vdwg.mxu0
    %v1964 = vadd.f32 %v1732, %v1954
    %v1965 = vadd.f32 %v1733, %v1956
    %v1966 = vadd.f32 %v1734, %v1960
    %v1967 = vadd.f32 %v1735, %v1962
    %s1968 = scalar_lea.vmem [#allocation7], 32
    %v1969 = vld [vmem:[%s1968] sm:$0xff]
    %v1970 = vld [vmem:[%s1968 + $0x8] sm:$0xff]
    %v1972 = vsel %vm1496, %v1969, 0
    %v1975 = vsel %vm1496, %v1970, 0
    %1977 = vmatprep.subr.mxu0 0.0
    %1978 = vmatpush1.msra.mxu0 0.0
    %1979 = vmatprep.subr.mxu0 0.0
    %1980 = vmatpush1.msra.mxu0 0.0
    %1981 = vmatprep.subr.mxu0 0.0
    %1982 = vmatpush1.msra.mxu0 0.0
    %1983 = vmatprep.subr.mxu0 0.0
    %1984 = vmatpush1.msra.mxu0 0.0
    %1985 = vmatprep.subr.mxu0 0.0
    %1986 = vmatpush1.msra.mxu0 0.0
    %1987 = vmatprep.subr.mxu0 0.0
    %1988 = vmatpush1.msra.mxu0 0.0
    %1989 = vmatprep.subr.mxu0 0.0
    %1990 = vmatpush1.msra.mxu0 0.0
    %1991 = vmatprep.subr.mxu0 0.0
    %1992 = vmatpush1.msra.mxu0 0.0
    %1993 = vmatprep.subr.mxu0 0.0
    %1994 = vmatpush1.msra.mxu0 0.0
    %1995 = vmatprep.subr.mxu0 0.0
    %1996 = vmatpush1.msra.mxu0 0.0
    %1997 = vmatprep.subr.mxu0 0.0
    %1998 = vmatpush1.msra.mxu0 0.0
    %1999 = vmatprep.subr.mxu0 0.0
    %2000 = vmatpush1.msra.mxu0 0.0
    %2001 = vmatprep.subr.mxu0 %v1492
    %2002 = vmatpush1.msra.mxu0 %v1491
    %2003 = vmatprep.subr.mxu0 %v1490
    %2004 = vmatpush1.msra.mxu0 %v1489
    %2005 = vmatprep.subr.mxu0 %v1488
    %2006 = vmatpush1.msra.mxu0 %v1487
    %2007 = vmatprep.subr.mxu0 %v1486
    %2008 = vmatpush1.msra.mxu0 %v1485
    %2009 = vmatprep.subr.mxu0 0.0
    %2010 = vmatpush2.msra.mxu0 0.0
    %2011 = vmatprep.subr.mxu0 0.0
    %2012 = vmatpush2.msra.mxu0 0.0
    %2013 = vmatprep.subr.mxu0 0.0
    %2014 = vmatpush2.msra.mxu0 0.0
    %2015 = vmatprep.subr.mxu0 0.0
    %2016 = vmatpush2.msra.mxu0 0.0
    %2017 = vmatprep.subr.mxu0 0.0
    %2018 = vmatpush2.msra.mxu0 0.0
    %2019 = vmatprep.subr.mxu0 0.0
    %2020 = vmatpush2.msra.mxu0 0.0
    %2021 = vmatprep.subr.mxu0 0.0
    %2022 = vmatpush2.msra.mxu0 0.0
    %2023 = vmatprep.subr.mxu0 0.0
    %2024 = vmatpush2.msra.mxu0 0.0
    %2025 = vmatprep.subr.mxu0 0.0
    %2026 = vmatpush2.msra.mxu0 0.0
    %2027 = vmatprep.subr.mxu0 0.0
    %2028 = vmatpush2.msra.mxu0 0.0
    %2029 = vmatprep.subr.mxu0 0.0
    %2030 = vmatpush2.msra.mxu0 0.0
    %2031 = vmatprep.subr.mxu0 0.0
    %2032 = vmatpush2.msra.mxu0 0.0
    %2033 = vmatprep.subr.mxu0 0.0
    %2034 = vmatpush2.msra.mxu0 0.0
    %2035 = vmatprep.subr.mxu0 0.0
    %2036 = vmatpush2.msra.mxu0 0.0
    %2037 = vmatprep.subr.mxu0 0.0
    %2038 = vmatpush2.msra.mxu0 0.0
    %2039 = vmatprep.subr.mxu0 0.0
    %2040 = vmatpush2.msra.mxu0 0.0
    %2041 = vmatprep.mubr.f32.mxu0 0.0
    %2042 = vmatmul.mubr.f32.gmra.mxu0 %v1972
    %v2043 = vpop.f32.mrf.mxu0
    %v2044 = vadd.f32 0.0, %v2043
    %v2045 = vpop.f32.mrf.mxu0
    %v2046 = vadd.f32 0.0, %v2045
    %2047 = vmatprep.mubr.f32.mxu0 0.0
    %2048 = vmatmul.mubr.f32.gmra.mxu0 %v1975
    %v2049 = vpop.f32.mrf.mxu0
    %v2050 = vadd.f32 0.0, %v2049
    %v2051 = vpop.f32.mrf.mxu0
    %v2052 = vadd.f32 0.0, %v2051
    %2053 = vdwg.mxu0
    %s2054 = scalar_lea.vmem [#allocation8], 1024
    %v2055 = vld [vmem:[%s2054] sm:$0xff]
    %v2056 = vld [vmem:[%s2054 + $0x8] sm:$0xff]
    %v2057 = vld [vmem:[%s2054 + $0x10] sm:$0xff]
    %v2058 = vld [vmem:[%s2054 + $0x18] sm:$0xff]
    %v2059 = vld [vmem:[%s2054 + $0x20] sm:$0xff]
    %v2060 = vld [vmem:[%s2054 + $0x28] sm:$0xff]
    %v2061 = vld [vmem:[%s2054 + $0x30] sm:$0xff]
    %v2062 = vld [vmem:[%s2054 + $0x38] sm:$0xff]
    %v2063 = vld [vmem:[%s2054 + $0x40] sm:$0xff]
    %v2064 = vld [vmem:[%s2054 + $0x48] sm:$0xff]
    %v2065 = vld [vmem:[%s2054 + $0x50] sm:$0xff]
    %v2066 = vld [vmem:[%s2054 + $0x58] sm:$0xff]
    %v2067 = vld [vmem:[%s2054 + $0x60] sm:$0xff]
    %v2068 = vld [vmem:[%s2054 + $0x68] sm:$0xff]
    %v2069 = vld [vmem:[%s2054 + $0x70] sm:$0xff]
    %v2070 = vld [vmem:[%s2054 + $0x78] sm:$0xff]
    %v2071 = vld [vmem:[%s2054 + $0x80] sm:$0xff]
    %v2072 = vld [vmem:[%s2054 + $0x88] sm:$0xff]
    %v2073 = vld [vmem:[%s2054 + $0x90] sm:$0xff]
    %v2074 = vld [vmem:[%s2054 + $0x98] sm:$0xff]
    %v2075 = vld [vmem:[%s2054 + $0xa0] sm:$0xff]
    %v2076 = vld [vmem:[%s2054 + $0xa8] sm:$0xff]
    %v2077 = vld [vmem:[%s2054 + $0xb0] sm:$0xff]
    %v2078 = vld [vmem:[%s2054 + $0xb8] sm:$0xff]
    %v2079 = vld [vmem:[%s2054 + $0xc0] sm:$0xff]
    %v2080 = vld [vmem:[%s2054 + $0xc8] sm:$0xff]
    %v2081 = vld [vmem:[%s2054 + $0xd0] sm:$0xff]
    %v2082 = vld [vmem:[%s2054 + $0xd8] sm:$0xff]
    %v2083 = vld [vmem:[%s2054 + $0xe0] sm:$0xff]
    %v2084 = vld [vmem:[%s2054 + $0xe8] sm:$0xff]
    %v2085 = vld [vmem:[%s2054 + $0xf0] sm:$0xff]
    %v2086 = vld [vmem:[%s2054 + $0xf8] sm:$0xff]
    %v2087 = vld [vmem:[%s2054 + $0x100] sm:$0xff]
    %v2088 = vld [vmem:[%s2054 + $0x108] sm:$0xff]
    %v2089 = vld [vmem:[%s2054 + $0x110] sm:$0xff]
    %v2090 = vld [vmem:[%s2054 + $0x118] sm:$0xff]
    %v2091 = vld [vmem:[%s2054 + $0x120] sm:$0xff]
    %v2092 = vld [vmem:[%s2054 + $0x128] sm:$0xff]
    %v2093 = vld [vmem:[%s2054 + $0x130] sm:$0xff]
    %v2094 = vld [vmem:[%s2054 + $0x138] sm:$0xff]
    %v2095 = vld [vmem:[%s2054 + $0x140] sm:$0xff]
    %v2096 = vld [vmem:[%s2054 + $0x148] sm:$0xff]
    %v2097 = vld [vmem:[%s2054 + $0x150] sm:$0xff]
    %v2098 = vld [vmem:[%s2054 + $0x158] sm:$0xff]
    %v2099 = vld [vmem:[%s2054 + $0x160] sm:$0xff]
    %v2100 = vld [vmem:[%s2054 + $0x168] sm:$0xff]
    %v2101 = vld [vmem:[%s2054 + $0x170] sm:$0xff]
    %v2102 = vld [vmem:[%s2054 + $0x178] sm:$0xff]
    %v2103 = vld [vmem:[%s2054 + $0x180] sm:$0xff]
    %v2104 = vld [vmem:[%s2054 + $0x188] sm:$0xff]
    %v2105 = vld [vmem:[%s2054 + $0x190] sm:$0xff]
    %v2106 = vld [vmem:[%s2054 + $0x198] sm:$0xff]
    %v2107 = vld [vmem:[%s2054 + $0x1a0] sm:$0xff]
    %v2108 = vld [vmem:[%s2054 + $0x1a8] sm:$0xff]
    %v2109 = vld [vmem:[%s2054 + $0x1b0] sm:$0xff]
    %v2110 = vld [vmem:[%s2054 + $0x1b8] sm:$0xff]
    %v2111 = vld [vmem:[%s2054 + $0x1c0] sm:$0xff]
    %v2112 = vld [vmem:[%s2054 + $0x1c8] sm:$0xff]
    %v2113 = vld [vmem:[%s2054 + $0x1d0] sm:$0xff]
    %v2114 = vld [vmem:[%s2054 + $0x1d8] sm:$0xff]
    %v2115 = vld [vmem:[%s2054 + $0x1e0] sm:$0xff]
    %v2116 = vld [vmem:[%s2054 + $0x1e8] sm:$0xff]
    %v2117 = vld [vmem:[%s2054 + $0x1f0] sm:$0xff]
    %v2118 = vld [vmem:[%s2054 + $0x1f8] sm:$0xff]
    %2119 = vmatprep.subr.mxu0 %v2086
    %2120 = vmatpush1.msra.mxu0 %v2085
    %2121 = vmatprep.subr.mxu0 %v2084
    %2122 = vmatpush1.msra.mxu0 %v2083
    %2123 = vmatprep.subr.mxu0 %v2082
    %2124 = vmatpush1.msra.mxu0 %v2081
    %2125 = vmatprep.subr.mxu0 %v2080
    %2126 = vmatpush1.msra.mxu0 %v2079
    %2127 = vmatprep.subr.mxu0 %v2078
    %2128 = vmatpush1.msra.mxu0 %v2077
    %2129 = vmatprep.subr.mxu0 %v2076
    %2130 = vmatpush1.msra.mxu0 %v2075
    %2131 = vmatprep.subr.mxu0 %v2074
    %2132 = vmatpush1.msra.mxu0 %v2073
    %2133 = vmatprep.subr.mxu0 %v2072
    %2134 = vmatpush1.msra.mxu0 %v2071
    %2135 = vmatprep.subr.mxu0 %v2070
    %2136 = vmatpush1.msra.mxu0 %v2069
    %2137 = vmatprep.subr.mxu0 %v2068
    %2138 = vmatpush1.msra.mxu0 %v2067
    %2139 = vmatprep.subr.mxu0 %v2066
    %2140 = vmatpush1.msra.mxu0 %v2065
    %2141 = vmatprep.subr.mxu0 %v2064
    %2142 = vmatpush1.msra.mxu0 %v2063
    %2143 = vmatprep.subr.mxu0 %v2062
    %2144 = vmatpush1.msra.mxu0 %v2061
    %2145 = vmatprep.subr.mxu0 %v2060
    %2146 = vmatpush1.msra.mxu0 %v2059
    %2147 = vmatprep.subr.mxu0 %v2058
    %2148 = vmatpush1.msra.mxu0 %v2057
    %2149 = vmatprep.subr.mxu0 %v2056
    %2150 = vmatpush1.msra.mxu0 %v2055
    %2151 = vmatprep.subr.mxu0 %v2118
    %2152 = vmatpush2.msra.mxu0 %v2117
    %2153 = vmatprep.subr.mxu0 %v2116
    %2154 = vmatpush2.msra.mxu0 %v2115
    %2155 = vmatprep.subr.mxu0 %v2114
    %2156 = vmatpush2.msra.mxu0 %v2113
    %2157 = vmatprep.subr.mxu0 %v2112
    %2158 = vmatpush2.msra.mxu0 %v2111
    %2159 = vmatprep.subr.mxu0 %v2110
    %2160 = vmatpush2.msra.mxu0 %v2109
    %2161 = vmatprep.subr.mxu0 %v2108
    %2162 = vmatpush2.msra.mxu0 %v2107
    %2163 = vmatprep.subr.mxu0 %v2106
    %2164 = vmatpush2.msra.mxu0 %v2105
    %2165 = vmatprep.subr.mxu0 %v2104
    %2166 = vmatpush2.msra.mxu0 %v2103
    %2167 = vmatprep.subr.mxu0 %v2102
    %2168 = vmatpush2.msra.mxu0 %v2101
    %2169 = vmatprep.subr.mxu0 %v2100
    %2170 = vmatpush2.msra.mxu0 %v2099
    %2171 = vmatprep.subr.mxu0 %v2098
    %2172 = vmatpush2.msra.mxu0 %v2097
    %2173 = vmatprep.subr.mxu0 %v2096
    %2174 = vmatpush2.msra.mxu0 %v2095
    %2175 = vmatprep.subr.mxu0 %v2094
    %2176 = vmatpush2.msra.mxu0 %v2093
    %2177 = vmatprep.subr.mxu0 %v2092
    %2178 = vmatpush2.msra.mxu0 %v2091
    %2179 = vmatprep.subr.mxu0 %v2090
    %2180 = vmatpush2.msra.mxu0 %v2089
    %2181 = vmatprep.subr.mxu0 %v2088
    %2182 = vmatpush2.msra.mxu0 %v2087
    %2183 = vmatprep.mubr.f32.mxu0 %v2046
    %2184 = vmatmul.mubr.f32.gmra.mxu0 %v2044
    %v2185 = vpop.f32.mrf.mxu0
    %v2186 = vadd.f32 0.0, %v2185
    %v2187 = vpop.f32.mrf.mxu0
    %v2188 = vadd.f32 0.0, %v2187
    %2189 = vmatprep.mubr.f32.mxu0 %v2052
    %2190 = vmatmul.mubr.f32.gmra.mxu0 %v2050
    %v2191 = vpop.f32.mrf.mxu0
    %v2192 = vadd.f32 0.0, %v2191
    %v2193 = vpop.f32.mrf.mxu0
    %v2194 = vadd.f32 0.0, %v2193
    %2195 = vdwg.mxu0
    %v2196 = vadd.f32 %v1964, %v2186
    %v2197 = vadd.f32 %v1965, %v2188
    %v2198 = vadd.f32 %v1966, %v2192
    %v2199 = vadd.f32 %v1967, %v2194
    %v2200 = vmax.f32 %v2196, 0.0
    %v2201 = vmax.f32 %v2197, 0.0
    %v2202 = vmax.f32 %v2198, 0.0
    %v2203 = vmax.f32 %v2199, 0.0
    %v2204 = vmax.f32 %v2200, %v2202
    %v2205 = vmax.f32 %v2201, %v2203
    %v2206 = vmax.f32 %v2204, %v2205
    %v2207 = vld [vmem:[%s9] sm:$0x1]
    %v2208 = vld [vmem:[%s7] sm:$0xf]
    %vm2209 = vcmask 64512
    %v2211 = vsel %vm2209, %v2208, 0
    %2213 = vmatprep.subr.mxu0 0.0
    %2214 = vmatpush1.msra.mxu0 0.0
    %2215 = vmatprep.subr.mxu0 0.0
    %2216 = vmatpush1.msra.mxu0 0.0
    %2217 = vmatprep.subr.mxu0 0.0
    %2218 = vmatpush1.msra.mxu0 0.0
    %2219 = vmatprep.subr.mxu0 0.0
    %2220 = vmatpush1.msra.mxu0 0.0
    %2221 = vmatprep.subr.mxu0 0.0
    %2222 = vmatpush1.msra.mxu0 0.0
    %2223 = vmatprep.subr.mxu0 0.0
    %2224 = vmatpush1.msra.mxu0 0.0
    %2225 = vmatprep.subr.mxu0 0.0
    %2226 = vmatpush1.msra.mxu0 0.0
    %2227 = vmatprep.subr.mxu0 0.0
    %2228 = vmatpush1.msra.mxu0 0.0
    %2229 = vmatprep.subr.mxu0 0.0
    %2230 = vmatpush1.msra.mxu0 0.0
    %2231 = vmatprep.subr.mxu0 0.0
    %2232 = vmatpush1.msra.mxu0 0.0
    %2233 = vmatprep.subr.mxu0 0.0
    %2234 = vmatpush1.msra.mxu0 0.0
    %2235 = vmatprep.subr.mxu0 0.0
    %2236 = vmatpush1.msra.mxu0 0.0
    %2237 = vmatprep.subr.mxu0 0.0
    %2238 = vmatpush1.msra.mxu0 0.0
    %2239 = vmatprep.subr.mxu0 0.0
    %2240 = vmatpush1.msra.mxu0 0.0
    %2241 = vmatprep.subr.mxu0 0.0
    %2242 = vmatpush1.msra.mxu0 0.0
    %2243 = vmatprep.subr.mxu0 0.0
    %2244 = vmatpush1.msra.mxu0 %v2206
    %2245 = vmatprep.subr.mxu0 0.0
    %2246 = vmatpush2.msra.mxu0 0.0
    %2247 = vmatprep.subr.mxu0 0.0
    %2248 = vmatpush2.msra.mxu0 0.0
    %2249 = vmatprep.subr.mxu0 0.0
    %2250 = vmatpush2.msra.mxu0 0.0
    %2251 = vmatprep.subr.mxu0 0.0
    %2252 = vmatpush2.msra.mxu0 0.0
    %2253 = vmatprep.subr.mxu0 0.0
    %2254 = vmatpush2.msra.mxu0 0.0
    %2255 = vmatprep.subr.mxu0 0.0
    %2256 = vmatpush2.msra.mxu0 0.0
    %2257 = vmatprep.subr.mxu0 0.0
    %2258 = vmatpush2.msra.mxu0 0.0
    %2259 = vmatprep.subr.mxu0 0.0
    %2260 = vmatpush2.msra.mxu0 0.0
    %2261 = vmatprep.subr.mxu0 0.0
    %2262 = vmatpush2.msra.mxu0 0.0
    %2263 = vmatprep.subr.mxu0 0.0
    %2264 = vmatpush2.msra.mxu0 0.0
    %2265 = vmatprep.subr.mxu0 0.0
    %2266 = vmatpush2.msra.mxu0 0.0
    %2267 = vmatprep.subr.mxu0 0.0
    %2268 = vmatpush2.msra.mxu0 0.0
    %2269 = vmatprep.subr.mxu0 0.0
    %2270 = vmatpush2.msra.mxu0 0.0
    %2271 = vmatprep.subr.mxu0 0.0
    %2272 = vmatpush2.msra.mxu0 0.0
    %2273 = vmatprep.subr.mxu0 0.0
    %2274 = vmatpush2.msra.mxu0 0.0
    %2275 = vmatprep.subr.mxu0 0.0
    %2276 = vmatpush2.msra.mxu0 0.0
    %2277 = vmatprep.mubr.f32.mxu0 0.0
    %2278 = vmatmul.mubr.f32.gmra.mxu0 %v2211
    %v2279 = vpop.f32.mrf.mxu0
    %v2280 = vadd.f32 0.0, %v2279
    %v2281 = vpop.f32.mrf.mxu0
    %2282 = vdwg.mxu0
    %v2283 = vld [vmem:[#allocation10] sm:$0xff]
    %v2284 = vld [vmem:[#allocation10 + $0x8] sm:$0xff]
    %v2285 = vld [vmem:[#allocation10 + $0x10] sm:$0xff]
    %v2286 = vld [vmem:[#allocation10 + $0x18] sm:$0xff]
    %v2287 = vld [vmem:[#allocation10 + $0x20] sm:$0xff]
    %v2288 = vld [vmem:[#allocation10 + $0x28] sm:$0xff]
    %v2289 = vld [vmem:[#allocation10 + $0x30] sm:$0xff]
    %v2290 = vld [vmem:[#allocation10 + $0x38] sm:$0xff]
    %v2291 = vld [vmem:[#allocation10 + $0x40] sm:$0xff]
    %v2292 = vld [vmem:[#allocation10 + $0x48] sm:$0xff]
    %v2293 = vld [vmem:[#allocation10 + $0x50] sm:$0xff]
    %v2294 = vld [vmem:[#allocation10 + $0x58] sm:$0xff]
    %v2295 = vld [vmem:[#allocation10 + $0x60] sm:$0xff]
    %v2296 = vld [vmem:[#allocation10 + $0x68] sm:$0xff]
    %v2297 = vld [vmem:[#allocation10 + $0x70] sm:$0xff]
    %v2298 = vld [vmem:[#allocation10 + $0x78] sm:$0xff]
    %2299 = vmatprep.subr.mxu0 0.0
    %2300 = vmatpush1.msra.mxu0 %v2298
    %2301 = vmatprep.subr.mxu0 0.0
    %2302 = vmatpush1.msra.mxu0 %v2297
    %2303 = vmatprep.subr.mxu0 0.0
    %2304 = vmatpush1.msra.mxu0 %v2296
    %2305 = vmatprep.subr.mxu0 0.0
    %2306 = vmatpush1.msra.mxu0 %v2295
    %2307 = vmatprep.subr.mxu0 0.0
    %2308 = vmatpush1.msra.mxu0 %v2294
    %2309 = vmatprep.subr.mxu0 0.0
    %2310 = vmatpush1.msra.mxu0 %v2293
    %2311 = vmatprep.subr.mxu0 0.0
    %2312 = vmatpush1.msra.mxu0 %v2292
    %2313 = vmatprep.subr.mxu0 0.0
    %2314 = vmatpush1.msra.mxu0 %v2291
    %2315 = vmatprep.subr.mxu0 0.0
    %2316 = vmatpush1.msra.mxu0 %v2290
    %2317 = vmatprep.subr.mxu0 0.0
    %2318 = vmatpush1.msra.mxu0 %v2289
    %2319 = vmatprep.subr.mxu0 0.0
    %2320 = vmatpush1.msra.mxu0 %v2288
    %2321 = vmatprep.subr.mxu0 0.0
    %2322 = vmatpush1.msra.mxu0 %v2287
    %2323 = vmatprep.subr.mxu0 0.0
    %2324 = vmatpush1.msra.mxu0 %v2286
    %2325 = vmatprep.subr.mxu0 0.0
    %2326 = vmatpush1.msra.mxu0 %v2285
    %2327 = vmatprep.subr.mxu0 0.0
    %2328 = vmatpush1.msra.mxu0 %v2284
    %2329 = vmatprep.subr.mxu0 0.0
    %2330 = vmatpush1.msra.mxu0 %v2283
    %2331 = vmatprep.subr.mxu0 0.0
    %2332 = vmatpush2.msra.mxu0 0.0
    %2333 = vmatprep.subr.mxu0 0.0
    %2334 = vmatpush2.msra.mxu0 0.0
    %2335 = vmatprep.subr.mxu0 0.0
    %2336 = vmatpush2.msra.mxu0 0.0
    %2337 = vmatprep.subr.mxu0 0.0
    %2338 = vmatpush2.msra.mxu0 0.0
    %2339 = vmatprep.subr.mxu0 0.0
    %2340 = vmatpush2.msra.mxu0 0.0
    %2341 = vmatprep.subr.mxu0 0.0
    %2342 = vmatpush2.msra.mxu0 0.0
    %2343 = vmatprep.subr.mxu0 0.0
    %2344 = vmatpush2.msra.mxu0 0.0
    %2345 = vmatprep.subr.mxu0 0.0
    %2346 = vmatpush2.msra.mxu0 0.0
    %2347 = vmatprep.subr.mxu0 0.0
    %2348 = vmatpush2.msra.mxu0 0.0
    %2349 = vmatprep.subr.mxu0 0.0
    %2350 = vmatpush2.msra.mxu0 0.0
    %2351 = vmatprep.subr.mxu0 0.0
    %2352 = vmatpush2.msra.mxu0 0.0
    %2353 = vmatprep.subr.mxu0 0.0
    %2354 = vmatpush2.msra.mxu0 0.0
    %2355 = vmatprep.subr.mxu0 0.0
    %2356 = vmatpush2.msra.mxu0 0.0
    %2357 = vmatprep.subr.mxu0 0.0
    %2358 = vmatpush2.msra.mxu0 0.0
    %2359 = vmatprep.subr.mxu0 0.0
    %2360 = vmatpush2.msra.mxu0 0.0
    %2361 = vmatprep.subr.mxu0 0.0
    %2362 = vmatpush2.msra.mxu0 0.0
    %2363 = vmatprep.mubr.f32.mxu0 0.0
    %2364 = vmatmul.mubr.f32.gmra.mxu0 %v2280
    %v2365 = vpop.f32.mrf.mxu0
    %v2366 = vadd.f32 0.0, %v2365
    %v2367 = vpop.f32.mrf.mxu0
    %2368 = vdwg.mxu0
    %v2370 = vlaneseq
    %v2371 = vshrl.u32 %v2370, 7
    %v2372 = vsub.s32 0, %v2371
    %v2373 = vrot.slane %v2207, %v2372
    %v2375 = vadd.f32 %v2373, %v2366
    %s2376 = scalar_lea.vmem %s7, 4
    %v2377 = vld [vmem:[%s2376] sm:$0xf]
    %v2379 = vsel %vm2209, %v2377, 0
    %2381 = vmatprep.subr.mxu0 0.0
    %2382 = vmatpush1.msra.mxu0 0.0
    %2383 = vmatprep.subr.mxu0 0.0
    %2384 = vmatpush1.msra.mxu0 0.0
    %2385 = vmatprep.subr.mxu0 0.0
    %2386 = vmatpush1.msra.mxu0 0.0
    %2387 = vmatprep.subr.mxu0 0.0
    %2388 = vmatpush1.msra.mxu0 0.0
    %2389 = vmatprep.subr.mxu0 0.0
    %2390 = vmatpush1.msra.mxu0 0.0
    %2391 = vmatprep.subr.mxu0 0.0
    %2392 = vmatpush1.msra.mxu0 0.0
    %2393 = vmatprep.subr.mxu0 0.0
    %2394 = vmatpush1.msra.mxu0 0.0
    %2395 = vmatprep.subr.mxu0 0.0
    %2396 = vmatpush1.msra.mxu0 0.0
    %2397 = vmatprep.subr.mxu0 0.0
    %2398 = vmatpush1.msra.mxu0 0.0
    %2399 = vmatprep.subr.mxu0 0.0
    %2400 = vmatpush1.msra.mxu0 0.0
    %2401 = vmatprep.subr.mxu0 0.0
    %2402 = vmatpush1.msra.mxu0 0.0
    %2403 = vmatprep.subr.mxu0 0.0
    %2404 = vmatpush1.msra.mxu0 0.0
    %2405 = vmatprep.subr.mxu0 0.0
    %2406 = vmatpush1.msra.mxu0 0.0
    %2407 = vmatprep.subr.mxu0 0.0
    %2408 = vmatpush1.msra.mxu0 0.0
    %2409 = vmatprep.subr.mxu0 0.0
    %2410 = vmatpush1.msra.mxu0 0.0
    %2411 = vmatprep.subr.mxu0 0.0
    %2412 = vmatpush1.msra.mxu0 %v2206
    %2413 = vmatprep.subr.mxu0 0.0
    %2414 = vmatpush2.msra.mxu0 0.0
    %2415 = vmatprep.subr.mxu0 0.0
    %2416 = vmatpush2.msra.mxu0 0.0
    %2417 = vmatprep.subr.mxu0 0.0
    %2418 = vmatpush2.msra.mxu0 0.0
    %2419 = vmatprep.subr.mxu0 0.0
    %2420 = vmatpush2.msra.mxu0 0.0
    %2421 = vmatprep.subr.mxu0 0.0
    %2422 = vmatpush2.msra.mxu0 0.0
    %2423 = vmatprep.subr.mxu0 0.0
    %2424 = vmatpush2.msra.mxu0 0.0
    %2425 = vmatprep.subr.mxu0 0.0
    %2426 = vmatpush2.msra.mxu0 0.0
    %2427 = vmatprep.subr.mxu0 0.0
    %2428 = vmatpush2.msra.mxu0 0.0
    %2429 = vmatprep.subr.mxu0 0.0
    %2430 = vmatpush2.msra.mxu0 0.0
    %2431 = vmatprep.subr.mxu0 0.0
    %2432 = vmatpush2.msra.mxu0 0.0
    %2433 = vmatprep.subr.mxu0 0.0
    %2434 = vmatpush2.msra.mxu0 0.0
    %2435 = vmatprep.subr.mxu0 0.0
    %2436 = vmatpush2.msra.mxu0 0.0
    %2437 = vmatprep.subr.mxu0 0.0
    %2438 = vmatpush2.msra.mxu0 0.0
    %2439 = vmatprep.subr.mxu0 0.0
    %2440 = vmatpush2.msra.mxu0 0.0
    %2441 = vmatprep.subr.mxu0 0.0
    %2442 = vmatpush2.msra.mxu0 0.0
    %2443 = vmatprep.subr.mxu0 0.0
    %2444 = vmatpush2.msra.mxu0 0.0
    %2445 = vmatprep.mubr.f32.mxu0 0.0
    %2446 = vmatmul.mubr.f32.gmra.mxu0 %v2379
    %v2447 = vpop.f32.mrf.mxu0
    %v2448 = vadd.f32 0.0, %v2447
    %v2449 = vpop.f32.mrf.mxu0
    %2450 = vdwg.mxu0
    %s2451 = scalar_lea.vmem [#allocation10], 128
    %v2452 = vld [vmem:[%s2451] sm:$0xff]
    %v2453 = vld [vmem:[%s2451 + $0x8] sm:$0xff]
    %v2454 = vld [vmem:[%s2451 + $0x10] sm:$0xff]
    %v2455 = vld [vmem:[%s2451 + $0x18] sm:$0xff]
    %v2456 = vld [vmem:[%s2451 + $0x20] sm:$0xff]
    %v2457 = vld [vmem:[%s2451 + $0x28] sm:$0xff]
    %v2458 = vld [vmem:[%s2451 + $0x30] sm:$0xff]
    %v2459 = vld [vmem:[%s2451 + $0x38] sm:$0xff]
    %v2460 = vld [vmem:[%s2451 + $0x40] sm:$0xff]
    %v2461 = vld [vmem:[%s2451 + $0x48] sm:$0xff]
    %v2462 = vld [vmem:[%s2451 + $0x50] sm:$0xff]
    %v2463 = vld [vmem:[%s2451 + $0x58] sm:$0xff]
    %v2464 = vld [vmem:[%s2451 + $0x60] sm:$0xff]
    %v2465 = vld [vmem:[%s2451 + $0x68] sm:$0xff]
    %v2466 = vld [vmem:[%s2451 + $0x70] sm:$0xff]
    %v2467 = vld [vmem:[%s2451 + $0x78] sm:$0xff]
    %2468 = vmatprep.subr.mxu0 0.0
    %2469 = vmatpush1.msra.mxu0 %v2467
    %2470 = vmatprep.subr.mxu0 0.0
    %2471 = vmatpush1.msra.mxu0 %v2466
    %2472 = vmatprep.subr.mxu0 0.0
    %2473 = vmatpush1.msra.mxu0 %v2465
    %2474 = vmatprep.subr.mxu0 0.0
    %2475 = vmatpush1.msra.mxu0 %v2464
    %2476 = vmatprep.subr.mxu0 0.0
    %2477 = vmatpush1.msra.mxu0 %v2463
    %2478 = vmatprep.subr.mxu0 0.0
    %2479 = vmatpush1.msra.mxu0 %v2462
    %2480 = vmatprep.subr.mxu0 0.0
    %2481 = vmatpush1.msra.mxu0 %v2461
    %2482 = vmatprep.subr.mxu0 0.0
    %2483 = vmatpush1.msra.mxu0 %v2460
    %2484 = vmatprep.subr.mxu0 0.0
    %2485 = vmatpush1.msra.mxu0 %v2459
    %2486 = vmatprep.subr.mxu0 0.0
    %2487 = vmatpush1.msra.mxu0 %v2458
    %2488 = vmatprep.subr.mxu0 0.0
    %2489 = vmatpush1.msra.mxu0 %v2457
    %2490 = vmatprep.subr.mxu0 0.0
    %2491 = vmatpush1.msra.mxu0 %v2456
    %2492 = vmatprep.subr.mxu0 0.0
    %2493 = vmatpush1.msra.mxu0 %v2455
    %2494 = vmatprep.subr.mxu0 0.0
    %2495 = vmatpush1.msra.mxu0 %v2454
    %2496 = vmatprep.subr.mxu0 0.0
    %2497 = vmatpush1.msra.mxu0 %v2453
    %2498 = vmatprep.subr.mxu0 0.0
    %2499 = vmatpush1.msra.mxu0 %v2452
    %2500 = vmatprep.subr.mxu0 0.0
    %2501 = vmatpush2.msra.mxu0 0.0
    %2502 = vmatprep.subr.mxu0 0.0
    %2503 = vmatpush2.msra.mxu0 0.0
    %2504 = vmatprep.subr.mxu0 0.0
    %2505 = vmatpush2.msra.mxu0 0.0
    %2506 = vmatprep.subr.mxu0 0.0
    %2507 = vmatpush2.msra.mxu0 0.0
    %2508 = vmatprep.subr.mxu0 0.0
    %2509 = vmatpush2.msra.mxu0 0.0
    %2510 = vmatprep.subr.mxu0 0.0
    %2511 = vmatpush2.msra.mxu0 0.0
    %2512 = vmatprep.subr.mxu0 0.0
    %2513 = vmatpush2.msra.mxu0 0.0
    %2514 = vmatprep.subr.mxu0 0.0
    %2515 = vmatpush2.msra.mxu0 0.0
    %2516 = vmatprep.subr.mxu0 0.0
    %2517 = vmatpush2.msra.mxu0 0.0
    %2518 = vmatprep.subr.mxu0 0.0
    %2519 = vmatpush2.msra.mxu0 0.0
    %2520 = vmatprep.subr.mxu0 0.0
    %2521 = vmatpush2.msra.mxu0 0.0
    %2522 = vmatprep.subr.mxu0 0.0
    %2523 = vmatpush2.msra.mxu0 0.0
    %2524 = vmatprep.subr.mxu0 0.0
    %2525 = vmatpush2.msra.mxu0 0.0
    %2526 = vmatprep.subr.mxu0 0.0
    %2527 = vmatpush2.msra.mxu0 0.0
    %2528 = vmatprep.subr.mxu0 0.0
    %2529 = vmatpush2.msra.mxu0 0.0
    %2530 = vmatprep.subr.mxu0 0.0
    %2531 = vmatpush2.msra.mxu0 0.0
    %2532 = vmatprep.mubr.f32.mxu0 0.0
    %2533 = vmatmul.mubr.f32.gmra.mxu0 %v2448
    %v2534 = vpop.f32.mrf.mxu0
    %v2535 = vadd.f32 0.0, %v2534
    %v2536 = vpop.f32.mrf.mxu0
    %2537 = vdwg.mxu0
    %v2538 = vadd.f32 %v2375, %v2535
    %s2539 = scalar_lea.vmem %s7, 8
    %v2540 = vld [vmem:[%s2539] sm:$0xf]
    %v2542 = vsel %vm2209, %v2540, 0
    %2544 = vmatprep.subr.mxu0 0.0
    %2545 = vmatpush1.msra.mxu0 0.0
    %2546 = vmatprep.subr.mxu0 0.0
    %2547 = vmatpush1.msra.mxu0 0.0
    %2548 = vmatprep.subr.mxu0 0.0
    %2549 = vmatpush1.msra.mxu0 0.0
    %2550 = vmatprep.subr.mxu0 0.0
    %2551 = vmatpush1.msra.mxu0 0.0
    %2552 = vmatprep.subr.mxu0 0.0
    %2553 = vmatpush1.msra.mxu0 0.0
    %2554 = vmatprep.subr.mxu0 0.0
    %2555 = vmatpush1.msra.mxu0 0.0
    %2556 = vmatprep.subr.mxu0 0.0
    %2557 = vmatpush1.msra.mxu0 0.0
    %2558 = vmatprep.subr.mxu0 0.0
    %2559 = vmatpush1.msra.mxu0 0.0
    %2560 = vmatprep.subr.mxu0 0.0
    %2561 = vmatpush1.msra.mxu0 0.0
    %2562 = vmatprep.subr.mxu0 0.0
    %2563 = vmatpush1.msra.mxu0 0.0
    %2564 = vmatprep.subr.mxu0 0.0
    %2565 = vmatpush1.msra.mxu0 0.0
    %2566 = vmatprep.subr.mxu0 0.0
    %2567 = vmatpush1.msra.mxu0 0.0
    %2568 = vmatprep.subr.mxu0 0.0
    %2569 = vmatpush1.msra.mxu0 0.0
    %2570 = vmatprep.subr.mxu0 0.0
    %2571 = vmatpush1.msra.mxu0 0.0
    %2572 = vmatprep.subr.mxu0 0.0
    %2573 = vmatpush1.msra.mxu0 0.0
    %2574 = vmatprep.subr.mxu0 0.0
    %2575 = vmatpush1.msra.mxu0 %v2206
    %2576 = vmatprep.subr.mxu0 0.0
    %2577 = vmatpush2.msra.mxu0 0.0
    %2578 = vmatprep.subr.mxu0 0.0
    %2579 = vmatpush2.msra.mxu0 0.0
    %2580 = vmatprep.subr.mxu0 0.0
    %2581 = vmatpush2.msra.mxu0 0.0
    %2582 = vmatprep.subr.mxu0 0.0
    %2583 = vmatpush2.msra.mxu0 0.0
    %2584 = vmatprep.subr.mxu0 0.0
    %2585 = vmatpush2.msra.mxu0 0.0
    %2586 = vmatprep.subr.mxu0 0.0
    %2587 = vmatpush2.msra.mxu0 0.0
    %2588 = vmatprep.subr.mxu0 0.0
    %2589 = vmatpush2.msra.mxu0 0.0
    %2590 = vmatprep.subr.mxu0 0.0
    %2591 = vmatpush2.msra.mxu0 0.0
    %2592 = vmatprep.subr.mxu0 0.0
    %2593 = vmatpush2.msra.mxu0 0.0
    %2594 = vmatprep.subr.mxu0 0.0
    %2595 = vmatpush2.msra.mxu0 0.0
    %2596 = vmatprep.subr.mxu0 0.0
    %2597 = vmatpush2.msra.mxu0 0.0
    %2598 = vmatprep.subr.mxu0 0.0
    %2599 = vmatpush2.msra.mxu0 0.0
    %2600 = vmatprep.subr.mxu0 0.0
    %2601 = vmatpush2.msra.mxu0 0.0
    %2602 = vmatprep.subr.mxu0 0.0
    %2603 = vmatpush2.msra.mxu0 0.0
    %2604 = vmatprep.subr.mxu0 0.0
    %2605 = vmatpush2.msra.mxu0 0.0
    %2606 = vmatprep.subr.mxu0 0.0
    %2607 = vmatpush2.msra.mxu0 0.0
    %2608 = vmatprep.mubr.f32.mxu0 0.0
    %2609 = vmatmul.mubr.f32.gmra.mxu0 %v2542
    %v2610 = vpop.f32.mrf.mxu0
    %v2611 = vadd.f32 0.0, %v2610
    %v2612 = vpop.f32.mrf.mxu0
    %2613 = vdwg.mxu0
    %s2614 = scalar_lea.vmem [#allocation10], 256
    %v2615 = vld [vmem:[%s2614] sm:$0xff]
    %v2616 = vld [vmem:[%s2614 + $0x8] sm:$0xff]
    %v2617 = vld [vmem:[%s2614 + $0x10] sm:$0xff]
    %v2618 = vld [vmem:[%s2614 + $0x18] sm:$0xff]
    %v2619 = vld [vmem:[%s2614 + $0x20] sm:$0xff]
    %v2620 = vld [vmem:[%s2614 + $0x28] sm:$0xff]
    %v2621 = vld [vmem:[%s2614 + $0x30] sm:$0xff]
    %v2622 = vld [vmem:[%s2614 + $0x38] sm:$0xff]
    %v2623 = vld [vmem:[%s2614 + $0x40] sm:$0xff]
    %v2624 = vld [vmem:[%s2614 + $0x48] sm:$0xff]
    %v2625 = vld [vmem:[%s2614 + $0x50] sm:$0xff]
    %v2626 = vld [vmem:[%s2614 + $0x58] sm:$0xff]
    %v2627 = vld [vmem:[%s2614 + $0x60] sm:$0xff]
    %v2628 = vld [vmem:[%s2614 + $0x68] sm:$0xff]
    %v2629 = vld [vmem:[%s2614 + $0x70] sm:$0xff]
    %v2630 = vld [vmem:[%s2614 + $0x78] sm:$0xff]
    %2631 = vmatprep.subr.mxu0 0.0
    %2632 = vmatpush1.msra.mxu0 %v2630
    %2633 = vmatprep.subr.mxu0 0.0
    %2634 = vmatpush1.msra.mxu0 %v2629
    %2635 = vmatprep.subr.mxu0 0.0
    %2636 = vmatpush1.msra.mxu0 %v2628
    %2637 = vmatprep.subr.mxu0 0.0
    %2638 = vmatpush1.msra.mxu0 %v2627
    %2639 = vmatprep.subr.mxu0 0.0
    %2640 = vmatpush1.msra.mxu0 %v2626
    %2641 = vmatprep.subr.mxu0 0.0
    %2642 = vmatpush1.msra.mxu0 %v2625
    %2643 = vmatprep.subr.mxu0 0.0
    %2644 = vmatpush1.msra.mxu0 %v2624
    %2645 = vmatprep.subr.mxu0 0.0
    %2646 = vmatpush1.msra.mxu0 %v2623
    %2647 = vmatprep.subr.mxu0 0.0
    %2648 = vmatpush1.msra.mxu0 %v2622
    %2649 = vmatprep.subr.mxu0 0.0
    %2650 = vmatpush1.msra.mxu0 %v2621
    %2651 = vmatprep.subr.mxu0 0.0
    %2652 = vmatpush1.msra.mxu0 %v2620
    %2653 = vmatprep.subr.mxu0 0.0
    %2654 = vmatpush1.msra.mxu0 %v2619
    %2655 = vmatprep.subr.mxu0 0.0
    %2656 = vmatpush1.msra.mxu0 %v2618
    %2657 = vmatprep.subr.mxu0 0.0
    %2658 = vmatpush1.msra.mxu0 %v2617
    %2659 = vmatprep.subr.mxu0 0.0
    %2660 = vmatpush1.msra.mxu0 %v2616
    %2661 = vmatprep.subr.mxu0 0.0
    %2662 = vmatpush1.msra.mxu0 %v2615
    %2663 = vmatprep.subr.mxu0 0.0
    %2664 = vmatpush2.msra.mxu0 0.0
    %2665 = vmatprep.subr.mxu0 0.0
    %2666 = vmatpush2.msra.mxu0 0.0
    %2667 = vmatprep.subr.mxu0 0.0
    %2668 = vmatpush2.msra.mxu0 0.0
    %2669 = vmatprep.subr.mxu0 0.0
    %2670 = vmatpush2.msra.mxu0 0.0
    %2671 = vmatprep.subr.mxu0 0.0
    %2672 = vmatpush2.msra.mxu0 0.0
    %2673 = vmatprep.subr.mxu0 0.0
    %2674 = vmatpush2.msra.mxu0 0.0
    %2675 = vmatprep.subr.mxu0 0.0
    %2676 = vmatpush2.msra.mxu0 0.0
    %2677 = vmatprep.subr.mxu0 0.0
    %2678 = vmatpush2.msra.mxu0 0.0
    %2679 = vmatprep.subr.mxu0 0.0
    %2680 = vmatpush2.msra.mxu0 0.0
    %2681 = vmatprep.subr.mxu0 0.0
    %2682 = vmatpush2.msra.mxu0 0.0
    %2683 = vmatprep.subr.mxu0 0.0
    %2684 = vmatpush2.msra.mxu0 0.0
    %2685 = vmatprep.subr.mxu0 0.0
    %2686 = vmatpush2.msra.mxu0 0.0
    %2687 = vmatprep.subr.mxu0 0.0
    %2688 = vmatpush2.msra.mxu0 0.0
    %2689 = vmatprep.subr.mxu0 0.0
    %2690 = vmatpush2.msra.mxu0 0.0
    %2691 = vmatprep.subr.mxu0 0.0
    %2692 = vmatpush2.msra.mxu0 0.0
    %2693 = vmatprep.subr.mxu0 0.0
    %2694 = vmatpush2.msra.mxu0 0.0
    %2695 = vmatprep.mubr.f32.mxu0 0.0
    %2696 = vmatmul.mubr.f32.gmra.mxu0 %v2611
    %v2697 = vpop.f32.mrf.mxu0
    %v2698 = vadd.f32 0.0, %v2697
    %v2699 = vpop.f32.mrf.mxu0
    %2700 = vdwg.mxu0
    %v2701 = vadd.f32 %v2538, %v2698
    %v2702 = vmax.f32 %v2701, 0.0
    %v2703 = vld [vmem:[%s10] sm:$0x3]
    %vm2704 = vcmask 31744
    %v2706 = vsel %vm2704, %v2703, 0
    %vm2708 = vcmask 1043456
    %v2710 = vsel %vm2708, %v2702, 0
    %2712 = vmatprep.subr.mxu0 0.0
    %2713 = vmatpush1.msra.mxu0 0.0
    %2714 = vmatprep.subr.mxu0 0.0
    %2715 = vmatpush1.msra.mxu0 0.0
    %2716 = vmatprep.subr.mxu0 0.0
    %2717 = vmatpush1.msra.mxu0 0.0
    %2718 = vmatprep.subr.mxu0 0.0
    %2719 = vmatpush1.msra.mxu0 0.0
    %2720 = vmatprep.subr.mxu0 0.0
    %2721 = vmatpush1.msra.mxu0 0.0
    %2722 = vmatprep.subr.mxu0 0.0
    %2723 = vmatpush1.msra.mxu0 0.0
    %2724 = vmatprep.subr.mxu0 0.0
    %2725 = vmatpush1.msra.mxu0 0.0
    %2726 = vmatprep.subr.mxu0 0.0
    %2727 = vmatpush1.msra.mxu0 0.0
    %2728 = vmatprep.subr.mxu0 0.0
    %2729 = vmatpush1.msra.mxu0 0.0
    %2730 = vmatprep.subr.mxu0 0.0
    %2731 = vmatpush1.msra.mxu0 0.0
    %2732 = vmatprep.subr.mxu0 0.0
    %2733 = vmatpush1.msra.mxu0 0.0
    %2734 = vmatprep.subr.mxu0 0.0
    %2735 = vmatpush1.msra.mxu0 0.0
    %2736 = vmatprep.subr.mxu0 0.0
    %2737 = vmatpush1.msra.mxu0 0.0
    %2738 = vmatprep.subr.mxu0 0.0
    %2739 = vmatpush1.msra.mxu0 0.0
    %2740 = vmatprep.subr.mxu0 0.0
    %2741 = vmatpush1.msra.mxu0 0.0
    %2742 = vmatprep.subr.mxu0 0.0
    %2743 = vmatpush1.msra.mxu0 %v2710
    %2744 = vmatprep.subr.mxu0 0.0
    %2745 = vmatpush2.msra.mxu0 0.0
    %2746 = vmatprep.subr.mxu0 0.0
    %2747 = vmatpush2.msra.mxu0 0.0
    %2748 = vmatprep.subr.mxu0 0.0
    %2749 = vmatpush2.msra.mxu0 0.0
    %2750 = vmatprep.subr.mxu0 0.0
    %2751 = vmatpush2.msra.mxu0 0.0
    %2752 = vmatprep.subr.mxu0 0.0
    %2753 = vmatpush2.msra.mxu0 0.0
    %2754 = vmatprep.subr.mxu0 0.0
    %2755 = vmatpush2.msra.mxu0 0.0
    %2756 = vmatprep.subr.mxu0 0.0
    %2757 = vmatpush2.msra.mxu0 0.0
    %2758 = vmatprep.subr.mxu0 0.0
    %2759 = vmatpush2.msra.mxu0 0.0
    %2760 = vmatprep.subr.mxu0 0.0
    %2761 = vmatpush2.msra.mxu0 0.0
    %2762 = vmatprep.subr.mxu0 0.0
    %2763 = vmatpush2.msra.mxu0 0.0
    %2764 = vmatprep.subr.mxu0 0.0
    %2765 = vmatpush2.msra.mxu0 0.0
    %2766 = vmatprep.subr.mxu0 0.0
    %2767 = vmatpush2.msra.mxu0 0.0
    %2768 = vmatprep.subr.mxu0 0.0
    %2769 = vmatpush2.msra.mxu0 0.0
    %2770 = vmatprep.subr.mxu0 0.0
    %2771 = vmatpush2.msra.mxu0 0.0
    %2772 = vmatprep.subr.mxu0 0.0
    %2773 = vmatpush2.msra.mxu0 0.0
    %2774 = vmatprep.subr.mxu0 0.0
    %2775 = vmatpush2.msra.mxu0 0.0
    %2776 = vmatprep.mubr.f32.mxu0 0.0
    %2777 = vmatmul.mubr.f32.gmra.mxu0 %v2706
    %v2778 = vpop.f32.mrf.mxu0
    %v2779 = vadd.f32 0.0, %v2778
    %v2780 = vpop.f32.mrf.mxu0
    %2781 = vdwg.mxu0
    %v2782 = vld [vmem:[%s11] sm:$0xff]
    %v2783 = vld [vmem:[%s11 + $0x8] sm:$0xff]
    %v2784 = vld [vmem:[%s11 + $0x10] sm:$0xff]
    %v2785 = vld [vmem:[%s11 + $0x18] sm:$0xff]
    %v2786 = vld [vmem:[%s11 + $0x20] sm:$0xff]
    %v2787 = vld [vmem:[%s11 + $0x28] sm:$0xff]
    %v2788 = vld [vmem:[%s11 + $0x30] sm:$0xff]
    %v2789 = vld [vmem:[%s11 + $0x38] sm:$0xff]
    %v2790 = vld [vmem:[%s11 + $0x40] sm:$0xff]
    %v2791 = vld [vmem:[%s11 + $0x48] sm:$0xff]
    %v2792 = vld [vmem:[%s11 + $0x50] sm:$0xff]
    %v2793 = vld [vmem:[%s11 + $0x58] sm:$0xff]
    %v2794 = vld [vmem:[%s11 + $0x60] sm:$0xff]
    %v2795 = vld [vmem:[%s11 + $0x68] sm:$0xff]
    %v2796 = vld [vmem:[%s11 + $0x70] sm:$0xff]
    %v2797 = vld [vmem:[%s11 + $0x78] sm:$0xff]
    %v2798 = vld [vmem:[%s12] sm:$0x1]
    %v2800 = vlaneseq
    %v2801 = vshrl.u32 %v2800, 7
    %v2802 = vsub.s32 0, %v2801
    %v2803 = vrot.slane %v2798, %v2802
    %2805 = vmatprep.subr.mxu0 0.0
    %2806 = vmatpush1.msra.mxu0 %v2797
    %2807 = vmatprep.subr.mxu0 0.0
    %2808 = vmatpush1.msra.mxu0 %v2796
    %2809 = vmatprep.subr.mxu0 0.0
    %2810 = vmatpush1.msra.mxu0 %v2795
    %2811 = vmatprep.subr.mxu0 0.0
    %2812 = vmatpush1.msra.mxu0 %v2794
    %2813 = vmatprep.subr.mxu0 0.0
    %2814 = vmatpush1.msra.mxu0 %v2793
    %2815 = vmatprep.subr.mxu0 0.0
    %2816 = vmatpush1.msra.mxu0 %v2792
    %2817 = vmatprep.subr.mxu0 0.0
    %2818 = vmatpush1.msra.mxu0 %v2791
    %2819 = vmatprep.subr.mxu0 0.0
    %2820 = vmatpush1.msra.mxu0 %v2790
    %2821 = vmatprep.subr.mxu0 0.0
    %2822 = vmatpush1.msra.mxu0 %v2789
    %2823 = vmatprep.subr.mxu0 0.0
    %2824 = vmatpush1.msra.mxu0 %v2788
    %2825 = vmatprep.subr.mxu0 0.0
    %2826 = vmatpush1.msra.mxu0 %v2787
    %2827 = vmatprep.subr.mxu0 0.0
    %2828 = vmatpush1.msra.mxu0 %v2786
    %2829 = vmatprep.subr.mxu0 0.0
    %2830 = vmatpush1.msra.mxu0 %v2785
    %2831 = vmatprep.subr.mxu0 0.0
    %2832 = vmatpush1.msra.mxu0 %v2784
    %2833 = vmatprep.subr.mxu0 0.0
    %2834 = vmatpush1.msra.mxu0 %v2783
    %2835 = vmatprep.subr.mxu0 0.0
    %2836 = vmatpush1.msra.mxu0 %v2782
    %2837 = vmatprep.subr.mxu0 0.0
    %2838 = vmatpush2.msra.mxu0 0.0
    %2839 = vmatprep.subr.mxu0 0.0
    %2840 = vmatpush2.msra.mxu0 0.0
    %2841 = vmatprep.subr.mxu0 0.0
    %2842 = vmatpush2.msra.mxu0 0.0
    %2843 = vmatprep.subr.mxu0 0.0
    %2844 = vmatpush2.msra.mxu0 0.0
    %2845 = vmatprep.subr.mxu0 0.0
    %2846 = vmatpush2.msra.mxu0 0.0
    %2847 = vmatprep.subr.mxu0 0.0
    %2848 = vmatpush2.msra.mxu0 0.0
    %2849 = vmatprep.subr.mxu0 0.0
    %2850 = vmatpush2.msra.mxu0 0.0
    %2851 = vmatprep.subr.mxu0 0.0
    %2852 = vmatpush2.msra.mxu0 0.0
    %2853 = vmatprep.subr.mxu0 0.0
    %2854 = vmatpush2.msra.mxu0 0.0
    %2855 = vmatprep.subr.mxu0 0.0
    %2856 = vmatpush2.msra.mxu0 0.0
    %2857 = vmatprep.subr.mxu0 0.0
    %2858 = vmatpush2.msra.mxu0 0.0
    %2859 = vmatprep.subr.mxu0 0.0
    %2860 = vmatpush2.msra.mxu0 0.0
    %2861 = vmatprep.subr.mxu0 0.0
    %2862 = vmatpush2.msra.mxu0 0.0
    %2863 = vmatprep.subr.mxu0 0.0
    %2864 = vmatpush2.msra.mxu0 0.0
    %2865 = vmatprep.subr.mxu0 0.0
    %2866 = vmatpush2.msra.mxu0 0.0
    %2867 = vmatprep.subr.mxu0 0.0
    %2868 = vmatpush2.msra.mxu0 0.0
    %2869 = vmatprep.mubr.f32.mxu0 0.0
    %2870 = vmatmul.mubr.f32.gmra.mxu0 %v2779
    %v2871 = vpop.f32.mrf.mxu0
    %v2872 = vadd.f32 %v2803, %v2871
    %v2873 = vpop.f32.mrf.mxu0
    %2874 = vdwg.mxu0
    %vm2875 = vcmask 74752
    %2876 = vst.msk [vmem:[#allocation11] sm:$0x3] %vm2875, %v2872
    // Predicated region
    $region74: #{split_model_forward.1} parent=1 // pred_check
      _
    $region75: #{split_model_forward.1} parent=1 // pred_check_branch
      %2878 = sbr.rel (0) target = $region77
    $region76: #{split_model_forward.1} parent=1 // pred_region
      %s2880 = ssub.s32 32, 32
      %2881 = vsyncadd [#allocation4], %s2880
      %s2883 = sshll.u32 [#allocation11], 4
      %s2884 = int_to_ptr.vmem [resolvable:$true] %s2883
      %2886 = dma.vmem_to_hbm [thread:$0]  %s2884, 32, %s13, [#allocation4]
    $region77: #{split_model_forward.1} parent=1 // pred_fallthru
      _
    // Predicated region
    $region78: #{split_model_forward.1} parent=1 // pred_check
      _
    $region79: #{split_model_forward.1} parent=1 // pred_check_branch
      %2888 = sbr.rel (0) target = $region81
    $region80: #{split_model_forward.1} parent=1 // pred_region
      %2889 = dma.done [#allocation4], 32
    $region81: #{split_model_forward.1} parent=1 // pred_fallthru
      _
    %2890 = vsyncpa [#allocation3], 1
    %2891 = vsyncpa [#allocation6], 1
    %2892 = vsyncpa [#allocation9], 1
    %2893 = vsyncpa [#allocation4], 1

</llo_original>
